<compile_context>
chip_gen: v6e
topology: v6e:2x2x1
jax: 0.10.0
libtpu: 0.0.40
codegen_flags: <defaults>
</compile_context>

<pallas_src>
import functools

import jax
import jax.numpy as jnp
from jax import lax
from jax.experimental import pallas as pl
from jax.experimental.pallas import tpu as pltpu


def _gru_classifier_kernel(num_layers, hidden_size, batch, seq_len,
                           x_ref,       # (T*B, I)   time-major, flattened input
                           w_ih0_ref,   # (3, I, H)  layer-0 input weights, per gate
                           w_ihr_ref,   # (max(L-1,1), 3, H, H) layers 1..L-1 input wts
                           w_hh_ref,    # (L, 3, H, H) hidden weights, per gate
                           b_gx_ref,    # (L, 3, 1, H) folded x-side gate biases
                           b_hn_ref,    # (L, 1, H)    hidden-side bias of the n gate
                           w_fc_ref,    # (H, O)
                           b_fc_ref,    # (1, O)
                           out_ref,     # (B, O)
                           seq_ref):    # (T*B, H) scratch: inter-layer hidden sequence
    H = hidden_size
    B = batch
    T = seq_len
    L = num_layers

    def hoisted_gx(x2d, w_gates, b_gates):
        # One big MXU matmul per gate, amortized over all T*B rows.
        return [jnp.dot(x2d, w_gates[g], preferred_element_type=jnp.float32)
                + b_gates[g]
                for g in range(3)]

    def run_layer(gx, w_hh_l, b_hn_l, write_seq):
        # gx: list of 3 (T*B, H) pre-activations [r, z, n]; w_hh_l: (3, H, H)
        w_r, w_z, w_n = w_hh_l[0], w_hh_l[1], w_hh_l[2]
        h = jnp.zeros((B, H), jnp.float32)
        for t in range(T):                       # static unroll (T small & fixed)
            lo, hi = t * B, (t + 1) * B
            gh_r = jnp.dot(h, w_r, preferred_element_type=jnp.float32)
            gh_z = jnp.dot(h, w_z, preferred_element_type=jnp.float32)
            gh_n = jnp.dot(h, w_n, preferred_element_type=jnp.float32) + b_hn_l
            r = jax.nn.sigmoid(gx[0][lo:hi, :] + gh_r)
            z = jax.nn.sigmoid(gx[1][lo:hi, :] + gh_z)
            n = jnp.tanh(gx[2][lo:hi, :] + r * gh_n)
            h = n + z * (h - n)                  # == (1 - z) * n + z * h
            if write_seq:                        # skipped on the last GRU layer
                seq_ref[lo:hi, :] = h
        return h

    # ---- layer 0: consumes the raw (time-major, flattened) input sequence ----
    gx0 = hoisted_gx(x_ref[...], w_ih0_ref[...], b_gx_ref[0])
    h_last = run_layer(gx0, w_hh_ref[0], b_hn_ref[0], write_seq=(L > 1))

    # ---- layers 1 .. L-1: GX from the previous layer's hidden sequence ----
    for l in range(1, L):
        gxl = hoisted_gx(seq_ref[...], w_ihr_ref[l - 1], b_gx_ref[l])
        h_last = run_layer(gxl, w_hh_ref[l], b_hn_ref[l], write_seq=(l < L - 1))

    # ---- FC on the last timestep's hidden state, softmax over classes (dim=1) ----
    logits = jnp.dot(h_last, w_fc_ref[...],
                     preferred_element_type=jnp.float32) + b_fc_ref[...]
    m = jnp.max(logits, axis=1, keepdims=True)
    e = jnp.exp(logits - m)
    out_ref[...] = e / jnp.sum(e, axis=1, keepdims=True)


def prepare_gru_params(params, *, num_layers, hidden_size):
    """One-time parameter re-layout: per-gate split, transpose, bias folding.

    PyTorch nn.GRU packs gates as [r, z, n] along dim 0 of weight_ih/weight_hh.
    Called once at init — NOT part of the per-call forward path.
    """
    H = hidden_size
    L = num_layers

    def split_t(w):  # (3H, in) -> (3, in, H): per-gate, transposed for x @ W
        return jnp.stack([jnp.transpose(w[g * H:(g + 1) * H, :]) for g in range(3)])

    w_ih0 = split_t(params["w_ih_l0"]).astype(jnp.float32)                   # (3, I, H)
    if L > 1:
        w_ihr = jnp.stack([split_t(params[f"w_ih_l{l}"]) for l in range(1, L)])
    else:  # dummy, never read inside the kernel
        w_ihr = jnp.zeros((1, 3, H, H), jnp.float32)
    w_hh = jnp.stack([split_t(params[f"w_hh_l{l}"]) for l in range(L)])      # (L,3,H,H)

    def fold_bias(l):
        b_ih = params[f"b_ih_l{l}"]
        b_hh = params[f"b_hh_l{l}"]
        b_r = (b_ih[0:H] + b_hh[0:H]).reshape(1, H)           # additive -> fold
        b_z = (b_ih[H:2 * H] + b_hh[H:2 * H]).reshape(1, H)   # additive -> fold
        b_in = b_ih[2 * H:3 * H].reshape(1, H)                # stays on the x side
        return jnp.stack([b_r, b_z, b_in])                    # (3, 1, H)

    b_gx = jnp.stack([fold_bias(l) for l in range(L)]).astype(jnp.float32)   # (L,3,1,H)
    b_hn = jnp.stack([params[f"b_hh_l{l}"][2 * H:3 * H].reshape(1, H)
                      for l in range(L)]).astype(jnp.float32)                # (L,1,H)

    w_fc = jnp.transpose(params["w_fc"]).astype(jnp.float32)                 # (H, O)
    b_fc = params["b_fc"].reshape(1, -1).astype(jnp.float32)                 # (1, O)
    return dict(w_ih0=w_ih0, w_ihr=w_ihr, w_hh=w_hh,
                b_gx=b_gx, b_hn=b_hn, w_fc=w_fc, b_fc=b_fc)


@functools.partial(jax.jit, static_argnames=("num_layers", "hidden_size"))
def gru3d_classifier_forward(x, packed, *, num_layers, hidden_size):
    """x: (B, T, input_size) float32; packed: prepare_gru_params() output.

    Returns softmax probabilities of shape (B, output_size).
    """
    B, T, I = x.shape
    H = hidden_size
    O = packed["w_fc"].shape[1]
    assert T >= 1, "sequence length must be >= 1"

    # Time-major + flattened so the kernel's hoisted GX matmul needs no in-kernel
    # transpose/reshape; this is the only per-call layout op left in the wrapper.
    x2d = jnp.transpose(x, (1, 0, 2)).reshape(T * B, I).astype(jnp.float32)

    kernel = functools.partial(_gru_classifier_kernel, num_layers, hidden_size, B, T)
    vmem = pl.BlockSpec(memory_space=pltpu.MemorySpace.VMEM)

    return pl.pallas_call(
        kernel,
        out_shape=jax.ShapeDtypeStruct((B, O), jnp.float32),
        in_specs=[vmem] * 8,
        out_specs=vmem,
        scratch_shapes=[pltpu.VMEM((T * B, H), jnp.float32)],  # inter-layer hidden seq
        compiler_params=pltpu.CompilerParams(vmem_limit_bytes=32 * 1024 * 1024),
    )(x2d, packed["w_ih0"], packed["w_ihr"], packed["w_hh"],
      packed["b_gx"], packed["b_hn"], packed["w_fc"], packed["b_fc"])


def _reference_forward(x, params, *, num_layers, hidden_size):
    """Pure-JAX reference matching torch.nn.GRU (eval) + Linear + softmax."""
    B, T, I = x.shape
    H = hidden_size
    seq = x
    for l in range(num_layers):
        w_ih = params[f"w_ih_l{l}"]; w_hh = params[f"w_hh_l{l}"]
        b_ih = params[f"b_ih_l{l}"]; b_hh = params[f"b_hh_l{l}"]
        h = jnp.zeros((B, H), jnp.float32)
        outs = []
        for t in range(T):
            xt = seq[:, t, :]
            gx = xt @ w_ih.T + b_ih
            gh = h @ w_hh.T + b_hh
            r = jax.nn.sigmoid(gx[:, :H] + gh[:, :H])
            z = jax.nn.sigmoid(gx[:, H:2 * H] + gh[:, H:2 * H])
            n = jnp.tanh(gx[:, 2 * H:] + r * gh[:, 2 * H:])
            h = (1.0 - z) * n + z * h
            outs.append(h)
        seq = jnp.stack(outs, axis=1)
    logits = seq[:, -1, :] @ params["w_fc"].T + params["b_fc"]
    return jax.nn.softmax(logits, axis=1)


def _init_params(key, input_size, hidden_size, output_size, num_layers):
    """Deterministic init mirroring nn.GRU / nn.Linear parameter shapes."""
    H = hidden_size
    k = 1.0 / jnp.sqrt(jnp.float32(H))
    params = {}
    for l in range(num_layers):
        in_sz = input_size if l == 0 else H
        key, k1, k2, k3, k4 = jax.random.split(key, 5)
        params[f"w_ih_l{l}"] = jax.random.uniform(k1, (3 * H, in_sz), jnp.float32, -k, k)
        params[f"w_hh_l{l}"] = jax.random.uniform(k2, (3 * H, H), jnp.float32, -k, k)
        params[f"b_ih_l{l}"] = jax.random.uniform(k3, (3 * H,), jnp.float32, -k, k)
        params[f"b_hh_l{l}"] = jax.random.uniform(k4, (3 * H,), jnp.float32, -k, k)
    key, k1, k2 = jax.random.split(key, 3)
    kf = 1.0 / jnp.sqrt(jnp.float32(H))
    params["w_fc"] = jax.random.uniform(k1, (output_size, H), jnp.float32, -kf, kf)
    params["b_fc"] = jax.random.uniform(k2, (output_size,), jnp.float32, -kf, kf)
    return params


if __name__ == "__main__":
    input_size, hidden_size, output_size = 16, 32, 5
    num_layers, dropout = 2, 0.0
    batch, seq_len = 2, 8

    key = jax.random.PRNGKey(0)
    key, kx = jax.random.split(key)
    x = jax.random.normal(kx, (batch, seq_len, input_size), jnp.float32)
    params = _init_params(key, input_size, hidden_size, output_size, num_layers)

    # One-time parameter packing (outside the forward path).
    packed = prepare_gru_params(params, num_layers=num_layers, hidden_size=hidden_size)

    probs = gru3d_classifier_forward(x, packed,
                                     num_layers=num_layers, hidden_size=hidden_size)
    probs = jax.block_until_ready(probs)

    ref = _reference_forward(x, params, num_layers=num_layers, hidden_size=hidden_size)
    assert probs.shape == (batch, output_size)
    assert jnp.allclose(jnp.sum(probs, axis=1), 1.0, atol=1e-5)
    assert jnp.allclose(probs, ref, atol=1e-5, rtol=1e-5)

    print("KERNEL_OK")
</pallas_src>

<mosaic_0001>
module attributes {stable_mosaic.version = 11 : i64} {
  func.func @_gru_classifier_kernel(%arg0: memref<16x16xf32, #tpu.memory_space<vmem>>, %arg1: memref<3x16x32xf32, #tpu.memory_space<vmem>>, %arg2: memref<1x3x32x32xf32, #tpu.memory_space<vmem>>, %arg3: memref<2x3x32x32xf32, #tpu.memory_space<vmem>>, %arg4: memref<2x3x1x32xf32, #tpu.memory_space<vmem>>, %arg5: memref<2x1x32xf32, #tpu.memory_space<vmem>>, %arg6: memref<32x5xf32, #tpu.memory_space<vmem>>, %arg7: memref<1x5xf32, #tpu.memory_space<vmem>>, %arg8: memref<2x5xf32, #tpu.memory_space<vmem>>, %arg9: memref<16x32xf32, #tpu.memory_space<vmem>>) attributes {dimension_semantics = [], scalar_prefetch = 0 : i64, scratch_operands = 1 : i64, tpu.core_type = #tpu.core_type<tc>} {
    %c0 = arith.constant 0 : index
    %c0_0 = arith.constant 0 : index
    %0 = vector.load %arg0[%c0, %c0_0] : memref<16x16xf32, #tpu.memory_space<vmem>>, vector<16x16xf32>
    %c0_1 = arith.constant 0 : index
    %c0_2 = arith.constant 0 : index
    %c0_3 = arith.constant 0 : index
    %1 = vector.load %arg1[%c0_1, %c0_2, %c0_3] : memref<3x16x32xf32, #tpu.memory_space<vmem>>, vector<3x16x32xf32>
    %c0_4 = arith.constant 0 : index
    %c0_5 = arith.constant 0 : index
    %c0_6 = arith.constant 0 : index
    %c0_7 = arith.constant 0 : index
    %2 = vector.load %arg4[%c0_4, %c0_5, %c0_6, %c0_7] : memref<2x3x1x32xf32, #tpu.memory_space<vmem>>, vector<1x3x1x32xf32>
    %3 = vector.shape_cast %2 : vector<1x3x1x32xf32> to vector<3x1x32xf32>
    %4 = vector.extract_strided_slice %1 {offsets = [0, 0, 0], sizes = [1, 16, 32], strides = [1, 1, 1]} : vector<3x16x32xf32> to vector<1x16x32xf32>
    %5 = vector.shape_cast %4 : vector<1x16x32xf32> to vector<16x32xf32>
    %cst = arith.constant dense<0.000000e+00> : vector<16x32xf32>
    %6 = tpu.matmul %0, %5, %cst {dimension_numbers = #tpu.dot_dimension_numbers<[1], [0], [0], [1], [0, 0, 1, 1], [], []>} : vector<16x16xf32>, vector<16x32xf32>, vector<16x32xf32> -> vector<16x32xf32>
    %7 = vector.extract_strided_slice %3 {offsets = [0, 0, 0], sizes = [1, 1, 32], strides = [1, 1, 1]} : vector<3x1x32xf32> to vector<1x1x32xf32>
    %8 = vector.shape_cast %7 : vector<1x1x32xf32> to vector<1x32xf32>
    %9 = vector.broadcast %8 : vector<1x32xf32> to vector<16x32xf32>
    %10 = arith.addf %6, %9 : vector<16x32xf32>
    %11 = vector.extract_strided_slice %1 {offsets = [1, 0, 0], sizes = [1, 16, 32], strides = [1, 1, 1]} : vector<3x16x32xf32> to vector<1x16x32xf32>
    %12 = vector.shape_cast %11 : vector<1x16x32xf32> to vector<16x32xf32>
    %cst_8 = arith.constant dense<0.000000e+00> : vector<16x32xf32>
    %13 = tpu.matmul %0, %12, %cst_8 {dimension_numbers = #tpu.dot_dimension_numbers<[1], [0], [0], [1], [0, 0, 1, 1], [], []>} : vector<16x16xf32>, vector<16x32xf32>, vector<16x32xf32> -> vector<16x32xf32>
    %14 = vector.extract_strided_slice %3 {offsets = [1, 0, 0], sizes = [1, 1, 32], strides = [1, 1, 1]} : vector<3x1x32xf32> to vector<1x1x32xf32>
    %15 = vector.shape_cast %14 : vector<1x1x32xf32> to vector<1x32xf32>
    %16 = vector.broadcast %15 : vector<1x32xf32> to vector<16x32xf32>
    %17 = arith.addf %13, %16 : vector<16x32xf32>
    %18 = vector.extract_strided_slice %1 {offsets = [2, 0, 0], sizes = [1, 16, 32], strides = [1, 1, 1]} : vector<3x16x32xf32> to vector<1x16x32xf32>
    %19 = vector.shape_cast %18 : vector<1x16x32xf32> to vector<16x32xf32>
    %cst_9 = arith.constant dense<0.000000e+00> : vector<16x32xf32>
    %20 = tpu.matmul %0, %19, %cst_9 {dimension_numbers = #tpu.dot_dimension_numbers<[1], [0], [0], [1], [0, 0, 1, 1], [], []>} : vector<16x16xf32>, vector<16x32xf32>, vector<16x32xf32> -> vector<16x32xf32>
    %21 = vector.extract_strided_slice %3 {offsets = [2, 0, 0], sizes = [1, 1, 32], strides = [1, 1, 1]} : vector<3x1x32xf32> to vector<1x1x32xf32>
    %22 = vector.shape_cast %21 : vector<1x1x32xf32> to vector<1x32xf32>
    %23 = vector.broadcast %22 : vector<1x32xf32> to vector<16x32xf32>
    %24 = arith.addf %20, %23 : vector<16x32xf32>
    %c0_10 = arith.constant 0 : index
    %c0_11 = arith.constant 0 : index
    %c0_12 = arith.constant 0 : index
    %c0_13 = arith.constant 0 : index
    %25 = vector.load %arg3[%c0_10, %c0_11, %c0_12, %c0_13] : memref<2x3x32x32xf32, #tpu.memory_space<vmem>>, vector<1x3x32x32xf32>
    %26 = vector.shape_cast %25 : vector<1x3x32x32xf32> to vector<3x32x32xf32>
    %c0_14 = arith.constant 0 : index
    %c0_15 = arith.constant 0 : index
    %c0_16 = arith.constant 0 : index
    %27 = vector.load %arg5[%c0_14, %c0_15, %c0_16] : memref<2x1x32xf32, #tpu.memory_space<vmem>>, vector<1x1x32xf32>
    %28 = vector.shape_cast %27 : vector<1x1x32xf32> to vector<1x32xf32>
    %29 = vector.extract_strided_slice %26 {offsets = [0, 0, 0], sizes = [1, 32, 32], strides = [1, 1, 1]} : vector<3x32x32xf32> to vector<1x32x32xf32>
    %30 = vector.shape_cast %29 : vector<1x32x32xf32> to vector<32x32xf32>
    %31 = vector.extract_strided_slice %26 {offsets = [1, 0, 0], sizes = [1, 32, 32], strides = [1, 1, 1]} : vector<3x32x32xf32> to vector<1x32x32xf32>
    %32 = vector.shape_cast %31 : vector<1x32x32xf32> to vector<32x32xf32>
    %33 = vector.extract_strided_slice %26 {offsets = [2, 0, 0], sizes = [1, 32, 32], strides = [1, 1, 1]} : vector<3x32x32xf32> to vector<1x32x32xf32>
    %34 = vector.shape_cast %33 : vector<1x32x32xf32> to vector<32x32xf32>
    %cst_17 = arith.constant 0.000000e+00 : f32
    %35 = vector.broadcast %cst_17 : f32 to vector<2x32xf32>
    %cst_18 = arith.constant dense<0.000000e+00> : vector<2x32xf32>
    %36 = tpu.matmul %35, %30, %cst_18 {dimension_numbers = #tpu.dot_dimension_numbers<[1], [0], [0], [1], [0, 0, 1, 1], [], []>} : vector<2x32xf32>, vector<32x32xf32>, vector<2x32xf32> -> vector<2x32xf32>
    %cst_19 = arith.constant dense<0.000000e+00> : vector<2x32xf32>
    %37 = tpu.matmul %35, %32, %cst_19 {dimension_numbers = #tpu.dot_dimension_numbers<[1], [0], [0], [1], [0, 0, 1, 1], [], []>} : vector<2x32xf32>, vector<32x32xf32>, vector<2x32xf32> -> vector<2x32xf32>
    %cst_20 = arith.constant dense<0.000000e+00> : vector<2x32xf32>
    %38 = tpu.matmul %35, %34, %cst_20 {dimension_numbers = #tpu.dot_dimension_numbers<[1], [0], [0], [1], [0, 0, 1, 1], [], []>} : vector<2x32xf32>, vector<32x32xf32>, vector<2x32xf32> -> vector<2x32xf32>
    %39 = vector.broadcast %28 : vector<1x32xf32> to vector<2x32xf32>
    %40 = arith.addf %38, %39 : vector<2x32xf32>
    %41 = vector.extract_strided_slice %10 {offsets = [0, 0], sizes = [2, 32], strides = [1, 1]} : vector<16x32xf32> to vector<2x32xf32>
    %42 = arith.addf %41, %36 : vector<2x32xf32>
    %43 = arith.negf %42 : vector<2x32xf32>
    %44 = math.exp %43 : vector<2x32xf32>
    %cst_21 = arith.constant 1.000000e+00 : f32
    %45 = vector.broadcast %cst_21 : f32 to vector<2x32xf32>
    %46 = arith.addf %45, %44 : vector<2x32xf32>
    %47 = arith.divf %45, %46 : vector<2x32xf32>
    %48 = vector.extract_strided_slice %17 {offsets = [0, 0], sizes = [2, 32], strides = [1, 1]} : vector<16x32xf32> to vector<2x32xf32>
    %49 = arith.addf %48, %37 : vector<2x32xf32>
    %50 = arith.negf %49 : vector<2x32xf32>
    %51 = math.exp %50 : vector<2x32xf32>
    %cst_22 = arith.constant 1.000000e+00 : f32
    %52 = vector.broadcast %cst_22 : f32 to vector<2x32xf32>
    %53 = arith.addf %52, %51 : vector<2x32xf32>
    %54 = arith.divf %52, %53 : vector<2x32xf32>
    %55 = vector.extract_strided_slice %24 {offsets = [0, 0], sizes = [2, 32], strides = [1, 1]} : vector<16x32xf32> to vector<2x32xf32>
    %56 = arith.mulf %47, %40 : vector<2x32xf32>
    %57 = arith.addf %55, %56 : vector<2x32xf32>
    %58 = math.tanh %57 : vector<2x32xf32>
    %59 = arith.subf %35, %58 : vector<2x32xf32>
    %60 = arith.mulf %54, %59 : vector<2x32xf32>
    %61 = arith.addf %58, %60 : vector<2x32xf32>
    %c0_23 = arith.constant 0 : index
    %c0_24 = arith.constant 0 : index
    %62 = vector.load %arg9[%c0_23, %c0_24] : memref<16x32xf32, #tpu.memory_space<vmem>>, vector<2x32xf32>
    tpu.vector_store %arg9[%c0_23, %c0_24], %61 {strides = array<i32>} : memref<16x32xf32, #tpu.memory_space<vmem>>, vector<2x32xf32>,
    %cst_25 = arith.constant dense<0.000000e+00> : vector<2x32xf32>
    %63 = tpu.matmul %61, %30, %cst_25 {dimension_numbers = #tpu.dot_dimension_numbers<[1], [0], [0], [1], [0, 0, 1, 1], [], []>} : vector<2x32xf32>, vector<32x32xf32>, vector<2x32xf32> -> vector<2x32xf32>
    %cst_26 = arith.constant dense<0.000000e+00> : vector<2x32xf32>
    %64 = tpu.matmul %61, %32, %cst_26 {dimension_numbers = #tpu.dot_dimension_numbers<[1], [0], [0], [1], [0, 0, 1, 1], [], []>} : vector<2x32xf32>, vector<32x32xf32>, vector<2x32xf32> -> vector<2x32xf32>
    %cst_27 = arith.constant dense<0.000000e+00> : vector<2x32xf32>
    %65 = tpu.matmul %61, %34, %cst_27 {dimension_numbers = #tpu.dot_dimension_numbers<[1], [0], [0], [1], [0, 0, 1, 1], [], []>} : vector<2x32xf32>, vector<32x32xf32>, vector<2x32xf32> -> vector<2x32xf32>
    %66 = vector.broadcast %28 : vector<1x32xf32> to vector<2x32xf32>
    %67 = arith.addf %65, %66 : vector<2x32xf32>
    %68 = vector.extract_strided_slice %10 {offsets = [2, 0], sizes = [2, 32], strides = [1, 1]} : vector<16x32xf32> to vector<2x32xf32>
    %69 = arith.addf %68, %63 : vector<2x32xf32>
    %70 = arith.negf %69 : vector<2x32xf32>
    %71 = math.exp %70 : vector<2x32xf32>
    %cst_28 = arith.constant 1.000000e+00 : f32
    %72 = vector.broadcast %cst_28 : f32 to vector<2x32xf32>
    %73 = arith.addf %72, %71 : vector<2x32xf32>
    %74 = arith.divf %72, %73 : vector<2x32xf32>
    %75 = vector.extract_strided_slice %17 {offsets = [2, 0], sizes = [2, 32], strides = [1, 1]} : vector<16x32xf32> to vector<2x32xf32>
    %76 = arith.addf %75, %64 : vector<2x32xf32>
    %77 = arith.negf %76 : vector<2x32xf32>
    %78 = math.exp %77 : vector<2x32xf32>
    %cst_29 = arith.constant 1.000000e+00 : f32
    %79 = vector.broadcast %cst_29 : f32 to vector<2x32xf32>
    %80 = arith.addf %79, %78 : vector<2x32xf32>
    %81 = arith.divf %79, %80 : vector<2x32xf32>
    %82 = vector.extract_strided_slice %24 {offsets = [2, 0], sizes = [2, 32], strides = [1, 1]} : vector<16x32xf32> to vector<2x32xf32>
    %83 = arith.mulf %74, %67 : vector<2x32xf32>
    %84 = arith.addf %82, %83 : vector<2x32xf32>
    %85 = math.tanh %84 : vector<2x32xf32>
    %86 = arith.subf %61, %85 : vector<2x32xf32>
    %87 = arith.mulf %81, %86 : vector<2x32xf32>
    %88 = arith.addf %85, %87 : vector<2x32xf32>
    %c2 = arith.constant 2 : index
    %c0_30 = arith.constant 0 : index
    %89 = vector.load %arg9[%c2, %c0_30] : memref<16x32xf32, #tpu.memory_space<vmem>>, vector<2x32xf32>
    tpu.vector_store %arg9[%c2, %c0_30], %88 {strides = array<i32>} : memref<16x32xf32, #tpu.memory_space<vmem>>, vector<2x32xf32>,
    %cst_31 = arith.constant dense<0.000000e+00> : vector<2x32xf32>
    %90 = tpu.matmul %88, %30, %cst_31 {dimension_numbers = #tpu.dot_dimension_numbers<[1], [0], [0], [1], [0, 0, 1, 1], [], []>} : vector<2x32xf32>, vector<32x32xf32>, vector<2x32xf32> -> vector<2x32xf32>
    %cst_32 = arith.constant dense<0.000000e+00> : vector<2x32xf32>
    %91 = tpu.matmul %88, %32, %cst_32 {dimension_numbers = #tpu.dot_dimension_numbers<[1], [0], [0], [1], [0, 0, 1, 1], [], []>} : vector<2x32xf32>, vector<32x32xf32>, vector<2x32xf32> -> vector<2x32xf32>
    %cst_33 = arith.constant dense<0.000000e+00> : vector<2x32xf32>
    %92 = tpu.matmul %88, %34, %cst_33 {dimension_numbers = #tpu.dot_dimension_numbers<[1], [0], [0], [1], [0, 0, 1, 1], [], []>} : vector<2x32xf32>, vector<32x32xf32>, vector<2x32xf32> -> vector<2x32xf32>
    %93 = vector.broadcast %28 : vector<1x32xf32> to vector<2x32xf32>
    %94 = arith.addf %92, %93 : vector<2x32xf32>
    %95 = vector.extract_strided_slice %10 {offsets = [4, 0], sizes = [2, 32], strides = [1, 1]} : vector<16x32xf32> to vector<2x32xf32>
    %96 = arith.addf %95, %90 : vector<2x32xf32>
    %97 = arith.negf %96 : vector<2x32xf32>
    %98 = math.exp %97 : vector<2x32xf32>
    %cst_34 = arith.constant 1.000000e+00 : f32
    %99 = vector.broadcast %cst_34 : f32 to vector<2x32xf32>
    %100 = arith.addf %99, %98 : vector<2x32xf32>
    %101 = arith.divf %99, %100 : vector<2x32xf32>
    %102 = vector.extract_strided_slice %17 {offsets = [4, 0], sizes = [2, 32], strides = [1, 1]} : vector<16x32xf32> to vector<2x32xf32>
    %103 = arith.addf %102, %91 : vector<2x32xf32>
    %104 = arith.negf %103 : vector<2x32xf32>
    %105 = math.exp %104 : vector<2x32xf32>
    %cst_35 = arith.constant 1.000000e+00 : f32
    %106 = vector.broadcast %cst_35 : f32 to vector<2x32xf32>
    %107 = arith.addf %106, %105 : vector<2x32xf32>
    %108 = arith.divf %106, %107 : vector<2x32xf32>
    %109 = vector.extract_strided_slice %24 {offsets = [4, 0], sizes = [2, 32], strides = [1, 1]} : vector<16x32xf32> to vector<2x32xf32>
    %110 = arith.mulf %101, %94 : vector<2x32xf32>
    %111 = arith.addf %109, %110 : vector<2x32xf32>
    %112 = math.tanh %111 : vector<2x32xf32>
    %113 = arith.subf %88, %112 : vector<2x32xf32>
    %114 = arith.mulf %108, %113 : vector<2x32xf32>
    %115 = arith.addf %112, %114 : vector<2x32xf32>
    %c4 = arith.constant 4 : index
    %c0_36 = arith.constant 0 : index
    %116 = vector.load %arg9[%c4, %c0_36] : memref<16x32xf32, #tpu.memory_space<vmem>>, vector<2x32xf32>
    tpu.vector_store %arg9[%c4, %c0_36], %115 {strides = array<i32>} : memref<16x32xf32, #tpu.memory_space<vmem>>, vector<2x32xf32>,
    %cst_37 = arith.constant dense<0.000000e+00> : vector<2x32xf32>
    %117 = tpu.matmul %115, %30, %cst_37 {dimension_numbers = #tpu.dot_dimension_numbers<[1], [0], [0], [1], [0, 0, 1, 1], [], []>} : vector<2x32xf32>, vector<32x32xf32>, vector<2x32xf32> -> vector<2x32xf32>
    %cst_38 = arith.constant dense<0.000000e+00> : vector<2x32xf32>
    %118 = tpu.matmul %115, %32, %cst_38 {dimension_numbers = #tpu.dot_dimension_numbers<[1], [0], [0], [1], [0, 0, 1, 1], [], []>} : vector<2x32xf32>, vector<32x32xf32>, vector<2x32xf32> -> vector<2x32xf32>
    %cst_39 = arith.constant dense<0.000000e+00> : vector<2x32xf32>
    %119 = tpu.matmul %115, %34, %cst_39 {dimension_numbers = #tpu.dot_dimension_numbers<[1], [0], [0], [1], [0, 0, 1, 1], [], []>} : vector<2x32xf32>, vector<32x32xf32>, vector<2x32xf32> -> vector<2x32xf32>
    %120 = vector.broadcast %28 : vector<1x32xf32> to vector<2x32xf32>
    %121 = arith.addf %119, %120 : vector<2x32xf32>
    %122 = vector.extract_strided_slice %10 {offsets = [6, 0], sizes = [2, 32], strides = [1, 1]} : vector<16x32xf32> to vector<2x32xf32>
    %123 = arith.addf %122, %117 : vector<2x32xf32>
    %124 = arith.negf %123 : vector<2x32xf32>
    %125 = math.exp %124 : vector<2x32xf32>
    %cst_40 = arith.constant 1.000000e+00 : f32
    %126 = vector.broadcast %cst_40 : f32 to vector<2x32xf32>
    %127 = arith.addf %126, %125 : vector<2x32xf32>
    %128 = arith.divf %126, %127 : vector<2x32xf32>
    %129 = vector.extract_strided_slice %17 {offsets = [6, 0], sizes = [2, 32], strides = [1, 1]} : vector<16x32xf32> to vector<2x32xf32>
    %130 = arith.addf %129, %118 : vector<2x32xf32>
    %131 = arith.negf %130 : vector<2x32xf32>
    %132 = math.exp %131 : vector<2x32xf32>
    %cst_41 = arith.constant 1.000000e+00 : f32
    %133 = vector.broadcast %cst_41 : f32 to vector<2x32xf32>
    %134 = arith.addf %133, %132 : vector<2x32xf32>
    %135 = arith.divf %133, %134 : vector<2x32xf32>
    %136 = vector.extract_strided_slice %24 {offsets = [6, 0], sizes = [2, 32], strides = [1, 1]} : vector<16x32xf32> to vector<2x32xf32>
    %137 = arith.mulf %128, %121 : vector<2x32xf32>
    %138 = arith.addf %136, %137 : vector<2x32xf32>
    %139 = math.tanh %138 : vector<2x32xf32>
    %140 = arith.subf %115, %139 : vector<2x32xf32>
    %141 = arith.mulf %135, %140 : vector<2x32xf32>
    %142 = arith.addf %139, %141 : vector<2x32xf32>
    %c6 = arith.constant 6 : index
    %c0_42 = arith.constant 0 : index
    %143 = vector.load %arg9[%c6, %c0_42] : memref<16x32xf32, #tpu.memory_space<vmem>>, vector<2x32xf32>
    tpu.vector_store %arg9[%c6, %c0_42], %142 {strides = array<i32>} : memref<16x32xf32, #tpu.memory_space<vmem>>, vector<2x32xf32>,
    %cst_43 = arith.constant dense<0.000000e+00> : vector<2x32xf32>
    %144 = tpu.matmul %142, %30, %cst_43 {dimension_numbers = #tpu.dot_dimension_numbers<[1], [0], [0], [1], [0, 0, 1, 1], [], []>} : vector<2x32xf32>, vector<32x32xf32>, vector<2x32xf32> -> vector<2x32xf32>
    %cst_44 = arith.constant dense<0.000000e+00> : vector<2x32xf32>
    %145 = tpu.matmul %142, %32, %cst_44 {dimension_numbers = #tpu.dot_dimension_numbers<[1], [0], [0], [1], [0, 0, 1, 1], [], []>} : vector<2x32xf32>, vector<32x32xf32>, vector<2x32xf32> -> vector<2x32xf32>
    %cst_45 = arith.constant dense<0.000000e+00> : vector<2x32xf32>
    %146 = tpu.matmul %142, %34, %cst_45 {dimension_numbers = #tpu.dot_dimension_numbers<[1], [0], [0], [1], [0, 0, 1, 1], [], []>} : vector<2x32xf32>, vector<32x32xf32>, vector<2x32xf32> -> vector<2x32xf32>
    %147 = vector.broadcast %28 : vector<1x32xf32> to vector<2x32xf32>
    %148 = arith.addf %146, %147 : vector<2x32xf32>
    %149 = vector.extract_strided_slice %10 {offsets = [8, 0], sizes = [2, 32], strides = [1, 1]} : vector<16x32xf32> to vector<2x32xf32>
    %150 = arith.addf %149, %144 : vector<2x32xf32>
    %151 = arith.negf %150 : vector<2x32xf32>
    %152 = math.exp %151 : vector<2x32xf32>
    %cst_46 = arith.constant 1.000000e+00 : f32
    %153 = vector.broadcast %cst_46 : f32 to vector<2x32xf32>
    %154 = arith.addf %153, %152 : vector<2x32xf32>
    %155 = arith.divf %153, %154 : vector<2x32xf32>
    %156 = vector.extract_strided_slice %17 {offsets = [8, 0], sizes = [2, 32], strides = [1, 1]} : vector<16x32xf32> to vector<2x32xf32>
    %157 = arith.addf %156, %145 : vector<2x32xf32>
    %158 = arith.negf %157 : vector<2x32xf32>
    %159 = math.exp %158 : vector<2x32xf32>
    %cst_47 = arith.constant 1.000000e+00 : f32
    %160 = vector.broadcast %cst_47 : f32 to vector<2x32xf32>
    %161 = arith.addf %160, %159 : vector<2x32xf32>
    %162 = arith.divf %160, %161 : vector<2x32xf32>
    %163 = vector.extract_strided_slice %24 {offsets = [8, 0], sizes = [2, 32], strides = [1, 1]} : vector<16x32xf32> to vector<2x32xf32>
    %164 = arith.mulf %155, %148 : vector<2x32xf32>
    %165 = arith.addf %163, %164 : vector<2x32xf32>
    %166 = math.tanh %165 : vector<2x32xf32>
    %167 = arith.subf %142, %166 : vector<2x32xf32>
    %168 = arith.mulf %162, %167 : vector<2x32xf32>
    %169 = arith.addf %166, %168 : vector<2x32xf32>
    %c8 = arith.constant 8 : index
    %c0_48 = arith.constant 0 : index
    %170 = vector.load %arg9[%c8, %c0_48] : memref<16x32xf32, #tpu.memory_space<vmem>>, vector<2x32xf32>
    tpu.vector_store %arg9[%c8, %c0_48], %169 {strides = array<i32>} : memref<16x32xf32, #tpu.memory_space<vmem>>, vector<2x32xf32>,
    %cst_49 = arith.constant dense<0.000000e+00> : vector<2x32xf32>
    %171 = tpu.matmul %169, %30, %cst_49 {dimension_numbers = #tpu.dot_dimension_numbers<[1], [0], [0], [1], [0, 0, 1, 1], [], []>} : vector<2x32xf32>, vector<32x32xf32>, vector<2x32xf32> -> vector<2x32xf32>
    %cst_50 = arith.constant dense<0.000000e+00> : vector<2x32xf32>
    %172 = tpu.matmul %169, %32, %cst_50 {dimension_numbers = #tpu.dot_dimension_numbers<[1], [0], [0], [1], [0, 0, 1, 1], [], []>} : vector<2x32xf32>, vector<32x32xf32>, vector<2x32xf32> -> vector<2x32xf32>
    %cst_51 = arith.constant dense<0.000000e+00> : vector<2x32xf32>
    %173 = tpu.matmul %169, %34, %cst_51 {dimension_numbers = #tpu.dot_dimension_numbers<[1], [0], [0], [1], [0, 0, 1, 1], [], []>} : vector<2x32xf32>, vector<32x32xf32>, vector<2x32xf32> -> vector<2x32xf32>
    %174 = vector.broadcast %28 : vector<1x32xf32> to vector<2x32xf32>
    %175 = arith.addf %173, %174 : vector<2x32xf32>
    %176 = vector.extract_strided_slice %10 {offsets = [10, 0], sizes = [2, 32], strides = [1, 1]} : vector<16x32xf32> to vector<2x32xf32>
    %177 = arith.addf %176, %171 : vector<2x32xf32>
    %178 = arith.negf %177 : vector<2x32xf32>
    %179 = math.exp %178 : vector<2x32xf32>
    %cst_52 = arith.constant 1.000000e+00 : f32
    %180 = vector.broadcast %cst_52 : f32 to vector<2x32xf32>
    %181 = arith.addf %180, %179 : vector<2x32xf32>
    %182 = arith.divf %180, %181 : vector<2x32xf32>
    %183 = vector.extract_strided_slice %17 {offsets = [10, 0], sizes = [2, 32], strides = [1, 1]} : vector<16x32xf32> to vector<2x32xf32>
    %184 = arith.addf %183, %172 : vector<2x32xf32>
    %185 = arith.negf %184 : vector<2x32xf32>
    %186 = math.exp %185 : vector<2x32xf32>
    %cst_53 = arith.constant 1.000000e+00 : f32
    %187 = vector.broadcast %cst_53 : f32 to vector<2x32xf32>
    %188 = arith.addf %187, %186 : vector<2x32xf32>
    %189 = arith.divf %187, %188 : vector<2x32xf32>
    %190 = vector.extract_strided_slice %24 {offsets = [10, 0], sizes = [2, 32], strides = [1, 1]} : vector<16x32xf32> to vector<2x32xf32>
    %191 = arith.mulf %182, %175 : vector<2x32xf32>
    %192 = arith.addf %190, %191 : vector<2x32xf32>
    %193 = math.tanh %192 : vector<2x32xf32>
    %194 = arith.subf %169, %193 : vector<2x32xf32>
    %195 = arith.mulf %189, %194 : vector<2x32xf32>
    %196 = arith.addf %193, %195 : vector<2x32xf32>
    %c10 = arith.constant 10 : index
    %c0_54 = arith.constant 0 : index
    %197 = vector.load %arg9[%c10, %c0_54] : memref<16x32xf32, #tpu.memory_space<vmem>>, vector<2x32xf32>
    tpu.vector_store %arg9[%c10, %c0_54], %196 {strides = array<i32>} : memref<16x32xf32, #tpu.memory_space<vmem>>, vector<2x32xf32>,
    %cst_55 = arith.constant dense<0.000000e+00> : vector<2x32xf32>
    %198 = tpu.matmul %196, %30, %cst_55 {dimension_numbers = #tpu.dot_dimension_numbers<[1], [0], [0], [1], [0, 0, 1, 1], [], []>} : vector<2x32xf32>, vector<32x32xf32>, vector<2x32xf32> -> vector<2x32xf32>
    %cst_56 = arith.constant dense<0.000000e+00> : vector<2x32xf32>
    %199 = tpu.matmul %196, %32, %cst_56 {dimension_numbers = #tpu.dot_dimension_numbers<[1], [0], [0], [1], [0, 0, 1, 1], [], []>} : vector<2x32xf32>, vector<32x32xf32>, vector<2x32xf32> -> vector<2x32xf32>
    %cst_57 = arith.constant dense<0.000000e+00> : vector<2x32xf32>
    %200 = tpu.matmul %196, %34, %cst_57 {dimension_numbers = #tpu.dot_dimension_numbers<[1], [0], [0], [1], [0, 0, 1, 1], [], []>} : vector<2x32xf32>, vector<32x32xf32>, vector<2x32xf32> -> vector<2x32xf32>
    %201 = vector.broadcast %28 : vector<1x32xf32> to vector<2x32xf32>
    %202 = arith.addf %200, %201 : vector<2x32xf32>
    %203 = vector.extract_strided_slice %10 {offsets = [12, 0], sizes = [2, 32], strides = [1, 1]} : vector<16x32xf32> to vector<2x32xf32>
    %204 = arith.addf %203, %198 : vector<2x32xf32>
    %205 = arith.negf %204 : vector<2x32xf32>
    %206 = math.exp %205 : vector<2x32xf32>
    %cst_58 = arith.constant 1.000000e+00 : f32
    %207 = vector.broadcast %cst_58 : f32 to vector<2x32xf32>
    %208 = arith.addf %207, %206 : vector<2x32xf32>
    %209 = arith.divf %207, %208 : vector<2x32xf32>
    %210 = vector.extract_strided_slice %17 {offsets = [12, 0], sizes = [2, 32], strides = [1, 1]} : vector<16x32xf32> to vector<2x32xf32>
    %211 = arith.addf %210, %199 : vector<2x32xf32>
    %212 = arith.negf %211 : vector<2x32xf32>
    %213 = math.exp %212 : vector<2x32xf32>
    %cst_59 = arith.constant 1.000000e+00 : f32
    %214 = vector.broadcast %cst_59 : f32 to vector<2x32xf32>
    %215 = arith.addf %214, %213 : vector<2x32xf32>
    %216 = arith.divf %214, %215 : vector<2x32xf32>
    %217 = vector.extract_strided_slice %24 {offsets = [12, 0], sizes = [2, 32], strides = [1, 1]} : vector<16x32xf32> to vector<2x32xf32>
    %218 = arith.mulf %209, %202 : vector<2x32xf32>
    %219 = arith.addf %217, %218 : vector<2x32xf32>
    %220 = math.tanh %219 : vector<2x32xf32>
    %221 = arith.subf %196, %220 : vector<2x32xf32>
    %222 = arith.mulf %216, %221 : vector<2x32xf32>
    %223 = arith.addf %220, %222 : vector<2x32xf32>
    %c12 = arith.constant 12 : index
    %c0_60 = arith.constant 0 : index
    %224 = vector.load %arg9[%c12, %c0_60] : memref<16x32xf32, #tpu.memory_space<vmem>>, vector<2x32xf32>
    tpu.vector_store %arg9[%c12, %c0_60], %223 {strides = array<i32>} : memref<16x32xf32, #tpu.memory_space<vmem>>, vector<2x32xf32>,
    %cst_61 = arith.constant dense<0.000000e+00> : vector<2x32xf32>
    %225 = tpu.matmul %223, %30, %cst_61 {dimension_numbers = #tpu.dot_dimension_numbers<[1], [0], [0], [1], [0, 0, 1, 1], [], []>} : vector<2x32xf32>, vector<32x32xf32>, vector<2x32xf32> -> vector<2x32xf32>
    %cst_62 = arith.constant dense<0.000000e+00> : vector<2x32xf32>
    %226 = tpu.matmul %223, %32, %cst_62 {dimension_numbers = #tpu.dot_dimension_numbers<[1], [0], [0], [1], [0, 0, 1, 1], [], []>} : vector<2x32xf32>, vector<32x32xf32>, vector<2x32xf32> -> vector<2x32xf32>
    %cst_63 = arith.constant dense<0.000000e+00> : vector<2x32xf32>
    %227 = tpu.matmul %223, %34, %cst_63 {dimension_numbers = #tpu.dot_dimension_numbers<[1], [0], [0], [1], [0, 0, 1, 1], [], []>} : vector<2x32xf32>, vector<32x32xf32>, vector<2x32xf32> -> vector<2x32xf32>
    %228 = vector.broadcast %28 : vector<1x32xf32> to vector<2x32xf32>
    %229 = arith.addf %227, %228 : vector<2x32xf32>
    %230 = vector.extract_strided_slice %10 {offsets = [14, 0], sizes = [2, 32], strides = [1, 1]} : vector<16x32xf32> to vector<2x32xf32>
    %231 = arith.addf %230, %225 : vector<2x32xf32>
    %232 = arith.negf %231 : vector<2x32xf32>
    %233 = math.exp %232 : vector<2x32xf32>
    %cst_64 = arith.constant 1.000000e+00 : f32
    %234 = vector.broadcast %cst_64 : f32 to vector<2x32xf32>
    %235 = arith.addf %234, %233 : vector<2x32xf32>
    %236 = arith.divf %234, %235 : vector<2x32xf32>
    %237 = vector.extract_strided_slice %17 {offsets = [14, 0], sizes = [2, 32], strides = [1, 1]} : vector<16x32xf32> to vector<2x32xf32>
    %238 = arith.addf %237, %226 : vector<2x32xf32>
    %239 = arith.negf %238 : vector<2x32xf32>
    %240 = math.exp %239 : vector<2x32xf32>
    %cst_65 = arith.constant 1.000000e+00 : f32
    %241 = vector.broadcast %cst_65 : f32 to vector<2x32xf32>
    %242 = arith.addf %241, %240 : vector<2x32xf32>
    %243 = arith.divf %241, %242 : vector<2x32xf32>
    %244 = vector.extract_strided_slice %24 {offsets = [14, 0], sizes = [2, 32], strides = [1, 1]} : vector<16x32xf32> to vector<2x32xf32>
    %245 = arith.mulf %236, %229 : vector<2x32xf32>
    %246 = arith.addf %244, %245 : vector<2x32xf32>
    %247 = math.tanh %246 : vector<2x32xf32>
    %248 = arith.subf %223, %247 : vector<2x32xf32>
    %249 = arith.mulf %243, %248 : vector<2x32xf32>
    %250 = arith.addf %247, %249 : vector<2x32xf32>
    %c14 = arith.constant 14 : index
    %c0_66 = arith.constant 0 : index
    %251 = vector.load %arg9[%c14, %c0_66] : memref<16x32xf32, #tpu.memory_space<vmem>>, vector<2x32xf32>
    tpu.vector_store %arg9[%c14, %c0_66], %250 {strides = array<i32>} : memref<16x32xf32, #tpu.memory_space<vmem>>, vector<2x32xf32>,
    %c0_67 = arith.constant 0 : index
    %c0_68 = arith.constant 0 : index
    %252 = vector.load %arg9[%c0_67, %c0_68] : memref<16x32xf32, #tpu.memory_space<vmem>>, vector<16x32xf32>
    %c0_69 = arith.constant 0 : index
    %c0_70 = arith.constant 0 : index
    %c0_71 = arith.constant 0 : index
    %c0_72 = arith.constant 0 : index
    %253 = vector.load %arg2[%c0_69, %c0_70, %c0_71, %c0_72] : memref<1x3x32x32xf32, #tpu.memory_space<vmem>>, vector<1x3x32x32xf32>
    %254 = vector.shape_cast %253 : vector<1x3x32x32xf32> to vector<3x32x32xf32>
    %c1 = arith.constant 1 : index
    %c0_73 = arith.constant 0 : index
    %c0_74 = arith.constant 0 : index
    %c0_75 = arith.constant 0 : index
    %255 = vector.load %arg4[%c1, %c0_73, %c0_74, %c0_75] : memref<2x3x1x32xf32, #tpu.memory_space<vmem>>, vector<1x3x1x32xf32>
    %256 = vector.shape_cast %255 : vector<1x3x1x32xf32> to vector<3x1x32xf32>
    %257 = vector.extract_strided_slice %254 {offsets = [0, 0, 0], sizes = [1, 32, 32], strides = [1, 1, 1]} : vector<3x32x32xf32> to vector<1x32x32xf32>
    %258 = vector.shape_cast %257 : vector<1x32x32xf32> to vector<32x32xf32>
    %cst_76 = arith.constant dense<0.000000e+00> : vector<16x32xf32>
    %259 = tpu.matmul %252, %258, %cst_76 {dimension_numbers = #tpu.dot_dimension_numbers<[1], [0], [0], [1], [0, 0, 1, 1], [], []>} : vector<16x32xf32>, vector<32x32xf32>, vector<16x32xf32> -> vector<16x32xf32>
    %260 = vector.extract_strided_slice %256 {offsets = [0, 0, 0], sizes = [1, 1, 32], strides = [1, 1, 1]} : vector<3x1x32xf32> to vector<1x1x32xf32>
    %261 = vector.shape_cast %260 : vector<1x1x32xf32> to vector<1x32xf32>
    %262 = vector.broadcast %261 : vector<1x32xf32> to vector<16x32xf32>
    %263 = arith.addf %259, %262 : vector<16x32xf32>
    %264 = vector.extract_strided_slice %254 {offsets = [1, 0, 0], sizes = [1, 32, 32], strides = [1, 1, 1]} : vector<3x32x32xf32> to vector<1x32x32xf32>
    %265 = vector.shape_cast %264 : vector<1x32x32xf32> to vector<32x32xf32>
    %cst_77 = arith.constant dense<0.000000e+00> : vector<16x32xf32>
    %266 = tpu.matmul %252, %265, %cst_77 {dimension_numbers = #tpu.dot_dimension_numbers<[1], [0], [0], [1], [0, 0, 1, 1], [], []>} : vector<16x32xf32>, vector<32x32xf32>, vector<16x32xf32> -> vector<16x32xf32>
    %267 = vector.extract_strided_slice %256 {offsets = [1, 0, 0], sizes = [1, 1, 32], strides = [1, 1, 1]} : vector<3x1x32xf32> to vector<1x1x32xf32>
    %268 = vector.shape_cast %267 : vector<1x1x32xf32> to vector<1x32xf32>
    %269 = vector.broadcast %268 : vector<1x32xf32> to vector<16x32xf32>
    %270 = arith.addf %266, %269 : vector<16x32xf32>
    %271 = vector.extract_strided_slice %254 {offsets = [2, 0, 0], sizes = [1, 32, 32], strides = [1, 1, 1]} : vector<3x32x32xf32> to vector<1x32x32xf32>
    %272 = vector.shape_cast %271 : vector<1x32x32xf32> to vector<32x32xf32>
    %cst_78 = arith.constant dense<0.000000e+00> : vector<16x32xf32>
    %273 = tpu.matmul %252, %272, %cst_78 {dimension_numbers = #tpu.dot_dimension_numbers<[1], [0], [0], [1], [0, 0, 1, 1], [], []>} : vector<16x32xf32>, vector<32x32xf32>, vector<16x32xf32> -> vector<16x32xf32>
    %274 = vector.extract_strided_slice %256 {offsets = [2, 0, 0], sizes = [1, 1, 32], strides = [1, 1, 1]} : vector<3x1x32xf32> to vector<1x1x32xf32>
    %275 = vector.shape_cast %274 : vector<1x1x32xf32> to vector<1x32xf32>
    %276 = vector.broadcast %275 : vector<1x32xf32> to vector<16x32xf32>
    %277 = arith.addf %273, %276 : vector<16x32xf32>
    %c1_79 = arith.constant 1 : index
    %c0_80 = arith.constant 0 : index
    %c0_81 = arith.constant 0 : index
    %c0_82 = arith.constant 0 : index
    %278 = vector.load %arg3[%c1_79, %c0_80, %c0_81, %c0_82] : memref<2x3x32x32xf32, #tpu.memory_space<vmem>>, vector<1x3x32x32xf32>
    %279 = vector.shape_cast %278 : vector<1x3x32x32xf32> to vector<3x32x32xf32>
    %c1_83 = arith.constant 1 : index
    %c0_84 = arith.constant 0 : index
    %c0_85 = arith.constant 0 : index
    %280 = vector.load %arg5[%c1_83, %c0_84, %c0_85] : memref<2x1x32xf32, #tpu.memory_space<vmem>>, vector<1x1x32xf32>
    %281 = vector.shape_cast %280 : vector<1x1x32xf32> to vector<1x32xf32>
    %282 = vector.extract_strided_slice %279 {offsets = [0, 0, 0], sizes = [1, 32, 32], strides = [1, 1, 1]} : vector<3x32x32xf32> to vector<1x32x32xf32>
    %283 = vector.shape_cast %282 : vector<1x32x32xf32> to vector<32x32xf32>
    %284 = vector.extract_strided_slice %279 {offsets = [1, 0, 0], sizes = [1, 32, 32], strides = [1, 1, 1]} : vector<3x32x32xf32> to vector<1x32x32xf32>
    %285 = vector.shape_cast %284 : vector<1x32x32xf32> to vector<32x32xf32>
    %286 = vector.extract_strided_slice %279 {offsets = [2, 0, 0], sizes = [1, 32, 32], strides = [1, 1, 1]} : vector<3x32x32xf32> to vector<1x32x32xf32>
    %287 = vector.shape_cast %286 : vector<1x32x32xf32> to vector<32x32xf32>
    %cst_86 = arith.constant 0.000000e+00 : f32
    %288 = vector.broadcast %cst_86 : f32 to vector<2x32xf32>
    %cst_87 = arith.constant dense<0.000000e+00> : vector<2x32xf32>
    %289 = tpu.matmul %288, %283, %cst_87 {dimension_numbers = #tpu.dot_dimension_numbers<[1], [0], [0], [1], [0, 0, 1, 1], [], []>} : vector<2x32xf32>, vector<32x32xf32>, vector<2x32xf32> -> vector<2x32xf32>
    %cst_88 = arith.constant dense<0.000000e+00> : vector<2x32xf32>
    %290 = tpu.matmul %288, %285, %cst_88 {dimension_numbers = #tpu.dot_dimension_numbers<[1], [0], [0], [1], [0, 0, 1, 1], [], []>} : vector<2x32xf32>, vector<32x32xf32>, vector<2x32xf32> -> vector<2x32xf32>
    %cst_89 = arith.constant dense<0.000000e+00> : vector<2x32xf32>
    %291 = tpu.matmul %288, %287, %cst_89 {dimension_numbers = #tpu.dot_dimension_numbers<[1], [0], [0], [1], [0, 0, 1, 1], [], []>} : vector<2x32xf32>, vector<32x32xf32>, vector<2x32xf32> -> vector<2x32xf32>
    %292 = vector.broadcast %281 : vector<1x32xf32> to vector<2x32xf32>
    %293 = arith.addf %291, %292 : vector<2x32xf32>
    %294 = vector.extract_strided_slice %263 {offsets = [0, 0], sizes = [2, 32], strides = [1, 1]} : vector<16x32xf32> to vector<2x32xf32>
    %295 = arith.addf %294, %289 : vector<2x32xf32>
    %296 = arith.negf %295 : vector<2x32xf32>
    %297 = math.exp %296 : vector<2x32xf32>
    %cst_90 = arith.constant 1.000000e+00 : f32
    %298 = vector.broadcast %cst_90 : f32 to vector<2x32xf32>
    %299 = arith.addf %298, %297 : vector<2x32xf32>
    %300 = arith.divf %298, %299 : vector<2x32xf32>
    %301 = vector.extract_strided_slice %270 {offsets = [0, 0], sizes = [2, 32], strides = [1, 1]} : vector<16x32xf32> to vector<2x32xf32>
    %302 = arith.addf %301, %290 : vector<2x32xf32>
    %303 = arith.negf %302 : vector<2x32xf32>
    %304 = math.exp %303 : vector<2x32xf32>
    %cst_91 = arith.constant 1.000000e+00 : f32
    %305 = vector.broadcast %cst_91 : f32 to vector<2x32xf32>
    %306 = arith.addf %305, %304 : vector<2x32xf32>
    %307 = arith.divf %305, %306 : vector<2x32xf32>
    %308 = vector.extract_strided_slice %277 {offsets = [0, 0], sizes = [2, 32], strides = [1, 1]} : vector<16x32xf32> to vector<2x32xf32>
    %309 = arith.mulf %300, %293 : vector<2x32xf32>
    %310 = arith.addf %308, %309 : vector<2x32xf32>
    %311 = math.tanh %310 : vector<2x32xf32>
    %312 = arith.subf %288, %311 : vector<2x32xf32>
    %313 = arith.mulf %307, %312 : vector<2x32xf32>
    %314 = arith.addf %311, %313 : vector<2x32xf32>
    %cst_92 = arith.constant dense<0.000000e+00> : vector<2x32xf32>
    %315 = tpu.matmul %314, %283, %cst_92 {dimension_numbers = #tpu.dot_dimension_numbers<[1], [0], [0], [1], [0, 0, 1, 1], [], []>} : vector<2x32xf32>, vector<32x32xf32>, vector<2x32xf32> -> vector<2x32xf32>
    %cst_93 = arith.constant dense<0.000000e+00> : vector<2x32xf32>
    %316 = tpu.matmul %314, %285, %cst_93 {dimension_numbers = #tpu.dot_dimension_numbers<[1], [0], [0], [1], [0, 0, 1, 1], [], []>} : vector<2x32xf32>, vector<32x32xf32>, vector<2x32xf32> -> vector<2x32xf32>
    %cst_94 = arith.constant dense<0.000000e+00> : vector<2x32xf32>
    %317 = tpu.matmul %314, %287, %cst_94 {dimension_numbers = #tpu.dot_dimension_numbers<[1], [0], [0], [1], [0, 0, 1, 1], [], []>} : vector<2x32xf32>, vector<32x32xf32>, vector<2x32xf32> -> vector<2x32xf32>
    %318 = vector.broadcast %281 : vector<1x32xf32> to vector<2x32xf32>
    %319 = arith.addf %317, %318 : vector<2x32xf32>
    %320 = vector.extract_strided_slice %263 {offsets = [2, 0], sizes = [2, 32], strides = [1, 1]} : vector<16x32xf32> to vector<2x32xf32>
    %321 = arith.addf %320, %315 : vector<2x32xf32>
    %322 = arith.negf %321 : vector<2x32xf32>
    %323 = math.exp %322 : vector<2x32xf32>
    %cst_95 = arith.constant 1.000000e+00 : f32
    %324 = vector.broadcast %cst_95 : f32 to vector<2x32xf32>
    %325 = arith.addf %324, %323 : vector<2x32xf32>
    %326 = arith.divf %324, %325 : vector<2x32xf32>
    %327 = vector.extract_strided_slice %270 {offsets = [2, 0], sizes = [2, 32], strides = [1, 1]} : vector<16x32xf32> to vector<2x32xf32>
    %328 = arith.addf %327, %316 : vector<2x32xf32>
    %329 = arith.negf %328 : vector<2x32xf32>
    %330 = math.exp %329 : vector<2x32xf32>
    %cst_96 = arith.constant 1.000000e+00 : f32
    %331 = vector.broadcast %cst_96 : f32 to vector<2x32xf32>
    %332 = arith.addf %331, %330 : vector<2x32xf32>
    %333 = arith.divf %331, %332 : vector<2x32xf32>
    %334 = vector.extract_strided_slice %277 {offsets = [2, 0], sizes = [2, 32], strides = [1, 1]} : vector<16x32xf32> to vector<2x32xf32>
    %335 = arith.mulf %326, %319 : vector<2x32xf32>
    %336 = arith.addf %334, %335 : vector<2x32xf32>
    %337 = math.tanh %336 : vector<2x32xf32>
    %338 = arith.subf %314, %337 : vector<2x32xf32>
    %339 = arith.mulf %333, %338 : vector<2x32xf32>
    %340 = arith.addf %337, %339 : vector<2x32xf32>
    %cst_97 = arith.constant dense<0.000000e+00> : vector<2x32xf32>
    %341 = tpu.matmul %340, %283, %cst_97 {dimension_numbers = #tpu.dot_dimension_numbers<[1], [0], [0], [1], [0, 0, 1, 1], [], []>} : vector<2x32xf32>, vector<32x32xf32>, vector<2x32xf32> -> vector<2x32xf32>
    %cst_98 = arith.constant dense<0.000000e+00> : vector<2x32xf32>
    %342 = tpu.matmul %340, %285, %cst_98 {dimension_numbers = #tpu.dot_dimension_numbers<[1], [0], [0], [1], [0, 0, 1, 1], [], []>} : vector<2x32xf32>, vector<32x32xf32>, vector<2x32xf32> -> vector<2x32xf32>
    %cst_99 = arith.constant dense<0.000000e+00> : vector<2x32xf32>
    %343 = tpu.matmul %340, %287, %cst_99 {dimension_numbers = #tpu.dot_dimension_numbers<[1], [0], [0], [1], [0, 0, 1, 1], [], []>} : vector<2x32xf32>, vector<32x32xf32>, vector<2x32xf32> -> vector<2x32xf32>
    %344 = vector.broadcast %281 : vector<1x32xf32> to vector<2x32xf32>
    %345 = arith.addf %343, %344 : vector<2x32xf32>
    %346 = vector.extract_strided_slice %263 {offsets = [4, 0], sizes = [2, 32], strides = [1, 1]} : vector<16x32xf32> to vector<2x32xf32>
    %347 = arith.addf %346, %341 : vector<2x32xf32>
    %348 = arith.negf %347 : vector<2x32xf32>
    %349 = math.exp %348 : vector<2x32xf32>
    %cst_100 = arith.constant 1.000000e+00 : f32
    %350 = vector.broadcast %cst_100 : f32 to vector<2x32xf32>
    %351 = arith.addf %350, %349 : vector<2x32xf32>
    %352 = arith.divf %350, %351 : vector<2x32xf32>
    %353 = vector.extract_strided_slice %270 {offsets = [4, 0], sizes = [2, 32], strides = [1, 1]} : vector<16x32xf32> to vector<2x32xf32>
    %354 = arith.addf %353, %342 : vector<2x32xf32>
    %355 = arith.negf %354 : vector<2x32xf32>
    %356 = math.exp %355 : vector<2x32xf32>
    %cst_101 = arith.constant 1.000000e+00 : f32
    %357 = vector.broadcast %cst_101 : f32 to vector<2x32xf32>
    %358 = arith.addf %357, %356 : vector<2x32xf32>
    %359 = arith.divf %357, %358 : vector<2x32xf32>
    %360 = vector.extract_strided_slice %277 {offsets = [4, 0], sizes = [2, 32], strides = [1, 1]} : vector<16x32xf32> to vector<2x32xf32>
    %361 = arith.mulf %352, %345 : vector<2x32xf32>
    %362 = arith.addf %360, %361 : vector<2x32xf32>
    %363 = math.tanh %362 : vector<2x32xf32>
    %364 = arith.subf %340, %363 : vector<2x32xf32>
    %365 = arith.mulf %359, %364 : vector<2x32xf32>
    %366 = arith.addf %363, %365 : vector<2x32xf32>
    %cst_102 = arith.constant dense<0.000000e+00> : vector<2x32xf32>
    %367 = tpu.matmul %366, %283, %cst_102 {dimension_numbers = #tpu.dot_dimension_numbers<[1], [0], [0], [1], [0, 0, 1, 1], [], []>} : vector<2x32xf32>, vector<32x32xf32>, vector<2x32xf32> -> vector<2x32xf32>
    %cst_103 = arith.constant dense<0.000000e+00> : vector<2x32xf32>
    %368 = tpu.matmul %366, %285, %cst_103 {dimension_numbers = #tpu.dot_dimension_numbers<[1], [0], [0], [1], [0, 0, 1, 1], [], []>} : vector<2x32xf32>, vector<32x32xf32>, vector<2x32xf32> -> vector<2x32xf32>
    %cst_104 = arith.constant dense<0.000000e+00> : vector<2x32xf32>
    %369 = tpu.matmul %366, %287, %cst_104 {dimension_numbers = #tpu.dot_dimension_numbers<[1], [0], [0], [1], [0, 0, 1, 1], [], []>} : vector<2x32xf32>, vector<32x32xf32>, vector<2x32xf32> -> vector<2x32xf32>
    %370 = vector.broadcast %281 : vector<1x32xf32> to vector<2x32xf32>
    %371 = arith.addf %369, %370 : vector<2x32xf32>
    %372 = vector.extract_strided_slice %263 {offsets = [6, 0], sizes = [2, 32], strides = [1, 1]} : vector<16x32xf32> to vector<2x32xf32>
    %373 = arith.addf %372, %367 : vector<2x32xf32>
    %374 = arith.negf %373 : vector<2x32xf32>
    %375 = math.exp %374 : vector<2x32xf32>
    %cst_105 = arith.constant 1.000000e+00 : f32
    %376 = vector.broadcast %cst_105 : f32 to vector<2x32xf32>
    %377 = arith.addf %376, %375 : vector<2x32xf32>
    %378 = arith.divf %376, %377 : vector<2x32xf32>
    %379 = vector.extract_strided_slice %270 {offsets = [6, 0], sizes = [2, 32], strides = [1, 1]} : vector<16x32xf32> to vector<2x32xf32>
    %380 = arith.addf %379, %368 : vector<2x32xf32>
    %381 = arith.negf %380 : vector<2x32xf32>
    %382 = math.exp %381 : vector<2x32xf32>
    %cst_106 = arith.constant 1.000000e+00 : f32
    %383 = vector.broadcast %cst_106 : f32 to vector<2x32xf32>
    %384 = arith.addf %383, %382 : vector<2x32xf32>
    %385 = arith.divf %383, %384 : vector<2x32xf32>
    %386 = vector.extract_strided_slice %277 {offsets = [6, 0], sizes = [2, 32], strides = [1, 1]} : vector<16x32xf32> to vector<2x32xf32>
    %387 = arith.mulf %378, %371 : vector<2x32xf32>
    %388 = arith.addf %386, %387 : vector<2x32xf32>
    %389 = math.tanh %388 : vector<2x32xf32>
    %390 = arith.subf %366, %389 : vector<2x32xf32>
    %391 = arith.mulf %385, %390 : vector<2x32xf32>
    %392 = arith.addf %389, %391 : vector<2x32xf32>
    %cst_107 = arith.constant dense<0.000000e+00> : vector<2x32xf32>
    %393 = tpu.matmul %392, %283, %cst_107 {dimension_numbers = #tpu.dot_dimension_numbers<[1], [0], [0], [1], [0, 0, 1, 1], [], []>} : vector<2x32xf32>, vector<32x32xf32>, vector<2x32xf32> -> vector<2x32xf32>
    %cst_108 = arith.constant dense<0.000000e+00> : vector<2x32xf32>
    %394 = tpu.matmul %392, %285, %cst_108 {dimension_numbers = #tpu.dot_dimension_numbers<[1], [0], [0], [1], [0, 0, 1, 1], [], []>} : vector<2x32xf32>, vector<32x32xf32>, vector<2x32xf32> -> vector<2x32xf32>
    %cst_109 = arith.constant dense<0.000000e+00> : vector<2x32xf32>
    %395 = tpu.matmul %392, %287, %cst_109 {dimension_numbers = #tpu.dot_dimension_numbers<[1], [0], [0], [1], [0, 0, 1, 1], [], []>} : vector<2x32xf32>, vector<32x32xf32>, vector<2x32xf32> -> vector<2x32xf32>
    %396 = vector.broadcast %281 : vector<1x32xf32> to vector<2x32xf32>
    %397 = arith.addf %395, %396 : vector<2x32xf32>
    %398 = vector.extract_strided_slice %263 {offsets = [8, 0], sizes = [2, 32], strides = [1, 1]} : vector<16x32xf32> to vector<2x32xf32>
    %399 = arith.addf %398, %393 : vector<2x32xf32>
    %400 = arith.negf %399 : vector<2x32xf32>
    %401 = math.exp %400 : vector<2x32xf32>
    %cst_110 = arith.constant 1.000000e+00 : f32
    %402 = vector.broadcast %cst_110 : f32 to vector<2x32xf32>
    %403 = arith.addf %402, %401 : vector<2x32xf32>
    %404 = arith.divf %402, %403 : vector<2x32xf32>
    %405 = vector.extract_strided_slice %270 {offsets = [8, 0], sizes = [2, 32], strides = [1, 1]} : vector<16x32xf32> to vector<2x32xf32>
    %406 = arith.addf %405, %394 : vector<2x32xf32>
    %407 = arith.negf %406 : vector<2x32xf32>
    %408 = math.exp %407 : vector<2x32xf32>
    %cst_111 = arith.constant 1.000000e+00 : f32
    %409 = vector.broadcast %cst_111 : f32 to vector<2x32xf32>
    %410 = arith.addf %409, %408 : vector<2x32xf32>
    %411 = arith.divf %409, %410 : vector<2x32xf32>
    %412 = vector.extract_strided_slice %277 {offsets = [8, 0], sizes = [2, 32], strides = [1, 1]} : vector<16x32xf32> to vector<2x32xf32>
    %413 = arith.mulf %404, %397 : vector<2x32xf32>
    %414 = arith.addf %412, %413 : vector<2x32xf32>
    %415 = math.tanh %414 : vector<2x32xf32>
    %416 = arith.subf %392, %415 : vector<2x32xf32>
    %417 = arith.mulf %411, %416 : vector<2x32xf32>
    %418 = arith.addf %415, %417 : vector<2x32xf32>
    %cst_112 = arith.constant dense<0.000000e+00> : vector<2x32xf32>
    %419 = tpu.matmul %418, %283, %cst_112 {dimension_numbers = #tpu.dot_dimension_numbers<[1], [0], [0], [1], [0, 0, 1, 1], [], []>} : vector<2x32xf32>, vector<32x32xf32>, vector<2x32xf32> -> vector<2x32xf32>
    %cst_113 = arith.constant dense<0.000000e+00> : vector<2x32xf32>
    %420 = tpu.matmul %418, %285, %cst_113 {dimension_numbers = #tpu.dot_dimension_numbers<[1], [0], [0], [1], [0, 0, 1, 1], [], []>} : vector<2x32xf32>, vector<32x32xf32>, vector<2x32xf32> -> vector<2x32xf32>
    %cst_114 = arith.constant dense<0.000000e+00> : vector<2x32xf32>
    %421 = tpu.matmul %418, %287, %cst_114 {dimension_numbers = #tpu.dot_dimension_numbers<[1], [0], [0], [1], [0, 0, 1, 1], [], []>} : vector<2x32xf32>, vector<32x32xf32>, vector<2x32xf32> -> vector<2x32xf32>
    %422 = vector.broadcast %281 : vector<1x32xf32> to vector<2x32xf32>
    %423 = arith.addf %421, %422 : vector<2x32xf32>
    %424 = vector.extract_strided_slice %263 {offsets = [10, 0], sizes = [2, 32], strides = [1, 1]} : vector<16x32xf32> to vector<2x32xf32>
    %425 = arith.addf %424, %419 : vector<2x32xf32>
    %426 = arith.negf %425 : vector<2x32xf32>
    %427 = math.exp %426 : vector<2x32xf32>
    %cst_115 = arith.constant 1.000000e+00 : f32
    %428 = vector.broadcast %cst_115 : f32 to vector<2x32xf32>
    %429 = arith.addf %428, %427 : vector<2x32xf32>
    %430 = arith.divf %428, %429 : vector<2x32xf32>
    %431 = vector.extract_strided_slice %270 {offsets = [10, 0], sizes = [2, 32], strides = [1, 1]} : vector<16x32xf32> to vector<2x32xf32>
    %432 = arith.addf %431, %420 : vector<2x32xf32>
    %433 = arith.negf %432 : vector<2x32xf32>
    %434 = math.exp %433 : vector<2x32xf32>
    %cst_116 = arith.constant 1.000000e+00 : f32
    %435 = vector.broadcast %cst_116 : f32 to vector<2x32xf32>
    %436 = arith.addf %435, %434 : vector<2x32xf32>
    %437 = arith.divf %435, %436 : vector<2x32xf32>
    %438 = vector.extract_strided_slice %277 {offsets = [10, 0], sizes = [2, 32], strides = [1, 1]} : vector<16x32xf32> to vector<2x32xf32>
    %439 = arith.mulf %430, %423 : vector<2x32xf32>
    %440 = arith.addf %438, %439 : vector<2x32xf32>
    %441 = math.tanh %440 : vector<2x32xf32>
    %442 = arith.subf %418, %441 : vector<2x32xf32>
    %443 = arith.mulf %437, %442 : vector<2x32xf32>
    %444 = arith.addf %441, %443 : vector<2x32xf32>
    %cst_117 = arith.constant dense<0.000000e+00> : vector<2x32xf32>
    %445 = tpu.matmul %444, %283, %cst_117 {dimension_numbers = #tpu.dot_dimension_numbers<[1], [0], [0], [1], [0, 0, 1, 1], [], []>} : vector<2x32xf32>, vector<32x32xf32>, vector<2x32xf32> -> vector<2x32xf32>
    %cst_118 = arith.constant dense<0.000000e+00> : vector<2x32xf32>
    %446 = tpu.matmul %444, %285, %cst_118 {dimension_numbers = #tpu.dot_dimension_numbers<[1], [0], [0], [1], [0, 0, 1, 1], [], []>} : vector<2x32xf32>, vector<32x32xf32>, vector<2x32xf32> -> vector<2x32xf32>
    %cst_119 = arith.constant dense<0.000000e+00> : vector<2x32xf32>
    %447 = tpu.matmul %444, %287, %cst_119 {dimension_numbers = #tpu.dot_dimension_numbers<[1], [0], [0], [1], [0, 0, 1, 1], [], []>} : vector<2x32xf32>, vector<32x32xf32>, vector<2x32xf32> -> vector<2x32xf32>
    %448 = vector.broadcast %281 : vector<1x32xf32> to vector<2x32xf32>
    %449 = arith.addf %447, %448 : vector<2x32xf32>
    %450 = vector.extract_strided_slice %263 {offsets = [12, 0], sizes = [2, 32], strides = [1, 1]} : vector<16x32xf32> to vector<2x32xf32>
    %451 = arith.addf %450, %445 : vector<2x32xf32>
    %452 = arith.negf %451 : vector<2x32xf32>
    %453 = math.exp %452 : vector<2x32xf32>
    %cst_120 = arith.constant 1.000000e+00 : f32
    %454 = vector.broadcast %cst_120 : f32 to vector<2x32xf32>
    %455 = arith.addf %454, %453 : vector<2x32xf32>
    %456 = arith.divf %454, %455 : vector<2x32xf32>
    %457 = vector.extract_strided_slice %270 {offsets = [12, 0], sizes = [2, 32], strides = [1, 1]} : vector<16x32xf32> to vector<2x32xf32>
    %458 = arith.addf %457, %446 : vector<2x32xf32>
    %459 = arith.negf %458 : vector<2x32xf32>
    %460 = math.exp %459 : vector<2x32xf32>
    %cst_121 = arith.constant 1.000000e+00 : f32
    %461 = vector.broadcast %cst_121 : f32 to vector<2x32xf32>
    %462 = arith.addf %461, %460 : vector<2x32xf32>
    %463 = arith.divf %461, %462 : vector<2x32xf32>
    %464 = vector.extract_strided_slice %277 {offsets = [12, 0], sizes = [2, 32], strides = [1, 1]} : vector<16x32xf32> to vector<2x32xf32>
    %465 = arith.mulf %456, %449 : vector<2x32xf32>
    %466 = arith.addf %464, %465 : vector<2x32xf32>
    %467 = math.tanh %466 : vector<2x32xf32>
    %468 = arith.subf %444, %467 : vector<2x32xf32>
    %469 = arith.mulf %463, %468 : vector<2x32xf32>
    %470 = arith.addf %467, %469 : vector<2x32xf32>
    %cst_122 = arith.constant dense<0.000000e+00> : vector<2x32xf32>
    %471 = tpu.matmul %470, %283, %cst_122 {dimension_numbers = #tpu.dot_dimension_numbers<[1], [0], [0], [1], [0, 0, 1, 1], [], []>} : vector<2x32xf32>, vector<32x32xf32>, vector<2x32xf32> -> vector<2x32xf32>
    %cst_123 = arith.constant dense<0.000000e+00> : vector<2x32xf32>
    %472 = tpu.matmul %470, %285, %cst_123 {dimension_numbers = #tpu.dot_dimension_numbers<[1], [0], [0], [1], [0, 0, 1, 1], [], []>} : vector<2x32xf32>, vector<32x32xf32>, vector<2x32xf32> -> vector<2x32xf32>
    %cst_124 = arith.constant dense<0.000000e+00> : vector<2x32xf32>
    %473 = tpu.matmul %470, %287, %cst_124 {dimension_numbers = #tpu.dot_dimension_numbers<[1], [0], [0], [1], [0, 0, 1, 1], [], []>} : vector<2x32xf32>, vector<32x32xf32>, vector<2x32xf32> -> vector<2x32xf32>
    %474 = vector.broadcast %281 : vector<1x32xf32> to vector<2x32xf32>
    %475 = arith.addf %473, %474 : vector<2x32xf32>
    %476 = vector.extract_strided_slice %263 {offsets = [14, 0], sizes = [2, 32], strides = [1, 1]} : vector<16x32xf32> to vector<2x32xf32>
    %477 = arith.addf %476, %471 : vector<2x32xf32>
    %478 = arith.negf %477 : vector<2x32xf32>
    %479 = math.exp %478 : vector<2x32xf32>
    %cst_125 = arith.constant 1.000000e+00 : f32
    %480 = vector.broadcast %cst_125 : f32 to vector<2x32xf32>
    %481 = arith.addf %480, %479 : vector<2x32xf32>
    %482 = arith.divf %480, %481 : vector<2x32xf32>
    %483 = vector.extract_strided_slice %270 {offsets = [14, 0], sizes = [2, 32], strides = [1, 1]} : vector<16x32xf32> to vector<2x32xf32>
    %484 = arith.addf %483, %472 : vector<2x32xf32>
    %485 = arith.negf %484 : vector<2x32xf32>
    %486 = math.exp %485 : vector<2x32xf32>
    %cst_126 = arith.constant 1.000000e+00 : f32
    %487 = vector.broadcast %cst_126 : f32 to vector<2x32xf32>
    %488 = arith.addf %487, %486 : vector<2x32xf32>
    %489 = arith.divf %487, %488 : vector<2x32xf32>
    %490 = vector.extract_strided_slice %277 {offsets = [14, 0], sizes = [2, 32], strides = [1, 1]} : vector<16x32xf32> to vector<2x32xf32>
    %491 = arith.mulf %482, %475 : vector<2x32xf32>
    %492 = arith.addf %490, %491 : vector<2x32xf32>
    %493 = math.tanh %492 : vector<2x32xf32>
    %494 = arith.subf %470, %493 : vector<2x32xf32>
    %495 = arith.mulf %489, %494 : vector<2x32xf32>
    %496 = arith.addf %493, %495 : vector<2x32xf32>
    %c0_127 = arith.constant 0 : index
    %c0_128 = arith.constant 0 : index
    %497 = vector.load %arg6[%c0_127, %c0_128] : memref<32x5xf32, #tpu.memory_space<vmem>>, vector<32x5xf32>
    %cst_129 = arith.constant dense<0.000000e+00> : vector<2x5xf32>
    %498 = tpu.matmul %496, %497, %cst_129 {dimension_numbers = #tpu.dot_dimension_numbers<[1], [0], [0], [1], [0, 0, 1, 1], [], []>} : vector<2x32xf32>, vector<32x5xf32>, vector<2x5xf32> -> vector<2x5xf32>
    %c0_130 = arith.constant 0 : index
    %c0_131 = arith.constant 0 : index
    %499 = vector.load %arg7[%c0_130, %c0_131] : memref<1x5xf32, #tpu.memory_space<vmem>>, vector<1x5xf32>
    %500 = vector.broadcast %499 : vector<1x5xf32> to vector<2x5xf32>
    %501 = arith.addf %498, %500 : vector<2x5xf32>
    %cst_132 = arith.constant dense<0xFF800000> : vector<2xf32>
    %502 = vector.multi_reduction <maximumf>, %501, %cst_132 [1] : vector<2x5xf32> to vector<2xf32>
    %503 = vector.shape_cast %502 : vector<2xf32> to vector<2x1xf32>
    %504 = vector.broadcast %503 : vector<2x1xf32> to vector<2x5xf32>
    %505 = arith.subf %501, %504 : vector<2x5xf32>
    %506 = math.exp %505 : vector<2x5xf32>
    %cst_133 = arith.constant dense<0.000000e+00> : vector<2xf32>
    %507 = vector.multi_reduction <add>, %506, %cst_133 [1] : vector<2x5xf32> to vector<2xf32>
    %508 = vector.shape_cast %507 : vector<2xf32> to vector<2x1xf32>
    %509 = vector.broadcast %508 : vector<2x1xf32> to vector<2x5xf32>
    %510 = arith.divf %506, %509 : vector<2x5xf32>
    %c0_134 = arith.constant 0 : index
    %c0_135 = arith.constant 0 : index
    %511 = vector.load %arg8[%c0_134, %c0_135] : memref<2x5xf32, #tpu.memory_space<vmem>>, vector<2x5xf32>
    tpu.vector_store %arg8[%c0_134, %c0_135], %510 {strides = array<i32>} : memref<2x5xf32, #tpu.memory_space<vmem>>, vector<2x5xf32>,
    return
  }
}

</mosaic_0001>

<llo_original>
// kernel: gru3d_classifier_forward.1
$region0: #{gru3d_classifier_forward.1}
  #allocation0 [shape = 'u32[]', space=smem, size = 0x4, offset = 0x4, fixed_abs, tag = 'smem constant byte address 0x4 - core index']
  #allocation1 [shape = 'u32[144,128]{1,0:T(1,128)}', space=vmem, size = 0x12000, scoped, tag = 'internal scratch']
  #allocation2 [shape = 'f32[16,32]{1,0:T(8,128)}', space=vmem, size = 0x2000, scoped, tag = 'scratch operand']
  %s0 = inlined_call_operand.vmem [shape: f32[16,16], index: 0, kind: input, shape index: {}]
  %s1 = inlined_call_operand.vmem [shape: f32[3,16,32], index: 1, kind: input, shape index: {}]
  %s2 = inlined_call_operand.hbm [shape: f32[1,3,32,32], index: 2, kind: input, shape index: {}]
  %s3 = inlined_call_operand.hbm [shape: f32[2,3,32,32], index: 3, kind: input, shape index: {}]
  %s4 = inlined_call_operand.vmem [shape: f32[2,3,1,32], index: 4, kind: input, shape index: {}]
  %s5 = inlined_call_operand.vmem [shape: f32[2,1,32], index: 5, kind: input, shape index: {}]
  %s6 = inlined_call_operand.vmem [shape: f32[32,5], index: 6, kind: input, shape index: {}]
  %s7 = inlined_call_operand.vmem [shape: f32[1,5], index: 7, kind: input, shape index: {}]
  %s8 = inlined_call_operand.hbm [shape: f32[2,5], index: 8, kind: output, shape index: {}]
  %s9 = sld [smem:[#allocation0]]
  $region50: #{gru3d_classifier_forward.1} parent=0
    _
  %s11 = ssub.s32 1, %s9
  %s12 = scalar_select 0, %s11, %s9
  $region1: #{gru3d_classifier_forward.1} parent=0
    #allocation3 [shape = 'u8[49152]{0}', space=vmem, size = 0xc000, scoped, tag = 'input window, operand 2, single buffered']
    #allocation4 [shape = 's32[1]{0}', space=sflag, size = 0x4, scoped, tag = 'scoped memory for gru3d_classifier_forward.1']
    #allocation5 [shape = 's32[1]{0}', space=sflag, size = 0x4, scoped, tag = 'scoped memory for gru3d_classifier_forward.1']
    #allocation6 [shape = 'u8[98304]{0}', space=vmem, size = 0x18000, scoped, tag = 'input window, operand 3, single buffered']
    #allocation7 [shape = 's32[1]{0}', space=sflag, size = 0x4, scoped, tag = 'scoped memory for gru3d_classifier_forward.1']
    #allocation8 [shape = 'u8[1024]{0}', space=vmem, size = 0x400, scoped, tag = 'output window, operand 0, single buffered']
    %13 = vsyncpa [#allocation4], 0
    %14 = vsyncpa [#allocation7], 0
    %15 = vsyncpa [#allocation5], 0
    // Predicated region
    $region2: #{gru3d_classifier_forward.1} parent=1 // pred_check
      _
    $region3: #{gru3d_classifier_forward.1} parent=1 // pred_check_branch
      %17 = sbr.rel (0) target = $region5
    $region4: #{gru3d_classifier_forward.1} parent=1 // pred_region
      _
    $region5: #{gru3d_classifier_forward.1} parent=1 // pred_fallthru
      _
    // Predicated region
    $region6: #{gru3d_classifier_forward.1} parent=1 // pred_check
      _
    $region7: #{gru3d_classifier_forward.1} parent=1 // pred_check_branch
      %19 = sbr.rel (0) target = $region9
    $region8: #{gru3d_classifier_forward.1} parent=1 // pred_region
      _
    $region9: #{gru3d_classifier_forward.1} parent=1 // pred_fallthru
      _
    // Predicated region
    $region10: #{gru3d_classifier_forward.1} parent=1 // pred_check
      _
    $region11: #{gru3d_classifier_forward.1} parent=1 // pred_check_branch
      %21 = sbr.rel (0) target = $region13
    $region12: #{gru3d_classifier_forward.1} parent=1 // pred_region
      %s23 = ssub.s32 1536, 1536
      %24 = vsyncadd [#allocation4], %s23
      %s25 = sshll.u32 [#allocation3], 4
      %s26 = int_to_ptr.vmem [resolvable:$true] %s25
      %31 = dma.hbm_to_vmem [thread:$0]  %s2, 1536, %s26, [#allocation4], 128, 128, 8
    $region13: #{gru3d_classifier_forward.1} parent=1 // pred_fallthru
      _
    // Predicated region
    $region14: #{gru3d_classifier_forward.1} parent=1 // pred_check
      _
    $region15: #{gru3d_classifier_forward.1} parent=1 // pred_check_branch
      %33 = sbr.rel (0) target = $region17
    $region16: #{gru3d_classifier_forward.1} parent=1 // pred_region
      %s35 = ssub.s32 3072, 3072
      %36 = vsyncadd [#allocation7], %s35
      %s37 = sshll.u32 [#allocation6], 4
      %s38 = int_to_ptr.vmem [resolvable:$true] %s37
      %43 = dma.hbm_to_vmem [thread:$0]  %s3, 3072, %s38, [#allocation7], 128, 128, 8
    $region17: #{gru3d_classifier_forward.1} parent=1 // pred_fallthru
      _
    // Predicated region
    $region18: #{gru3d_classifier_forward.1} parent=1 // pred_check
      _
    $region19: #{gru3d_classifier_forward.1} parent=1 // pred_check_branch
      %45 = sbr.rel (0) target = $region21
    $region20: #{gru3d_classifier_forward.1} parent=1 // pred_region
      _
    $region21: #{gru3d_classifier_forward.1} parent=1 // pred_fallthru
      _
    // Predicated region
    $region22: #{gru3d_classifier_forward.1} parent=1 // pred_check
      _
    $region23: #{gru3d_classifier_forward.1} parent=1 // pred_check_branch
      %47 = sbr.rel (0) target = $region25
    $region24: #{gru3d_classifier_forward.1} parent=1 // pred_region
      _
    $region25: #{gru3d_classifier_forward.1} parent=1 // pred_fallthru
      _
    // Predicated region
    $region26: #{gru3d_classifier_forward.1} parent=1 // pred_check
      _
    $region27: #{gru3d_classifier_forward.1} parent=1 // pred_check_branch
      %49 = sbr.rel (0) target = $region29
    $region28: #{gru3d_classifier_forward.1} parent=1 // pred_region
      _
    $region29: #{gru3d_classifier_forward.1} parent=1 // pred_fallthru
      _
    // Predicated region
    $region30: #{gru3d_classifier_forward.1} parent=1 // pred_check
      _
    $region31: #{gru3d_classifier_forward.1} parent=1 // pred_check_branch
      %51 = sbr.rel (0) target = $region33
    $region32: #{gru3d_classifier_forward.1} parent=1 // pred_region
      _
    $region33: #{gru3d_classifier_forward.1} parent=1 // pred_fallthru
      _
    // Predicated region
    $region34: #{gru3d_classifier_forward.1} parent=1 // pred_check
      _
    $region35: #{gru3d_classifier_forward.1} parent=1 // pred_check_branch
      %53 = sbr.rel (0) target = $region37
    $region36: #{gru3d_classifier_forward.1} parent=1 // pred_region
      %54 = dma.done [#allocation4], 1536
    $region37: #{gru3d_classifier_forward.1} parent=1 // pred_fallthru
      _
    // Predicated region
    $region38: #{gru3d_classifier_forward.1} parent=1 // pred_check
      _
    $region39: #{gru3d_classifier_forward.1} parent=1 // pred_check_branch
      %56 = sbr.rel (0) target = $region41
    $region40: #{gru3d_classifier_forward.1} parent=1 // pred_region
      %57 = dma.done [#allocation7], 3072
    $region41: #{gru3d_classifier_forward.1} parent=1 // pred_fallthru
      _
    %v58 = vld [vmem:[%s0] sm:$0xff]
    %v59 = vld [vmem:[%s0 + $0x8] sm:$0xff]
    %v60 = vld [vmem:[%s1] sm:$0xff]
    %v61 = vld [vmem:[%s1 + $0x8] sm:$0xff]
    %v62 = vld [vmem:[%s1 + $0x10] sm:$0xff]
    %v63 = vld [vmem:[%s1 + $0x18] sm:$0xff]
    %v64 = vld [vmem:[%s1 + $0x20] sm:$0xff]
    %v65 = vld [vmem:[%s1 + $0x28] sm:$0xff]
    %v66 = vld [vmem:[%s4] sm:$0x1]
    %v67 = vld [vmem:[%s4 + $0x1] sm:$0x1]
    %v68 = vld [vmem:[%s4 + $0x2] sm:$0x1]
    %v70 = vlaneseq
    %v71 = vshrl.u32 %v70, 7
    %v72 = vsub.s32 0, %v71
    %v73 = vrot.slane %v66, %v72
    %vm75 = vcmask 130048
    %v77 = vsel %vm75, %v58, 0
    %v80 = vsel %vm75, %v59, 0
    %82 = vmatprep.subr.mxu0 0.0
    %83 = vmatpush1.msra.mxu0 0.0
    %84 = vmatprep.subr.mxu0 0.0
    %85 = vmatpush1.msra.mxu0 0.0
    %86 = vmatprep.subr.mxu0 0.0
    %87 = vmatpush1.msra.mxu0 0.0
    %88 = vmatprep.subr.mxu0 0.0
    %89 = vmatpush1.msra.mxu0 0.0
    %90 = vmatprep.subr.mxu0 0.0
    %91 = vmatpush1.msra.mxu0 0.0
    %92 = vmatprep.subr.mxu0 0.0
    %93 = vmatpush1.msra.mxu0 0.0
    %94 = vmatprep.subr.mxu0 0.0
    %95 = vmatpush1.msra.mxu0 0.0
    %96 = vmatprep.subr.mxu0 0.0
    %97 = vmatpush1.msra.mxu0 0.0
    %98 = vmatprep.subr.mxu0 0.0
    %99 = vmatpush1.msra.mxu0 0.0
    %100 = vmatprep.subr.mxu0 0.0
    %101 = vmatpush1.msra.mxu0 0.0
    %102 = vmatprep.subr.mxu0 0.0
    %103 = vmatpush1.msra.mxu0 0.0
    %104 = vmatprep.subr.mxu0 0.0
    %105 = vmatpush1.msra.mxu0 0.0
    %106 = vmatprep.subr.mxu0 0.0
    %107 = vmatpush1.msra.mxu0 0.0
    %108 = vmatprep.subr.mxu0 0.0
    %109 = vmatpush1.msra.mxu0 0.0
    %110 = vmatprep.subr.mxu0 0.0
    %111 = vmatpush1.msra.mxu0 %v61
    %112 = vmatprep.subr.mxu0 0.0
    %113 = vmatpush1.msra.mxu0 %v60
    %114 = vmatprep.subr.mxu0 0.0
    %115 = vmatpush2.msra.mxu0 0.0
    %116 = vmatprep.subr.mxu0 0.0
    %117 = vmatpush2.msra.mxu0 0.0
    %118 = vmatprep.subr.mxu0 0.0
    %119 = vmatpush2.msra.mxu0 0.0
    %120 = vmatprep.subr.mxu0 0.0
    %121 = vmatpush2.msra.mxu0 0.0
    %122 = vmatprep.subr.mxu0 0.0
    %123 = vmatpush2.msra.mxu0 0.0
    %124 = vmatprep.subr.mxu0 0.0
    %125 = vmatpush2.msra.mxu0 0.0
    %126 = vmatprep.subr.mxu0 0.0
    %127 = vmatpush2.msra.mxu0 0.0
    %128 = vmatprep.subr.mxu0 0.0
    %129 = vmatpush2.msra.mxu0 0.0
    %130 = vmatprep.subr.mxu0 0.0
    %131 = vmatpush2.msra.mxu0 0.0
    %132 = vmatprep.subr.mxu0 0.0
    %133 = vmatpush2.msra.mxu0 0.0
    %134 = vmatprep.subr.mxu0 0.0
    %135 = vmatpush2.msra.mxu0 0.0
    %136 = vmatprep.subr.mxu0 0.0
    %137 = vmatpush2.msra.mxu0 0.0
    %138 = vmatprep.subr.mxu0 0.0
    %139 = vmatpush2.msra.mxu0 0.0
    %140 = vmatprep.subr.mxu0 0.0
    %141 = vmatpush2.msra.mxu0 0.0
    %142 = vmatprep.subr.mxu0 0.0
    %143 = vmatpush2.msra.mxu0 0.0
    %144 = vmatprep.subr.mxu0 0.0
    %145 = vmatpush2.msra.mxu0 0.0
    %146 = vmatprep.mubr.f32.mxu0 0.0
    %147 = vmatmul.mubr.f32.gmra.mxu0 %v77
    %v148 = vpop.f32.mrf.mxu0
    %v149 = vadd.f32 %v73, %v148
    %v150 = vpop.f32.mrf.mxu0
    %151 = vmatprep.mubr.f32.mxu0 0.0
    %152 = vmatmul.mubr.f32.gmra.mxu0 %v80
    %v153 = vpop.f32.mrf.mxu0
    %v154 = vadd.f32 %v73, %v153
    %v155 = vpop.f32.mrf.mxu0
    %156 = vdwg.mxu0
    %v158 = vlaneseq
    %v159 = vshrl.u32 %v158, 7
    %v160 = vsub.s32 0, %v159
    %v161 = vrot.slane %v67, %v160
    %163 = vmatprep.subr.mxu0 0.0
    %164 = vmatpush1.msra.mxu0 0.0
    %165 = vmatprep.subr.mxu0 0.0
    %166 = vmatpush1.msra.mxu0 0.0
    %167 = vmatprep.subr.mxu0 0.0
    %168 = vmatpush1.msra.mxu0 0.0
    %169 = vmatprep.subr.mxu0 0.0
    %170 = vmatpush1.msra.mxu0 0.0
    %171 = vmatprep.subr.mxu0 0.0
    %172 = vmatpush1.msra.mxu0 0.0
    %173 = vmatprep.subr.mxu0 0.0
    %174 = vmatpush1.msra.mxu0 0.0
    %175 = vmatprep.subr.mxu0 0.0
    %176 = vmatpush1.msra.mxu0 0.0
    %177 = vmatprep.subr.mxu0 0.0
    %178 = vmatpush1.msra.mxu0 0.0
    %179 = vmatprep.subr.mxu0 0.0
    %180 = vmatpush1.msra.mxu0 0.0
    %181 = vmatprep.subr.mxu0 0.0
    %182 = vmatpush1.msra.mxu0 0.0
    %183 = vmatprep.subr.mxu0 0.0
    %184 = vmatpush1.msra.mxu0 0.0
    %185 = vmatprep.subr.mxu0 0.0
    %186 = vmatpush1.msra.mxu0 0.0
    %187 = vmatprep.subr.mxu0 0.0
    %188 = vmatpush1.msra.mxu0 0.0
    %189 = vmatprep.subr.mxu0 0.0
    %190 = vmatpush1.msra.mxu0 0.0
    %191 = vmatprep.subr.mxu0 0.0
    %192 = vmatpush1.msra.mxu0 %v63
    %193 = vmatprep.subr.mxu0 0.0
    %194 = vmatpush1.msra.mxu0 %v62
    %195 = vmatprep.subr.mxu0 0.0
    %196 = vmatpush2.msra.mxu0 0.0
    %197 = vmatprep.subr.mxu0 0.0
    %198 = vmatpush2.msra.mxu0 0.0
    %199 = vmatprep.subr.mxu0 0.0
    %200 = vmatpush2.msra.mxu0 0.0
    %201 = vmatprep.subr.mxu0 0.0
    %202 = vmatpush2.msra.mxu0 0.0
    %203 = vmatprep.subr.mxu0 0.0
    %204 = vmatpush2.msra.mxu0 0.0
    %205 = vmatprep.subr.mxu0 0.0
    %206 = vmatpush2.msra.mxu0 0.0
    %207 = vmatprep.subr.mxu0 0.0
    %208 = vmatpush2.msra.mxu0 0.0
    %209 = vmatprep.subr.mxu0 0.0
    %210 = vmatpush2.msra.mxu0 0.0
    %211 = vmatprep.subr.mxu0 0.0
    %212 = vmatpush2.msra.mxu0 0.0
    %213 = vmatprep.subr.mxu0 0.0
    %214 = vmatpush2.msra.mxu0 0.0
    %215 = vmatprep.subr.mxu0 0.0
    %216 = vmatpush2.msra.mxu0 0.0
    %217 = vmatprep.subr.mxu0 0.0
    %218 = vmatpush2.msra.mxu0 0.0
    %219 = vmatprep.subr.mxu0 0.0
    %220 = vmatpush2.msra.mxu0 0.0
    %221 = vmatprep.subr.mxu0 0.0
    %222 = vmatpush2.msra.mxu0 0.0
    %223 = vmatprep.subr.mxu0 0.0
    %224 = vmatpush2.msra.mxu0 0.0
    %225 = vmatprep.subr.mxu0 0.0
    %226 = vmatpush2.msra.mxu0 0.0
    %227 = vmatprep.mubr.f32.mxu0 0.0
    %228 = vmatmul.mubr.f32.gmra.mxu0 %v77
    %v229 = vpop.f32.mrf.mxu0
    %v230 = vadd.f32 %v161, %v229
    %v231 = vpop.f32.mrf.mxu0
    %232 = vmatprep.mubr.f32.mxu0 0.0
    %233 = vmatmul.mubr.f32.gmra.mxu0 %v80
    %v234 = vpop.f32.mrf.mxu0
    %v235 = vadd.f32 %v161, %v234
    %v236 = vpop.f32.mrf.mxu0
    %237 = vdwg.mxu0
    %v239 = vlaneseq
    %v240 = vshrl.u32 %v239, 7
    %v241 = vsub.s32 0, %v240
    %v242 = vrot.slane %v68, %v241
    %244 = vmatprep.subr.mxu0 0.0
    %245 = vmatpush1.msra.mxu0 0.0
    %246 = vmatprep.subr.mxu0 0.0
    %247 = vmatpush1.msra.mxu0 0.0
    %248 = vmatprep.subr.mxu0 0.0
    %249 = vmatpush1.msra.mxu0 0.0
    %250 = vmatprep.subr.mxu0 0.0
    %251 = vmatpush1.msra.mxu0 0.0
    %252 = vmatprep.subr.mxu0 0.0
    %253 = vmatpush1.msra.mxu0 0.0
    %254 = vmatprep.subr.mxu0 0.0
    %255 = vmatpush1.msra.mxu0 0.0
    %256 = vmatprep.subr.mxu0 0.0
    %257 = vmatpush1.msra.mxu0 0.0
    %258 = vmatprep.subr.mxu0 0.0
    %259 = vmatpush1.msra.mxu0 0.0
    %260 = vmatprep.subr.mxu0 0.0
    %261 = vmatpush1.msra.mxu0 0.0
    %262 = vmatprep.subr.mxu0 0.0
    %263 = vmatpush1.msra.mxu0 0.0
    %264 = vmatprep.subr.mxu0 0.0
    %265 = vmatpush1.msra.mxu0 0.0
    %266 = vmatprep.subr.mxu0 0.0
    %267 = vmatpush1.msra.mxu0 0.0
    %268 = vmatprep.subr.mxu0 0.0
    %269 = vmatpush1.msra.mxu0 0.0
    %270 = vmatprep.subr.mxu0 0.0
    %271 = vmatpush1.msra.mxu0 0.0
    %272 = vmatprep.subr.mxu0 0.0
    %273 = vmatpush1.msra.mxu0 %v65
    %274 = vmatprep.subr.mxu0 0.0
    %275 = vmatpush1.msra.mxu0 %v64
    %276 = vmatprep.subr.mxu0 0.0
    %277 = vmatpush2.msra.mxu0 0.0
    %278 = vmatprep.subr.mxu0 0.0
    %279 = vmatpush2.msra.mxu0 0.0
    %280 = vmatprep.subr.mxu0 0.0
    %281 = vmatpush2.msra.mxu0 0.0
    %282 = vmatprep.subr.mxu0 0.0
    %283 = vmatpush2.msra.mxu0 0.0
    %284 = vmatprep.subr.mxu0 0.0
    %285 = vmatpush2.msra.mxu0 0.0
    %286 = vmatprep.subr.mxu0 0.0
    %287 = vmatpush2.msra.mxu0 0.0
    %288 = vmatprep.subr.mxu0 0.0
    %289 = vmatpush2.msra.mxu0 0.0
    %290 = vmatprep.subr.mxu0 0.0
    %291 = vmatpush2.msra.mxu0 0.0
    %292 = vmatprep.subr.mxu0 0.0
    %293 = vmatpush2.msra.mxu0 0.0
    %294 = vmatprep.subr.mxu0 0.0
    %295 = vmatpush2.msra.mxu0 0.0
    %296 = vmatprep.subr.mxu0 0.0
    %297 = vmatpush2.msra.mxu0 0.0
    %298 = vmatprep.subr.mxu0 0.0
    %299 = vmatpush2.msra.mxu0 0.0
    %300 = vmatprep.subr.mxu0 0.0
    %301 = vmatpush2.msra.mxu0 0.0
    %302 = vmatprep.subr.mxu0 0.0
    %303 = vmatpush2.msra.mxu0 0.0
    %304 = vmatprep.subr.mxu0 0.0
    %305 = vmatpush2.msra.mxu0 0.0
    %306 = vmatprep.subr.mxu0 0.0
    %307 = vmatpush2.msra.mxu0 0.0
    %308 = vmatprep.mubr.f32.mxu0 0.0
    %309 = vmatmul.mubr.f32.gmra.mxu0 %v77
    %v310 = vpop.f32.mrf.mxu0
    %v311 = vadd.f32 %v242, %v310
    %v312 = vpop.f32.mrf.mxu0
    %313 = vmatprep.mubr.f32.mxu0 0.0
    %314 = vmatmul.mubr.f32.gmra.mxu0 %v80
    %v315 = vpop.f32.mrf.mxu0
    %v316 = vadd.f32 %v242, %v315
    %v317 = vpop.f32.mrf.mxu0
    %318 = vdwg.mxu0
    %v319 = vld [vmem:[#allocation6] sm:$0xff]
    %v320 = vld [vmem:[#allocation6 + $0x8] sm:$0xff]
    %v321 = vld [vmem:[#allocation6 + $0x10] sm:$0xff]
    %v322 = vld [vmem:[#allocation6 + $0x18] sm:$0xff]
    %v323 = vld [vmem:[#allocation6 + $0x20] sm:$0xff]
    %v324 = vld [vmem:[#allocation6 + $0x28] sm:$0xff]
    %v325 = vld [vmem:[#allocation6 + $0x30] sm:$0xff]
    %v326 = vld [vmem:[#allocation6 + $0x38] sm:$0xff]
    %v327 = vld [vmem:[#allocation6 + $0x40] sm:$0xff]
    %v328 = vld [vmem:[#allocation6 + $0x48] sm:$0xff]
    %v329 = vld [vmem:[#allocation6 + $0x50] sm:$0xff]
    %v330 = vld [vmem:[#allocation6 + $0x58] sm:$0xff]
    %v331 = vld [vmem:[%s5] sm:$0x1]
    %vm332 = vcmask 261120
    %v334 = vsel %vm332, 0.0, 0
    %336 = vmatprep.subr.mxu0 0.0
    %337 = vmatpush1.msra.mxu0 0.0
    %338 = vmatprep.subr.mxu0 0.0
    %339 = vmatpush1.msra.mxu0 0.0
    %340 = vmatprep.subr.mxu0 0.0
    %341 = vmatpush1.msra.mxu0 0.0
    %342 = vmatprep.subr.mxu0 0.0
    %343 = vmatpush1.msra.mxu0 0.0
    %344 = vmatprep.subr.mxu0 0.0
    %345 = vmatpush1.msra.mxu0 0.0
    %346 = vmatprep.subr.mxu0 0.0
    %347 = vmatpush1.msra.mxu0 0.0
    %348 = vmatprep.subr.mxu0 0.0
    %349 = vmatpush1.msra.mxu0 0.0
    %350 = vmatprep.subr.mxu0 0.0
    %351 = vmatpush1.msra.mxu0 0.0
    %352 = vmatprep.subr.mxu0 0.0
    %353 = vmatpush1.msra.mxu0 0.0
    %354 = vmatprep.subr.mxu0 0.0
    %355 = vmatpush1.msra.mxu0 0.0
    %356 = vmatprep.subr.mxu0 0.0
    %357 = vmatpush1.msra.mxu0 0.0
    %358 = vmatprep.subr.mxu0 0.0
    %359 = vmatpush1.msra.mxu0 0.0
    %360 = vmatprep.subr.mxu0 0.0
    %361 = vmatpush1.msra.mxu0 %v322
    %362 = vmatprep.subr.mxu0 0.0
    %363 = vmatpush1.msra.mxu0 %v321
    %364 = vmatprep.subr.mxu0 0.0
    %365 = vmatpush1.msra.mxu0 %v320
    %366 = vmatprep.subr.mxu0 0.0
    %367 = vmatpush1.msra.mxu0 %v319
    %368 = vmatprep.subr.mxu0 0.0
    %369 = vmatpush2.msra.mxu0 0.0
    %370 = vmatprep.subr.mxu0 0.0
    %371 = vmatpush2.msra.mxu0 0.0
    %372 = vmatprep.subr.mxu0 0.0
    %373 = vmatpush2.msra.mxu0 0.0
    %374 = vmatprep.subr.mxu0 0.0
    %375 = vmatpush2.msra.mxu0 0.0
    %376 = vmatprep.subr.mxu0 0.0
    %377 = vmatpush2.msra.mxu0 0.0
    %378 = vmatprep.subr.mxu0 0.0
    %379 = vmatpush2.msra.mxu0 0.0
    %380 = vmatprep.subr.mxu0 0.0
    %381 = vmatpush2.msra.mxu0 0.0
    %382 = vmatprep.subr.mxu0 0.0
    %383 = vmatpush2.msra.mxu0 0.0
    %384 = vmatprep.subr.mxu0 0.0
    %385 = vmatpush2.msra.mxu0 0.0
    %386 = vmatprep.subr.mxu0 0.0
    %387 = vmatpush2.msra.mxu0 0.0
    %388 = vmatprep.subr.mxu0 0.0
    %389 = vmatpush2.msra.mxu0 0.0
    %390 = vmatprep.subr.mxu0 0.0
    %391 = vmatpush2.msra.mxu0 0.0
    %392 = vmatprep.subr.mxu0 0.0
    %393 = vmatpush2.msra.mxu0 0.0
    %394 = vmatprep.subr.mxu0 0.0
    %395 = vmatpush2.msra.mxu0 0.0
    %396 = vmatprep.subr.mxu0 0.0
    %397 = vmatpush2.msra.mxu0 0.0
    %398 = vmatprep.subr.mxu0 0.0
    %399 = vmatpush2.msra.mxu0 0.0
    %400 = vmatprep.mubr.f32.mxu0 0.0
    %401 = vmatmul.mubr.f32.gmra.mxu0 %v334
    %v402 = vpop.f32.mrf.mxu0
    %v403 = vadd.f32 0.0, %v402
    %v404 = vpop.f32.mrf.mxu0
    %405 = vdwg.mxu0
    %406 = vmatprep.subr.mxu0 0.0
    %407 = vmatpush1.msra.mxu0 0.0
    %408 = vmatprep.subr.mxu0 0.0
    %409 = vmatpush1.msra.mxu0 0.0
    %410 = vmatprep.subr.mxu0 0.0
    %411 = vmatpush1.msra.mxu0 0.0
    %412 = vmatprep.subr.mxu0 0.0
    %413 = vmatpush1.msra.mxu0 0.0
    %414 = vmatprep.subr.mxu0 0.0
    %415 = vmatpush1.msra.mxu0 0.0
    %416 = vmatprep.subr.mxu0 0.0
    %417 = vmatpush1.msra.mxu0 0.0
    %418 = vmatprep.subr.mxu0 0.0
    %419 = vmatpush1.msra.mxu0 0.0
    %420 = vmatprep.subr.mxu0 0.0
    %421 = vmatpush1.msra.mxu0 0.0
    %422 = vmatprep.subr.mxu0 0.0
    %423 = vmatpush1.msra.mxu0 0.0
    %424 = vmatprep.subr.mxu0 0.0
    %425 = vmatpush1.msra.mxu0 0.0
    %426 = vmatprep.subr.mxu0 0.0
    %427 = vmatpush1.msra.mxu0 0.0
    %428 = vmatprep.subr.mxu0 0.0
    %429 = vmatpush1.msra.mxu0 0.0
    %430 = vmatprep.subr.mxu0 0.0
    %431 = vmatpush1.msra.mxu0 %v326
    %432 = vmatprep.subr.mxu0 0.0
    %433 = vmatpush1.msra.mxu0 %v325
    %434 = vmatprep.subr.mxu0 0.0
    %435 = vmatpush1.msra.mxu0 %v324
    %436 = vmatprep.subr.mxu0 0.0
    %437 = vmatpush1.msra.mxu0 %v323
    %438 = vmatprep.subr.mxu0 0.0
    %439 = vmatpush2.msra.mxu0 0.0
    %440 = vmatprep.subr.mxu0 0.0
    %441 = vmatpush2.msra.mxu0 0.0
    %442 = vmatprep.subr.mxu0 0.0
    %443 = vmatpush2.msra.mxu0 0.0
    %444 = vmatprep.subr.mxu0 0.0
    %445 = vmatpush2.msra.mxu0 0.0
    %446 = vmatprep.subr.mxu0 0.0
    %447 = vmatpush2.msra.mxu0 0.0
    %448 = vmatprep.subr.mxu0 0.0
    %449 = vmatpush2.msra.mxu0 0.0
    %450 = vmatprep.subr.mxu0 0.0
    %451 = vmatpush2.msra.mxu0 0.0
    %452 = vmatprep.subr.mxu0 0.0
    %453 = vmatpush2.msra.mxu0 0.0
    %454 = vmatprep.subr.mxu0 0.0
    %455 = vmatpush2.msra.mxu0 0.0
    %456 = vmatprep.subr.mxu0 0.0
    %457 = vmatpush2.msra.mxu0 0.0
    %458 = vmatprep.subr.mxu0 0.0
    %459 = vmatpush2.msra.mxu0 0.0
    %460 = vmatprep.subr.mxu0 0.0
    %461 = vmatpush2.msra.mxu0 0.0
    %462 = vmatprep.subr.mxu0 0.0
    %463 = vmatpush2.msra.mxu0 0.0
    %464 = vmatprep.subr.mxu0 0.0
    %465 = vmatpush2.msra.mxu0 0.0
    %466 = vmatprep.subr.mxu0 0.0
    %467 = vmatpush2.msra.mxu0 0.0
    %468 = vmatprep.subr.mxu0 0.0
    %469 = vmatpush2.msra.mxu0 0.0
    %470 = vmatprep.mubr.f32.mxu0 0.0
    %471 = vmatmul.mubr.f32.gmra.mxu0 %v334
    %v472 = vpop.f32.mrf.mxu0
    %v473 = vadd.f32 0.0, %v472
    %v474 = vpop.f32.mrf.mxu0
    %475 = vdwg.mxu0
    %v477 = vlaneseq
    %v478 = vshrl.u32 %v477, 7
    %v479 = vsub.s32 0, %v478
    %v480 = vrot.slane %v331, %v479
    %482 = vmatprep.subr.mxu0 0.0
    %483 = vmatpush1.msra.mxu0 0.0
    %484 = vmatprep.subr.mxu0 0.0
    %485 = vmatpush1.msra.mxu0 0.0
    %486 = vmatprep.subr.mxu0 0.0
    %487 = vmatpush1.msra.mxu0 0.0
    %488 = vmatprep.subr.mxu0 0.0
    %489 = vmatpush1.msra.mxu0 0.0
    %490 = vmatprep.subr.mxu0 0.0
    %491 = vmatpush1.msra.mxu0 0.0
    %492 = vmatprep.subr.mxu0 0.0
    %493 = vmatpush1.msra.mxu0 0.0
    %494 = vmatprep.subr.mxu0 0.0
    %495 = vmatpush1.msra.mxu0 0.0
    %496 = vmatprep.subr.mxu0 0.0
    %497 = vmatpush1.msra.mxu0 0.0
    %498 = vmatprep.subr.mxu0 0.0
    %499 = vmatpush1.msra.mxu0 0.0
    %500 = vmatprep.subr.mxu0 0.0
    %501 = vmatpush1.msra.mxu0 0.0
    %502 = vmatprep.subr.mxu0 0.0
    %503 = vmatpush1.msra.mxu0 0.0
    %504 = vmatprep.subr.mxu0 0.0
    %505 = vmatpush1.msra.mxu0 0.0
    %506 = vmatprep.subr.mxu0 0.0
    %507 = vmatpush1.msra.mxu0 %v330
    %508 = vmatprep.subr.mxu0 0.0
    %509 = vmatpush1.msra.mxu0 %v329
    %510 = vmatprep.subr.mxu0 0.0
    %511 = vmatpush1.msra.mxu0 %v328
    %512 = vmatprep.subr.mxu0 0.0
    %513 = vmatpush1.msra.mxu0 %v327
    %514 = vmatprep.subr.mxu0 0.0
    %515 = vmatpush2.msra.mxu0 0.0
    %516 = vmatprep.subr.mxu0 0.0
    %517 = vmatpush2.msra.mxu0 0.0
    %518 = vmatprep.subr.mxu0 0.0
    %519 = vmatpush2.msra.mxu0 0.0
    %520 = vmatprep.subr.mxu0 0.0
    %521 = vmatpush2.msra.mxu0 0.0
    %522 = vmatprep.subr.mxu0 0.0
    %523 = vmatpush2.msra.mxu0 0.0
    %524 = vmatprep.subr.mxu0 0.0
    %525 = vmatpush2.msra.mxu0 0.0
    %526 = vmatprep.subr.mxu0 0.0
    %527 = vmatpush2.msra.mxu0 0.0
    %528 = vmatprep.subr.mxu0 0.0
    %529 = vmatpush2.msra.mxu0 0.0
    %530 = vmatprep.subr.mxu0 0.0
    %531 = vmatpush2.msra.mxu0 0.0
    %532 = vmatprep.subr.mxu0 0.0
    %533 = vmatpush2.msra.mxu0 0.0
    %534 = vmatprep.subr.mxu0 0.0
    %535 = vmatpush2.msra.mxu0 0.0
    %536 = vmatprep.subr.mxu0 0.0
    %537 = vmatpush2.msra.mxu0 0.0
    %538 = vmatprep.subr.mxu0 0.0
    %539 = vmatpush2.msra.mxu0 0.0
    %540 = vmatprep.subr.mxu0 0.0
    %541 = vmatpush2.msra.mxu0 0.0
    %542 = vmatprep.subr.mxu0 0.0
    %543 = vmatpush2.msra.mxu0 0.0
    %544 = vmatprep.subr.mxu0 0.0
    %545 = vmatpush2.msra.mxu0 0.0
    %546 = vmatprep.mubr.f32.mxu0 0.0
    %547 = vmatmul.mubr.f32.gmra.mxu0 %v334
    %v548 = vpop.f32.mrf.mxu0
    %v549 = vadd.f32 %v480, %v548
    %v550 = vpop.f32.mrf.mxu0
    %551 = vdwg.mxu0
    %v552 = vadd.f32 %v149, %v403
    %v553 = vxor.u32 %v552, 2147483648
    %v554 = vmul.f32 %v553, 1.442695
    %v555 = vpow.pop %v554
    %v556 = vadd.f32 %v555, 1.0
    %v557 = vrcp.pop %v556
    %v558 = vmul.f32 1.0, %v557
    %v559 = vadd.f32 %v230, %v473
    %v560 = vxor.u32 %v559, 2147483648
    %v561 = vmul.f32 %v560, 1.442695
    %v562 = vpow.pop %v561
    %v563 = vadd.f32 %v562, 1.0
    %v564 = vrcp.pop %v563
    %v565 = vmul.f32 1.0, %v564
    %v566 = vmul.f32 %v558, %v549
    %v567 = vadd.f32 %v311, %v566
    %v568 = vtanh.pop %v567
    %v569 = vsub.f32 0.0, %v568
    %v570 = vmul.f32 %v565, %v569
    %v571 = vadd.f32 %v568, %v570
    %vm572 = vcmask 254976
    %573 = vst.msk [vmem:[#allocation2] sm:$0x3] %vm572, %v571
    %v575 = vsel %vm332, %v571, 0
    %577 = vmatprep.subr.mxu0 0.0
    %578 = vmatpush1.msra.mxu0 0.0
    %579 = vmatprep.subr.mxu0 0.0
    %580 = vmatpush1.msra.mxu0 0.0
    %581 = vmatprep.subr.mxu0 0.0
    %582 = vmatpush1.msra.mxu0 0.0
    %583 = vmatprep.subr.mxu0 0.0
    %584 = vmatpush1.msra.mxu0 0.0
    %585 = vmatprep.subr.mxu0 0.0
    %586 = vmatpush1.msra.mxu0 0.0
    %587 = vmatprep.subr.mxu0 0.0
    %588 = vmatpush1.msra.mxu0 0.0
    %589 = vmatprep.subr.mxu0 0.0
    %590 = vmatpush1.msra.mxu0 0.0
    %591 = vmatprep.subr.mxu0 0.0
    %592 = vmatpush1.msra.mxu0 0.0
    %593 = vmatprep.subr.mxu0 0.0
    %594 = vmatpush1.msra.mxu0 0.0
    %595 = vmatprep.subr.mxu0 0.0
    %596 = vmatpush1.msra.mxu0 0.0
    %597 = vmatprep.subr.mxu0 0.0
    %598 = vmatpush1.msra.mxu0 0.0
    %599 = vmatprep.subr.mxu0 0.0
    %600 = vmatpush1.msra.mxu0 0.0
    %601 = vmatprep.subr.mxu0 0.0
    %602 = vmatpush1.msra.mxu0 %v322
    %603 = vmatprep.subr.mxu0 0.0
    %604 = vmatpush1.msra.mxu0 %v321
    %605 = vmatprep.subr.mxu0 0.0
    %606 = vmatpush1.msra.mxu0 %v320
    %607 = vmatprep.subr.mxu0 0.0
    %608 = vmatpush1.msra.mxu0 %v319
    %609 = vmatprep.subr.mxu0 0.0
    %610 = vmatpush2.msra.mxu0 0.0
    %611 = vmatprep.subr.mxu0 0.0
    %612 = vmatpush2.msra.mxu0 0.0
    %613 = vmatprep.subr.mxu0 0.0
    %614 = vmatpush2.msra.mxu0 0.0
    %615 = vmatprep.subr.mxu0 0.0
    %616 = vmatpush2.msra.mxu0 0.0
    %617 = vmatprep.subr.mxu0 0.0
    %618 = vmatpush2.msra.mxu0 0.0
    %619 = vmatprep.subr.mxu0 0.0
    %620 = vmatpush2.msra.mxu0 0.0
    %621 = vmatprep.subr.mxu0 0.0
    %622 = vmatpush2.msra.mxu0 0.0
    %623 = vmatprep.subr.mxu0 0.0
    %624 = vmatpush2.msra.mxu0 0.0
    %625 = vmatprep.subr.mxu0 0.0
    %626 = vmatpush2.msra.mxu0 0.0
    %627 = vmatprep.subr.mxu0 0.0
    %628 = vmatpush2.msra.mxu0 0.0
    %629 = vmatprep.subr.mxu0 0.0
    %630 = vmatpush2.msra.mxu0 0.0
    %631 = vmatprep.subr.mxu0 0.0
    %632 = vmatpush2.msra.mxu0 0.0
    %633 = vmatprep.subr.mxu0 0.0
    %634 = vmatpush2.msra.mxu0 0.0
    %635 = vmatprep.subr.mxu0 0.0
    %636 = vmatpush2.msra.mxu0 0.0
    %637 = vmatprep.subr.mxu0 0.0
    %638 = vmatpush2.msra.mxu0 0.0
    %639 = vmatprep.subr.mxu0 0.0
    %640 = vmatpush2.msra.mxu0 0.0
    %641 = vmatprep.mubr.f32.mxu0 0.0
    %642 = vmatmul.mubr.f32.gmra.mxu0 %v575
    %v643 = vpop.f32.mrf.mxu0
    %v644 = vadd.f32 0.0, %v643
    %v645 = vpop.f32.mrf.mxu0
    %646 = vdwg.mxu0
    %647 = vmatprep.subr.mxu0 0.0
    %648 = vmatpush1.msra.mxu0 0.0
    %649 = vmatprep.subr.mxu0 0.0
    %650 = vmatpush1.msra.mxu0 0.0
    %651 = vmatprep.subr.mxu0 0.0
    %652 = vmatpush1.msra.mxu0 0.0
    %653 = vmatprep.subr.mxu0 0.0
    %654 = vmatpush1.msra.mxu0 0.0
    %655 = vmatprep.subr.mxu0 0.0
    %656 = vmatpush1.msra.mxu0 0.0
    %657 = vmatprep.subr.mxu0 0.0
    %658 = vmatpush1.msra.mxu0 0.0
    %659 = vmatprep.subr.mxu0 0.0
    %660 = vmatpush1.msra.mxu0 0.0
    %661 = vmatprep.subr.mxu0 0.0
    %662 = vmatpush1.msra.mxu0 0.0
    %663 = vmatprep.subr.mxu0 0.0
    %664 = vmatpush1.msra.mxu0 0.0
    %665 = vmatprep.subr.mxu0 0.0
    %666 = vmatpush1.msra.mxu0 0.0
    %667 = vmatprep.subr.mxu0 0.0
    %668 = vmatpush1.msra.mxu0 0.0
    %669 = vmatprep.subr.mxu0 0.0
    %670 = vmatpush1.msra.mxu0 0.0
    %671 = vmatprep.subr.mxu0 0.0
    %672 = vmatpush1.msra.mxu0 %v326
    %673 = vmatprep.subr.mxu0 0.0
    %674 = vmatpush1.msra.mxu0 %v325
    %675 = vmatprep.subr.mxu0 0.0
    %676 = vmatpush1.msra.mxu0 %v324
    %677 = vmatprep.subr.mxu0 0.0
    %678 = vmatpush1.msra.mxu0 %v323
    %679 = vmatprep.subr.mxu0 0.0
    %680 = vmatpush2.msra.mxu0 0.0
    %681 = vmatprep.subr.mxu0 0.0
    %682 = vmatpush2.msra.mxu0 0.0
    %683 = vmatprep.subr.mxu0 0.0
    %684 = vmatpush2.msra.mxu0 0.0
    %685 = vmatprep.subr.mxu0 0.0
    %686 = vmatpush2.msra.mxu0 0.0
    %687 = vmatprep.subr.mxu0 0.0
    %688 = vmatpush2.msra.mxu0 0.0
    %689 = vmatprep.subr.mxu0 0.0
    %690 = vmatpush2.msra.mxu0 0.0
    %691 = vmatprep.subr.mxu0 0.0
    %692 = vmatpush2.msra.mxu0 0.0
    %693 = vmatprep.subr.mxu0 0.0
    %694 = vmatpush2.msra.mxu0 0.0
    %695 = vmatprep.subr.mxu0 0.0
    %696 = vmatpush2.msra.mxu0 0.0
    %697 = vmatprep.subr.mxu0 0.0
    %698 = vmatpush2.msra.mxu0 0.0
    %699 = vmatprep.subr.mxu0 0.0
    %700 = vmatpush2.msra.mxu0 0.0
    %701 = vmatprep.subr.mxu0 0.0
    %702 = vmatpush2.msra.mxu0 0.0
    %703 = vmatprep.subr.mxu0 0.0
    %704 = vmatpush2.msra.mxu0 0.0
    %705 = vmatprep.subr.mxu0 0.0
    %706 = vmatpush2.msra.mxu0 0.0
    %707 = vmatprep.subr.mxu0 0.0
    %708 = vmatpush2.msra.mxu0 0.0
    %709 = vmatprep.subr.mxu0 0.0
    %710 = vmatpush2.msra.mxu0 0.0
    %711 = vmatprep.mubr.f32.mxu0 0.0
    %712 = vmatmul.mubr.f32.gmra.mxu0 %v575
    %v713 = vpop.f32.mrf.mxu0
    %v714 = vadd.f32 0.0, %v713
    %v715 = vpop.f32.mrf.mxu0
    %716 = vdwg.mxu0
    %717 = vmatprep.subr.mxu0 0.0
    %718 = vmatpush1.msra.mxu0 0.0
    %719 = vmatprep.subr.mxu0 0.0
    %720 = vmatpush1.msra.mxu0 0.0
    %721 = vmatprep.subr.mxu0 0.0
    %722 = vmatpush1.msra.mxu0 0.0
    %723 = vmatprep.subr.mxu0 0.0
    %724 = vmatpush1.msra.mxu0 0.0
    %725 = vmatprep.subr.mxu0 0.0
    %726 = vmatpush1.msra.mxu0 0.0
    %727 = vmatprep.subr.mxu0 0.0
    %728 = vmatpush1.msra.mxu0 0.0
    %729 = vmatprep.subr.mxu0 0.0
    %730 = vmatpush1.msra.mxu0 0.0
    %731 = vmatprep.subr.mxu0 0.0
    %732 = vmatpush1.msra.mxu0 0.0
    %733 = vmatprep.subr.mxu0 0.0
    %734 = vmatpush1.msra.mxu0 0.0
    %735 = vmatprep.subr.mxu0 0.0
    %736 = vmatpush1.msra.mxu0 0.0
    %737 = vmatprep.subr.mxu0 0.0
    %738 = vmatpush1.msra.mxu0 0.0
    %739 = vmatprep.subr.mxu0 0.0
    %740 = vmatpush1.msra.mxu0 0.0
    %741 = vmatprep.subr.mxu0 0.0
    %742 = vmatpush1.msra.mxu0 %v330
    %743 = vmatprep.subr.mxu0 0.0
    %744 = vmatpush1.msra.mxu0 %v329
    %745 = vmatprep.subr.mxu0 0.0
    %746 = vmatpush1.msra.mxu0 %v328
    %747 = vmatprep.subr.mxu0 0.0
    %748 = vmatpush1.msra.mxu0 %v327
    %749 = vmatprep.subr.mxu0 0.0
    %750 = vmatpush2.msra.mxu0 0.0
    %751 = vmatprep.subr.mxu0 0.0
    %752 = vmatpush2.msra.mxu0 0.0
    %753 = vmatprep.subr.mxu0 0.0
    %754 = vmatpush2.msra.mxu0 0.0
    %755 = vmatprep.subr.mxu0 0.0
    %756 = vmatpush2.msra.mxu0 0.0
    %757 = vmatprep.subr.mxu0 0.0
    %758 = vmatpush2.msra.mxu0 0.0
    %759 = vmatprep.subr.mxu0 0.0
    %760 = vmatpush2.msra.mxu0 0.0
    %761 = vmatprep.subr.mxu0 0.0
    %762 = vmatpush2.msra.mxu0 0.0
    %763 = vmatprep.subr.mxu0 0.0
    %764 = vmatpush2.msra.mxu0 0.0
    %765 = vmatprep.subr.mxu0 0.0
    %766 = vmatpush2.msra.mxu0 0.0
    %767 = vmatprep.subr.mxu0 0.0
    %768 = vmatpush2.msra.mxu0 0.0
    %769 = vmatprep.subr.mxu0 0.0
    %770 = vmatpush2.msra.mxu0 0.0
    %771 = vmatprep.subr.mxu0 0.0
    %772 = vmatpush2.msra.mxu0 0.0
    %773 = vmatprep.subr.mxu0 0.0
    %774 = vmatpush2.msra.mxu0 0.0
    %775 = vmatprep.subr.mxu0 0.0
    %776 = vmatpush2.msra.mxu0 0.0
    %777 = vmatprep.subr.mxu0 0.0
    %778 = vmatpush2.msra.mxu0 0.0
    %779 = vmatprep.subr.mxu0 0.0
    %780 = vmatpush2.msra.mxu0 0.0
    %781 = vmatprep.mubr.f32.mxu0 0.0
    %782 = vmatmul.mubr.f32.gmra.mxu0 %v575
    %v783 = vpop.f32.mrf.mxu0
    %v784 = vadd.f32 %v480, %v783
    %v785 = vpop.f32.mrf.mxu0
    %786 = vdwg.mxu0
    %v788 = vrot.slane %v644, 6
    %v790 = vadd.f32 %v149, %v788
    %v791 = vxor.u32 %v790, 2147483648
    %v792 = vmul.f32 %v791, 1.442695
    %v793 = vpow.pop %v792
    %v794 = vadd.f32 %v793, 1.0
    %v795 = vrcp.pop %v794
    %v796 = vmul.f32 1.0, %v795
    %v798 = vrot.slane %v714, 6
    %v800 = vadd.f32 %v230, %v798
    %v801 = vxor.u32 %v800, 2147483648
    %v802 = vmul.f32 %v801, 1.442695
    %v803 = vpow.pop %v802
    %v804 = vadd.f32 %v803, 1.0
    %v805 = vrcp.pop %v804
    %v806 = vmul.f32 1.0, %v805
    %v808 = vrot.slane %v784, 6
    %v810 = vmul.f32 %v796, %v808
    %v811 = vadd.f32 %v311, %v810
    %v812 = vtanh.pop %v811
    %v814 = vrot.slane %v812, 2
    %v816 = vsub.f32 %v571, %v814
    %v818 = vrot.slane %v816, 6
    %v820 = vmul.f32 %v806, %v818
    %v821 = vadd.f32 %v812, %v820
    %vm822 = vcmask 257026
    %823 = vst.msk [vmem:[#allocation2] sm:$0xc] %vm822, %v821
    %v825 = vrot.slane %v821, 2
    %v826 = vsel %vm332, %v825, 0
    %828 = vmatprep.subr.mxu0 0.0
    %829 = vmatpush1.msra.mxu0 0.0
    %830 = vmatprep.subr.mxu0 0.0
    %831 = vmatpush1.msra.mxu0 0.0
    %832 = vmatprep.subr.mxu0 0.0
    %833 = vmatpush1.msra.mxu0 0.0
    %834 = vmatprep.subr.mxu0 0.0
    %835 = vmatpush1.msra.mxu0 0.0
    %836 = vmatprep.subr.mxu0 0.0
    %837 = vmatpush1.msra.mxu0 0.0
    %838 = vmatprep.subr.mxu0 0.0
    %839 = vmatpush1.msra.mxu0 0.0
    %840 = vmatprep.subr.mxu0 0.0
    %841 = vmatpush1.msra.mxu0 0.0
    %842 = vmatprep.subr.mxu0 0.0
    %843 = vmatpush1.msra.mxu0 0.0
    %844 = vmatprep.subr.mxu0 0.0
    %845 = vmatpush1.msra.mxu0 0.0
    %846 = vmatprep.subr.mxu0 0.0
    %847 = vmatpush1.msra.mxu0 0.0
    %848 = vmatprep.subr.mxu0 0.0
    %849 = vmatpush1.msra.mxu0 0.0
    %850 = vmatprep.subr.mxu0 0.0
    %851 = vmatpush1.msra.mxu0 0.0
    %852 = vmatprep.subr.mxu0 0.0
    %853 = vmatpush1.msra.mxu0 %v322
    %854 = vmatprep.subr.mxu0 0.0
    %855 = vmatpush1.msra.mxu0 %v321
    %856 = vmatprep.subr.mxu0 0.0
    %857 = vmatpush1.msra.mxu0 %v320
    %858 = vmatprep.subr.mxu0 0.0
    %859 = vmatpush1.msra.mxu0 %v319
    %860 = vmatprep.subr.mxu0 0.0
    %861 = vmatpush2.msra.mxu0 0.0
    %862 = vmatprep.subr.mxu0 0.0
    %863 = vmatpush2.msra.mxu0 0.0
    %864 = vmatprep.subr.mxu0 0.0
    %865 = vmatpush2.msra.mxu0 0.0
    %866 = vmatprep.subr.mxu0 0.0
    %867 = vmatpush2.msra.mxu0 0.0
    %868 = vmatprep.subr.mxu0 0.0
    %869 = vmatpush2.msra.mxu0 0.0
    %870 = vmatprep.subr.mxu0 0.0
    %871 = vmatpush2.msra.mxu0 0.0
    %872 = vmatprep.subr.mxu0 0.0
    %873 = vmatpush2.msra.mxu0 0.0
    %874 = vmatprep.subr.mxu0 0.0
    %875 = vmatpush2.msra.mxu0 0.0
    %876 = vmatprep.subr.mxu0 0.0
    %877 = vmatpush2.msra.mxu0 0.0
    %878 = vmatprep.subr.mxu0 0.0
    %879 = vmatpush2.msra.mxu0 0.0
    %880 = vmatprep.subr.mxu0 0.0
    %881 = vmatpush2.msra.mxu0 0.0
    %882 = vmatprep.subr.mxu0 0.0
    %883 = vmatpush2.msra.mxu0 0.0
    %884 = vmatprep.subr.mxu0 0.0
    %885 = vmatpush2.msra.mxu0 0.0
    %886 = vmatprep.subr.mxu0 0.0
    %887 = vmatpush2.msra.mxu0 0.0
    %888 = vmatprep.subr.mxu0 0.0
    %889 = vmatpush2.msra.mxu0 0.0
    %890 = vmatprep.subr.mxu0 0.0
    %891 = vmatpush2.msra.mxu0 0.0
    %892 = vmatprep.mubr.f32.mxu0 0.0
    %893 = vmatmul.mubr.f32.gmra.mxu0 %v826
    %v894 = vpop.f32.mrf.mxu0
    %v895 = vadd.f32 0.0, %v894
    %v896 = vpop.f32.mrf.mxu0
    %897 = vdwg.mxu0
    %898 = vmatprep.subr.mxu0 0.0
    %899 = vmatpush1.msra.mxu0 0.0
    %900 = vmatprep.subr.mxu0 0.0
    %901 = vmatpush1.msra.mxu0 0.0
    %902 = vmatprep.subr.mxu0 0.0
    %903 = vmatpush1.msra.mxu0 0.0
    %904 = vmatprep.subr.mxu0 0.0
    %905 = vmatpush1.msra.mxu0 0.0
    %906 = vmatprep.subr.mxu0 0.0
    %907 = vmatpush1.msra.mxu0 0.0
    %908 = vmatprep.subr.mxu0 0.0
    %909 = vmatpush1.msra.mxu0 0.0
    %910 = vmatprep.subr.mxu0 0.0
    %911 = vmatpush1.msra.mxu0 0.0
    %912 = vmatprep.subr.mxu0 0.0
    %913 = vmatpush1.msra.mxu0 0.0
    %914 = vmatprep.subr.mxu0 0.0
    %915 = vmatpush1.msra.mxu0 0.0
    %916 = vmatprep.subr.mxu0 0.0
    %917 = vmatpush1.msra.mxu0 0.0
    %918 = vmatprep.subr.mxu0 0.0
    %919 = vmatpush1.msra.mxu0 0.0
    %920 = vmatprep.subr.mxu0 0.0
    %921 = vmatpush1.msra.mxu0 0.0
    %922 = vmatprep.subr.mxu0 0.0
    %923 = vmatpush1.msra.mxu0 %v326
    %924 = vmatprep.subr.mxu0 0.0
    %925 = vmatpush1.msra.mxu0 %v325
    %926 = vmatprep.subr.mxu0 0.0
    %927 = vmatpush1.msra.mxu0 %v324
    %928 = vmatprep.subr.mxu0 0.0
    %929 = vmatpush1.msra.mxu0 %v323
    %930 = vmatprep.subr.mxu0 0.0
    %931 = vmatpush2.msra.mxu0 0.0
    %932 = vmatprep.subr.mxu0 0.0
    %933 = vmatpush2.msra.mxu0 0.0
    %934 = vmatprep.subr.mxu0 0.0
    %935 = vmatpush2.msra.mxu0 0.0
    %936 = vmatprep.subr.mxu0 0.0
    %937 = vmatpush2.msra.mxu0 0.0
    %938 = vmatprep.subr.mxu0 0.0
    %939 = vmatpush2.msra.mxu0 0.0
    %940 = vmatprep.subr.mxu0 0.0
    %941 = vmatpush2.msra.mxu0 0.0
    %942 = vmatprep.subr.mxu0 0.0
    %943 = vmatpush2.msra.mxu0 0.0
    %944 = vmatprep.subr.mxu0 0.0
    %945 = vmatpush2.msra.mxu0 0.0
    %946 = vmatprep.subr.mxu0 0.0
    %947 = vmatpush2.msra.mxu0 0.0
    %948 = vmatprep.subr.mxu0 0.0
    %949 = vmatpush2.msra.mxu0 0.0
    %950 = vmatprep.subr.mxu0 0.0
    %951 = vmatpush2.msra.mxu0 0.0
    %952 = vmatprep.subr.mxu0 0.0
    %953 = vmatpush2.msra.mxu0 0.0
    %954 = vmatprep.subr.mxu0 0.0
    %955 = vmatpush2.msra.mxu0 0.0
    %956 = vmatprep.subr.mxu0 0.0
    %957 = vmatpush2.msra.mxu0 0.0
    %958 = vmatprep.subr.mxu0 0.0
    %959 = vmatpush2.msra.mxu0 0.0
    %960 = vmatprep.subr.mxu0 0.0
    %961 = vmatpush2.msra.mxu0 0.0
    %962 = vmatprep.mubr.f32.mxu0 0.0
    %963 = vmatmul.mubr.f32.gmra.mxu0 %v826
    %v964 = vpop.f32.mrf.mxu0
    %v965 = vadd.f32 0.0, %v964
    %v966 = vpop.f32.mrf.mxu0
    %967 = vdwg.mxu0
    %968 = vmatprep.subr.mxu0 0.0
    %969 = vmatpush1.msra.mxu0 0.0
    %970 = vmatprep.subr.mxu0 0.0
    %971 = vmatpush1.msra.mxu0 0.0
    %972 = vmatprep.subr.mxu0 0.0
    %973 = vmatpush1.msra.mxu0 0.0
    %974 = vmatprep.subr.mxu0 0.0
    %975 = vmatpush1.msra.mxu0 0.0
    %976 = vmatprep.subr.mxu0 0.0
    %977 = vmatpush1.msra.mxu0 0.0
    %978 = vmatprep.subr.mxu0 0.0
    %979 = vmatpush1.msra.mxu0 0.0
    %980 = vmatprep.subr.mxu0 0.0
    %981 = vmatpush1.msra.mxu0 0.0
    %982 = vmatprep.subr.mxu0 0.0
    %983 = vmatpush1.msra.mxu0 0.0
    %984 = vmatprep.subr.mxu0 0.0
    %985 = vmatpush1.msra.mxu0 0.0
    %986 = vmatprep.subr.mxu0 0.0
    %987 = vmatpush1.msra.mxu0 0.0
    %988 = vmatprep.subr.mxu0 0.0
    %989 = vmatpush1.msra.mxu0 0.0
    %990 = vmatprep.subr.mxu0 0.0
    %991 = vmatpush1.msra.mxu0 0.0
    %992 = vmatprep.subr.mxu0 0.0
    %993 = vmatpush1.msra.mxu0 %v330
    %994 = vmatprep.subr.mxu0 0.0
    %995 = vmatpush1.msra.mxu0 %v329
    %996 = vmatprep.subr.mxu0 0.0
    %997 = vmatpush1.msra.mxu0 %v328
    %998 = vmatprep.subr.mxu0 0.0
    %999 = vmatpush1.msra.mxu0 %v327
    %1000 = vmatprep.subr.mxu0 0.0
    %1001 = vmatpush2.msra.mxu0 0.0
    %1002 = vmatprep.subr.mxu0 0.0
    %1003 = vmatpush2.msra.mxu0 0.0
    %1004 = vmatprep.subr.mxu0 0.0
    %1005 = vmatpush2.msra.mxu0 0.0
    %1006 = vmatprep.subr.mxu0 0.0
    %1007 = vmatpush2.msra.mxu0 0.0
    %1008 = vmatprep.subr.mxu0 0.0
    %1009 = vmatpush2.msra.mxu0 0.0
    %1010 = vmatprep.subr.mxu0 0.0
    %1011 = vmatpush2.msra.mxu0 0.0
    %1012 = vmatprep.subr.mxu0 0.0
    %1013 = vmatpush2.msra.mxu0 0.0
    %1014 = vmatprep.subr.mxu0 0.0
    %1015 = vmatpush2.msra.mxu0 0.0
    %1016 = vmatprep.subr.mxu0 0.0
    %1017 = vmatpush2.msra.mxu0 0.0
    %1018 = vmatprep.subr.mxu0 0.0
    %1019 = vmatpush2.msra.mxu0 0.0
    %1020 = vmatprep.subr.mxu0 0.0
    %1021 = vmatpush2.msra.mxu0 0.0
    %1022 = vmatprep.subr.mxu0 0.0
    %1023 = vmatpush2.msra.mxu0 0.0
    %1024 = vmatprep.subr.mxu0 0.0
    %1025 = vmatpush2.msra.mxu0 0.0
    %1026 = vmatprep.subr.mxu0 0.0
    %1027 = vmatpush2.msra.mxu0 0.0
    %1028 = vmatprep.subr.mxu0 0.0
    %1029 = vmatpush2.msra.mxu0 0.0
    %1030 = vmatprep.subr.mxu0 0.0
    %1031 = vmatpush2.msra.mxu0 0.0
    %1032 = vmatprep.mubr.f32.mxu0 0.0
    %1033 = vmatmul.mubr.f32.gmra.mxu0 %v826
    %v1034 = vpop.f32.mrf.mxu0
    %v1035 = vadd.f32 %v480, %v1034
    %v1036 = vpop.f32.mrf.mxu0
    %1037 = vdwg.mxu0
    %v1039 = vrot.slane %v895, 4
    %v1041 = vadd.f32 %v149, %v1039
    %v1042 = vxor.u32 %v1041, 2147483648
    %v1043 = vmul.f32 %v1042, 1.442695
    %v1044 = vpow.pop %v1043
    %v1045 = vadd.f32 %v1044, 1.0
    %v1046 = vrcp.pop %v1045
    %v1047 = vmul.f32 1.0, %v1046
    %v1049 = vrot.slane %v965, 4
    %v1051 = vadd.f32 %v230, %v1049
    %v1052 = vxor.u32 %v1051, 2147483648
    %v1053 = vmul.f32 %v1052, 1.442695
    %v1054 = vpow.pop %v1053
    %v1055 = vadd.f32 %v1054, 1.0
    %v1056 = vrcp.pop %v1055
    %v1057 = vmul.f32 1.0, %v1056
    %v1059 = vrot.slane %v1035, 4
    %v1061 = vmul.f32 %v1047, %v1059
    %v1062 = vadd.f32 %v311, %v1061
    %v1063 = vtanh.pop %v1062
    %v1065 = vrot.slane %v1063, 2
    %v1067 = vsub.f32 %v821, %v1065
    %v1069 = vrot.slane %v1067, 6
    %v1071 = vmul.f32 %v1057, %v1069
    %v1072 = vadd.f32 %v1063, %v1071
    %vm1073 = vcmask 259076
    %1074 = vst.msk [vmem:[#allocation2] sm:$0x30] %vm1073, %v1072
    %v1076 = vrot.slane %v1072, 4
    %v1077 = vsel %vm332, %v1076, 0
    %1079 = vmatprep.subr.mxu0 0.0
    %1080 = vmatpush1.msra.mxu0 0.0
    %1081 = vmatprep.subr.mxu0 0.0
    %1082 = vmatpush1.msra.mxu0 0.0
    %1083 = vmatprep.subr.mxu0 0.0
    %1084 = vmatpush1.msra.mxu0 0.0
    %1085 = vmatprep.subr.mxu0 0.0
    %1086 = vmatpush1.msra.mxu0 0.0
    %1087 = vmatprep.subr.mxu0 0.0
    %1088 = vmatpush1.msra.mxu0 0.0
    %1089 = vmatprep.subr.mxu0 0.0
    %1090 = vmatpush1.msra.mxu0 0.0
    %1091 = vmatprep.subr.mxu0 0.0
    %1092 = vmatpush1.msra.mxu0 0.0
    %1093 = vmatprep.subr.mxu0 0.0
    %1094 = vmatpush1.msra.mxu0 0.0
    %1095 = vmatprep.subr.mxu0 0.0
    %1096 = vmatpush1.msra.mxu0 0.0
    %1097 = vmatprep.subr.mxu0 0.0
    %1098 = vmatpush1.msra.mxu0 0.0
    %1099 = vmatprep.subr.mxu0 0.0
    %1100 = vmatpush1.msra.mxu0 0.0
    %1101 = vmatprep.subr.mxu0 0.0
    %1102 = vmatpush1.msra.mxu0 0.0
    %1103 = vmatprep.subr.mxu0 0.0
    %1104 = vmatpush1.msra.mxu0 %v322
    %1105 = vmatprep.subr.mxu0 0.0
    %1106 = vmatpush1.msra.mxu0 %v321
    %1107 = vmatprep.subr.mxu0 0.0
    %1108 = vmatpush1.msra.mxu0 %v320
    %1109 = vmatprep.subr.mxu0 0.0
    %1110 = vmatpush1.msra.mxu0 %v319
    %1111 = vmatprep.subr.mxu0 0.0
    %1112 = vmatpush2.msra.mxu0 0.0
    %1113 = vmatprep.subr.mxu0 0.0
    %1114 = vmatpush2.msra.mxu0 0.0
    %1115 = vmatprep.subr.mxu0 0.0
    %1116 = vmatpush2.msra.mxu0 0.0
    %1117 = vmatprep.subr.mxu0 0.0
    %1118 = vmatpush2.msra.mxu0 0.0
    %1119 = vmatprep.subr.mxu0 0.0
    %1120 = vmatpush2.msra.mxu0 0.0
    %1121 = vmatprep.subr.mxu0 0.0
    %1122 = vmatpush2.msra.mxu0 0.0
    %1123 = vmatprep.subr.mxu0 0.0
    %1124 = vmatpush2.msra.mxu0 0.0
    %1125 = vmatprep.subr.mxu0 0.0
    %1126 = vmatpush2.msra.mxu0 0.0
    %1127 = vmatprep.subr.mxu0 0.0
    %1128 = vmatpush2.msra.mxu0 0.0
    %1129 = vmatprep.subr.mxu0 0.0
    %1130 = vmatpush2.msra.mxu0 0.0
    %1131 = vmatprep.subr.mxu0 0.0
    %1132 = vmatpush2.msra.mxu0 0.0
    %1133 = vmatprep.subr.mxu0 0.0
    %1134 = vmatpush2.msra.mxu0 0.0
    %1135 = vmatprep.subr.mxu0 0.0
    %1136 = vmatpush2.msra.mxu0 0.0
    %1137 = vmatprep.subr.mxu0 0.0
    %1138 = vmatpush2.msra.mxu0 0.0
    %1139 = vmatprep.subr.mxu0 0.0
    %1140 = vmatpush2.msra.mxu0 0.0
    %1141 = vmatprep.subr.mxu0 0.0
    %1142 = vmatpush2.msra.mxu0 0.0
    %1143 = vmatprep.mubr.f32.mxu0 0.0
    %1144 = vmatmul.mubr.f32.gmra.mxu0 %v1077
    %v1145 = vpop.f32.mrf.mxu0
    %v1146 = vadd.f32 0.0, %v1145
    %v1147 = vpop.f32.mrf.mxu0
    %1148 = vdwg.mxu0
    %1149 = vmatprep.subr.mxu0 0.0
    %1150 = vmatpush1.msra.mxu0 0.0
    %1151 = vmatprep.subr.mxu0 0.0
    %1152 = vmatpush1.msra.mxu0 0.0
    %1153 = vmatprep.subr.mxu0 0.0
    %1154 = vmatpush1.msra.mxu0 0.0
    %1155 = vmatprep.subr.mxu0 0.0
    %1156 = vmatpush1.msra.mxu0 0.0
    %1157 = vmatprep.subr.mxu0 0.0
    %1158 = vmatpush1.msra.mxu0 0.0
    %1159 = vmatprep.subr.mxu0 0.0
    %1160 = vmatpush1.msra.mxu0 0.0
    %1161 = vmatprep.subr.mxu0 0.0
    %1162 = vmatpush1.msra.mxu0 0.0
    %1163 = vmatprep.subr.mxu0 0.0
    %1164 = vmatpush1.msra.mxu0 0.0
    %1165 = vmatprep.subr.mxu0 0.0
    %1166 = vmatpush1.msra.mxu0 0.0
    %1167 = vmatprep.subr.mxu0 0.0
    %1168 = vmatpush1.msra.mxu0 0.0
    %1169 = vmatprep.subr.mxu0 0.0
    %1170 = vmatpush1.msra.mxu0 0.0
    %1171 = vmatprep.subr.mxu0 0.0
    %1172 = vmatpush1.msra.mxu0 0.0
    %1173 = vmatprep.subr.mxu0 0.0
    %1174 = vmatpush1.msra.mxu0 %v326
    %1175 = vmatprep.subr.mxu0 0.0
    %1176 = vmatpush1.msra.mxu0 %v325
    %1177 = vmatprep.subr.mxu0 0.0
    %1178 = vmatpush1.msra.mxu0 %v324
    %1179 = vmatprep.subr.mxu0 0.0
    %1180 = vmatpush1.msra.mxu0 %v323
    %1181 = vmatprep.subr.mxu0 0.0
    %1182 = vmatpush2.msra.mxu0 0.0
    %1183 = vmatprep.subr.mxu0 0.0
    %1184 = vmatpush2.msra.mxu0 0.0
    %1185 = vmatprep.subr.mxu0 0.0
    %1186 = vmatpush2.msra.mxu0 0.0
    %1187 = vmatprep.subr.mxu0 0.0
    %1188 = vmatpush2.msra.mxu0 0.0
    %1189 = vmatprep.subr.mxu0 0.0
    %1190 = vmatpush2.msra.mxu0 0.0
    %1191 = vmatprep.subr.mxu0 0.0
    %1192 = vmatpush2.msra.mxu0 0.0
    %1193 = vmatprep.subr.mxu0 0.0
    %1194 = vmatpush2.msra.mxu0 0.0
    %1195 = vmatprep.subr.mxu0 0.0
    %1196 = vmatpush2.msra.mxu0 0.0
    %1197 = vmatprep.subr.mxu0 0.0
    %1198 = vmatpush2.msra.mxu0 0.0
    %1199 = vmatprep.subr.mxu0 0.0
    %1200 = vmatpush2.msra.mxu0 0.0
    %1201 = vmatprep.subr.mxu0 0.0
    %1202 = vmatpush2.msra.mxu0 0.0
    %1203 = vmatprep.subr.mxu0 0.0
    %1204 = vmatpush2.msra.mxu0 0.0
    %1205 = vmatprep.subr.mxu0 0.0
    %1206 = vmatpush2.msra.mxu0 0.0
    %1207 = vmatprep.subr.mxu0 0.0
    %1208 = vmatpush2.msra.mxu0 0.0
    %1209 = vmatprep.subr.mxu0 0.0
    %1210 = vmatpush2.msra.mxu0 0.0
    %1211 = vmatprep.subr.mxu0 0.0
    %1212 = vmatpush2.msra.mxu0 0.0
    %1213 = vmatprep.mubr.f32.mxu0 0.0
    %1214 = vmatmul.mubr.f32.gmra.mxu0 %v1077
    %v1215 = vpop.f32.mrf.mxu0
    %v1216 = vadd.f32 0.0, %v1215
    %v1217 = vpop.f32.mrf.mxu0
    %1218 = vdwg.mxu0
    %1219 = vmatprep.subr.mxu0 0.0
    %1220 = vmatpush1.msra.mxu0 0.0
    %1221 = vmatprep.subr.mxu0 0.0
    %1222 = vmatpush1.msra.mxu0 0.0
    %1223 = vmatprep.subr.mxu0 0.0
    %1224 = vmatpush1.msra.mxu0 0.0
    %1225 = vmatprep.subr.mxu0 0.0
    %1226 = vmatpush1.msra.mxu0 0.0
    %1227 = vmatprep.subr.mxu0 0.0
    %1228 = vmatpush1.msra.mxu0 0.0
    %1229 = vmatprep.subr.mxu0 0.0
    %1230 = vmatpush1.msra.mxu0 0.0
    %1231 = vmatprep.subr.mxu0 0.0
    %1232 = vmatpush1.msra.mxu0 0.0
    %1233 = vmatprep.subr.mxu0 0.0
    %1234 = vmatpush1.msra.mxu0 0.0
    %1235 = vmatprep.subr.mxu0 0.0
    %1236 = vmatpush1.msra.mxu0 0.0
    %1237 = vmatprep.subr.mxu0 0.0
    %1238 = vmatpush1.msra.mxu0 0.0
    %1239 = vmatprep.subr.mxu0 0.0
    %1240 = vmatpush1.msra.mxu0 0.0
    %1241 = vmatprep.subr.mxu0 0.0
    %1242 = vmatpush1.msra.mxu0 0.0
    %1243 = vmatprep.subr.mxu0 0.0
    %1244 = vmatpush1.msra.mxu0 %v330
    %1245 = vmatprep.subr.mxu0 0.0
    %1246 = vmatpush1.msra.mxu0 %v329
    %1247 = vmatprep.subr.mxu0 0.0
    %1248 = vmatpush1.msra.mxu0 %v328
    %1249 = vmatprep.subr.mxu0 0.0
    %1250 = vmatpush1.msra.mxu0 %v327
    %1251 = vmatprep.subr.mxu0 0.0
    %1252 = vmatpush2.msra.mxu0 0.0
    %1253 = vmatprep.subr.mxu0 0.0
    %1254 = vmatpush2.msra.mxu0 0.0
    %1255 = vmatprep.subr.mxu0 0.0
    %1256 = vmatpush2.msra.mxu0 0.0
    %1257 = vmatprep.subr.mxu0 0.0
    %1258 = vmatpush2.msra.mxu0 0.0
    %1259 = vmatprep.subr.mxu0 0.0
    %1260 = vmatpush2.msra.mxu0 0.0
    %1261 = vmatprep.subr.mxu0 0.0
    %1262 = vmatpush2.msra.mxu0 0.0
    %1263 = vmatprep.subr.mxu0 0.0
    %1264 = vmatpush2.msra.mxu0 0.0
    %1265 = vmatprep.subr.mxu0 0.0
    %1266 = vmatpush2.msra.mxu0 0.0
    %1267 = vmatprep.subr.mxu0 0.0
    %1268 = vmatpush2.msra.mxu0 0.0
    %1269 = vmatprep.subr.mxu0 0.0
    %1270 = vmatpush2.msra.mxu0 0.0
    %1271 = vmatprep.subr.mxu0 0.0
    %1272 = vmatpush2.msra.mxu0 0.0
    %1273 = vmatprep.subr.mxu0 0.0
    %1274 = vmatpush2.msra.mxu0 0.0
    %1275 = vmatprep.subr.mxu0 0.0
    %1276 = vmatpush2.msra.mxu0 0.0
    %1277 = vmatprep.subr.mxu0 0.0
    %1278 = vmatpush2.msra.mxu0 0.0
    %1279 = vmatprep.subr.mxu0 0.0
    %1280 = vmatpush2.msra.mxu0 0.0
    %1281 = vmatprep.subr.mxu0 0.0
    %1282 = vmatpush2.msra.mxu0 0.0
    %1283 = vmatprep.mubr.f32.mxu0 0.0
    %1284 = vmatmul.mubr.f32.gmra.mxu0 %v1077
    %v1285 = vpop.f32.mrf.mxu0
    %v1286 = vadd.f32 %v480, %v1285
    %v1287 = vpop.f32.mrf.mxu0
    %1288 = vdwg.mxu0
    %v1290 = vrot.slane %v1146, 2
    %v1292 = vadd.f32 %v149, %v1290
    %v1293 = vxor.u32 %v1292, 2147483648
    %v1294 = vmul.f32 %v1293, 1.442695
    %v1295 = vpow.pop %v1294
    %v1296 = vadd.f32 %v1295, 1.0
    %v1297 = vrcp.pop %v1296
    %v1298 = vmul.f32 1.0, %v1297
    %v1300 = vrot.slane %v1216, 2
    %v1302 = vadd.f32 %v230, %v1300
    %v1303 = vxor.u32 %v1302, 2147483648
    %v1304 = vmul.f32 %v1303, 1.442695
    %v1305 = vpow.pop %v1304
    %v1306 = vadd.f32 %v1305, 1.0
    %v1307 = vrcp.pop %v1306
    %v1308 = vmul.f32 1.0, %v1307
    %v1310 = vrot.slane %v1286, 2
    %v1312 = vmul.f32 %v1298, %v1310
    %v1313 = vadd.f32 %v311, %v1312
    %v1314 = vtanh.pop %v1313
    %v1316 = vrot.slane %v1314, 2
    %v1318 = vsub.f32 %v1072, %v1316
    %v1320 = vrot.slane %v1318, 6
    %v1322 = vmul.f32 %v1308, %v1320
    %v1323 = vadd.f32 %v1314, %v1322
    %vm1324 = vcmask 261126
    %1325 = vst.msk [vmem:[#allocation2] sm:$0xc0] %vm1324, %v1323
    %v1327 = vrot.slane %v1323, 6
    %v1328 = vsel %vm332, %v1327, 0
    %1330 = vmatprep.subr.mxu0 0.0
    %1331 = vmatpush1.msra.mxu0 0.0
    %1332 = vmatprep.subr.mxu0 0.0
    %1333 = vmatpush1.msra.mxu0 0.0
    %1334 = vmatprep.subr.mxu0 0.0
    %1335 = vmatpush1.msra.mxu0 0.0
    %1336 = vmatprep.subr.mxu0 0.0
    %1337 = vmatpush1.msra.mxu0 0.0
    %1338 = vmatprep.subr.mxu0 0.0
    %1339 = vmatpush1.msra.mxu0 0.0
    %1340 = vmatprep.subr.mxu0 0.0
    %1341 = vmatpush1.msra.mxu0 0.0
    %1342 = vmatprep.subr.mxu0 0.0
    %1343 = vmatpush1.msra.mxu0 0.0
    %1344 = vmatprep.subr.mxu0 0.0
    %1345 = vmatpush1.msra.mxu0 0.0
    %1346 = vmatprep.subr.mxu0 0.0
    %1347 = vmatpush1.msra.mxu0 0.0
    %1348 = vmatprep.subr.mxu0 0.0
    %1349 = vmatpush1.msra.mxu0 0.0
    %1350 = vmatprep.subr.mxu0 0.0
    %1351 = vmatpush1.msra.mxu0 0.0
    %1352 = vmatprep.subr.mxu0 0.0
    %1353 = vmatpush1.msra.mxu0 0.0
    %1354 = vmatprep.subr.mxu0 0.0
    %1355 = vmatpush1.msra.mxu0 %v322
    %1356 = vmatprep.subr.mxu0 0.0
    %1357 = vmatpush1.msra.mxu0 %v321
    %1358 = vmatprep.subr.mxu0 0.0
    %1359 = vmatpush1.msra.mxu0 %v320
    %1360 = vmatprep.subr.mxu0 0.0
    %1361 = vmatpush1.msra.mxu0 %v319
    %1362 = vmatprep.subr.mxu0 0.0
    %1363 = vmatpush2.msra.mxu0 0.0
    %1364 = vmatprep.subr.mxu0 0.0
    %1365 = vmatpush2.msra.mxu0 0.0
    %1366 = vmatprep.subr.mxu0 0.0
    %1367 = vmatpush2.msra.mxu0 0.0
    %1368 = vmatprep.subr.mxu0 0.0
    %1369 = vmatpush2.msra.mxu0 0.0
    %1370 = vmatprep.subr.mxu0 0.0
    %1371 = vmatpush2.msra.mxu0 0.0
    %1372 = vmatprep.subr.mxu0 0.0
    %1373 = vmatpush2.msra.mxu0 0.0
    %1374 = vmatprep.subr.mxu0 0.0
    %1375 = vmatpush2.msra.mxu0 0.0
    %1376 = vmatprep.subr.mxu0 0.0
    %1377 = vmatpush2.msra.mxu0 0.0
    %1378 = vmatprep.subr.mxu0 0.0
    %1379 = vmatpush2.msra.mxu0 0.0
    %1380 = vmatprep.subr.mxu0 0.0
    %1381 = vmatpush2.msra.mxu0 0.0
    %1382 = vmatprep.subr.mxu0 0.0
    %1383 = vmatpush2.msra.mxu0 0.0
    %1384 = vmatprep.subr.mxu0 0.0
    %1385 = vmatpush2.msra.mxu0 0.0
    %1386 = vmatprep.subr.mxu0 0.0
    %1387 = vmatpush2.msra.mxu0 0.0
    %1388 = vmatprep.subr.mxu0 0.0
    %1389 = vmatpush2.msra.mxu0 0.0
    %1390 = vmatprep.subr.mxu0 0.0
    %1391 = vmatpush2.msra.mxu0 0.0
    %1392 = vmatprep.subr.mxu0 0.0
    %1393 = vmatpush2.msra.mxu0 0.0
    %1394 = vmatprep.mubr.f32.mxu0 0.0
    %1395 = vmatmul.mubr.f32.gmra.mxu0 %v1328
    %v1396 = vpop.f32.mrf.mxu0
    %v1397 = vadd.f32 0.0, %v1396
    %v1398 = vpop.f32.mrf.mxu0
    %1399 = vdwg.mxu0
    %1400 = vmatprep.subr.mxu0 0.0
    %1401 = vmatpush1.msra.mxu0 0.0
    %1402 = vmatprep.subr.mxu0 0.0
    %1403 = vmatpush1.msra.mxu0 0.0
    %1404 = vmatprep.subr.mxu0 0.0
    %1405 = vmatpush1.msra.mxu0 0.0
    %1406 = vmatprep.subr.mxu0 0.0
    %1407 = vmatpush1.msra.mxu0 0.0
    %1408 = vmatprep.subr.mxu0 0.0
    %1409 = vmatpush1.msra.mxu0 0.0
    %1410 = vmatprep.subr.mxu0 0.0
    %1411 = vmatpush1.msra.mxu0 0.0
    %1412 = vmatprep.subr.mxu0 0.0
    %1413 = vmatpush1.msra.mxu0 0.0
    %1414 = vmatprep.subr.mxu0 0.0
    %1415 = vmatpush1.msra.mxu0 0.0
    %1416 = vmatprep.subr.mxu0 0.0
    %1417 = vmatpush1.msra.mxu0 0.0
    %1418 = vmatprep.subr.mxu0 0.0
    %1419 = vmatpush1.msra.mxu0 0.0
    %1420 = vmatprep.subr.mxu0 0.0
    %1421 = vmatpush1.msra.mxu0 0.0
    %1422 = vmatprep.subr.mxu0 0.0
    %1423 = vmatpush1.msra.mxu0 0.0
    %1424 = vmatprep.subr.mxu0 0.0
    %1425 = vmatpush1.msra.mxu0 %v326
    %1426 = vmatprep.subr.mxu0 0.0
    %1427 = vmatpush1.msra.mxu0 %v325
    %1428 = vmatprep.subr.mxu0 0.0
    %1429 = vmatpush1.msra.mxu0 %v324
    %1430 = vmatprep.subr.mxu0 0.0
    %1431 = vmatpush1.msra.mxu0 %v323
    %1432 = vmatprep.subr.mxu0 0.0
    %1433 = vmatpush2.msra.mxu0 0.0
    %1434 = vmatprep.subr.mxu0 0.0
    %1435 = vmatpush2.msra.mxu0 0.0
    %1436 = vmatprep.subr.mxu0 0.0
    %1437 = vmatpush2.msra.mxu0 0.0
    %1438 = vmatprep.subr.mxu0 0.0
    %1439 = vmatpush2.msra.mxu0 0.0
    %1440 = vmatprep.subr.mxu0 0.0
    %1441 = vmatpush2.msra.mxu0 0.0
    %1442 = vmatprep.subr.mxu0 0.0
    %1443 = vmatpush2.msra.mxu0 0.0
    %1444 = vmatprep.subr.mxu0 0.0
    %1445 = vmatpush2.msra.mxu0 0.0
    %1446 = vmatprep.subr.mxu0 0.0
    %1447 = vmatpush2.msra.mxu0 0.0
    %1448 = vmatprep.subr.mxu0 0.0
    %1449 = vmatpush2.msra.mxu0 0.0
    %1450 = vmatprep.subr.mxu0 0.0
    %1451 = vmatpush2.msra.mxu0 0.0
    %1452 = vmatprep.subr.mxu0 0.0
    %1453 = vmatpush2.msra.mxu0 0.0
    %1454 = vmatprep.subr.mxu0 0.0
    %1455 = vmatpush2.msra.mxu0 0.0
    %1456 = vmatprep.subr.mxu0 0.0
    %1457 = vmatpush2.msra.mxu0 0.0
    %1458 = vmatprep.subr.mxu0 0.0
    %1459 = vmatpush2.msra.mxu0 0.0
    %1460 = vmatprep.subr.mxu0 0.0
    %1461 = vmatpush2.msra.mxu0 0.0
    %1462 = vmatprep.subr.mxu0 0.0
    %1463 = vmatpush2.msra.mxu0 0.0
    %1464 = vmatprep.mubr.f32.mxu0 0.0
    %1465 = vmatmul.mubr.f32.gmra.mxu0 %v1328
    %v1466 = vpop.f32.mrf.mxu0
    %v1467 = vadd.f32 0.0, %v1466
    %v1468 = vpop.f32.mrf.mxu0
    %1469 = vdwg.mxu0
    %1470 = vmatprep.subr.mxu0 0.0
    %1471 = vmatpush1.msra.mxu0 0.0
    %1472 = vmatprep.subr.mxu0 0.0
    %1473 = vmatpush1.msra.mxu0 0.0
    %1474 = vmatprep.subr.mxu0 0.0
    %1475 = vmatpush1.msra.mxu0 0.0
    %1476 = vmatprep.subr.mxu0 0.0
    %1477 = vmatpush1.msra.mxu0 0.0
    %1478 = vmatprep.subr.mxu0 0.0
    %1479 = vmatpush1.msra.mxu0 0.0
    %1480 = vmatprep.subr.mxu0 0.0
    %1481 = vmatpush1.msra.mxu0 0.0
    %1482 = vmatprep.subr.mxu0 0.0
    %1483 = vmatpush1.msra.mxu0 0.0
    %1484 = vmatprep.subr.mxu0 0.0
    %1485 = vmatpush1.msra.mxu0 0.0
    %1486 = vmatprep.subr.mxu0 0.0
    %1487 = vmatpush1.msra.mxu0 0.0
    %1488 = vmatprep.subr.mxu0 0.0
    %1489 = vmatpush1.msra.mxu0 0.0
    %1490 = vmatprep.subr.mxu0 0.0
    %1491 = vmatpush1.msra.mxu0 0.0
    %1492 = vmatprep.subr.mxu0 0.0
    %1493 = vmatpush1.msra.mxu0 0.0
    %1494 = vmatprep.subr.mxu0 0.0
    %1495 = vmatpush1.msra.mxu0 %v330
    %1496 = vmatprep.subr.mxu0 0.0
    %1497 = vmatpush1.msra.mxu0 %v329
    %1498 = vmatprep.subr.mxu0 0.0
    %1499 = vmatpush1.msra.mxu0 %v328
    %1500 = vmatprep.subr.mxu0 0.0
    %1501 = vmatpush1.msra.mxu0 %v327
    %1502 = vmatprep.subr.mxu0 0.0
    %1503 = vmatpush2.msra.mxu0 0.0
    %1504 = vmatprep.subr.mxu0 0.0
    %1505 = vmatpush2.msra.mxu0 0.0
    %1506 = vmatprep.subr.mxu0 0.0
    %1507 = vmatpush2.msra.mxu0 0.0
    %1508 = vmatprep.subr.mxu0 0.0
    %1509 = vmatpush2.msra.mxu0 0.0
    %1510 = vmatprep.subr.mxu0 0.0
    %1511 = vmatpush2.msra.mxu0 0.0
    %1512 = vmatprep.subr.mxu0 0.0
    %1513 = vmatpush2.msra.mxu0 0.0
    %1514 = vmatprep.subr.mxu0 0.0
    %1515 = vmatpush2.msra.mxu0 0.0
    %1516 = vmatprep.subr.mxu0 0.0
    %1517 = vmatpush2.msra.mxu0 0.0
    %1518 = vmatprep.subr.mxu0 0.0
    %1519 = vmatpush2.msra.mxu0 0.0
    %1520 = vmatprep.subr.mxu0 0.0
    %1521 = vmatpush2.msra.mxu0 0.0
    %1522 = vmatprep.subr.mxu0 0.0
    %1523 = vmatpush2.msra.mxu0 0.0
    %1524 = vmatprep.subr.mxu0 0.0
    %1525 = vmatpush2.msra.mxu0 0.0
    %1526 = vmatprep.subr.mxu0 0.0
    %1527 = vmatpush2.msra.mxu0 0.0
    %1528 = vmatprep.subr.mxu0 0.0
    %1529 = vmatpush2.msra.mxu0 0.0
    %1530 = vmatprep.subr.mxu0 0.0
    %1531 = vmatpush2.msra.mxu0 0.0
    %1532 = vmatprep.subr.mxu0 0.0
    %1533 = vmatpush2.msra.mxu0 0.0
    %1534 = vmatprep.mubr.f32.mxu0 0.0
    %1535 = vmatmul.mubr.f32.gmra.mxu0 %v1328
    %v1536 = vpop.f32.mrf.mxu0
    %v1537 = vadd.f32 %v480, %v1536
    %v1538 = vpop.f32.mrf.mxu0
    %1539 = vdwg.mxu0
    %v1540 = vadd.f32 %v154, %v1397
    %v1541 = vxor.u32 %v1540, 2147483648
    %v1542 = vmul.f32 %v1541, 1.442695
    %v1543 = vpow.pop %v1542
    %v1544 = vadd.f32 %v1543, 1.0
    %v1545 = vrcp.pop %v1544
    %v1546 = vmul.f32 1.0, %v1545
    %v1547 = vadd.f32 %v235, %v1467
    %v1548 = vxor.u32 %v1547, 2147483648
    %v1549 = vmul.f32 %v1548, 1.442695
    %v1550 = vpow.pop %v1549
    %v1551 = vadd.f32 %v1550, 1.0
    %v1552 = vrcp.pop %v1551
    %v1553 = vmul.f32 1.0, %v1552
    %v1554 = vmul.f32 %v1546, %v1537
    %v1555 = vadd.f32 %v316, %v1554
    %v1556 = vtanh.pop %v1555
    %v1558 = vrot.slane %v1556, 2
    %v1560 = vsub.f32 %v1323, %v1558
    %v1562 = vrot.slane %v1560, 6
    %v1564 = vmul.f32 %v1553, %v1562
    %v1565 = vadd.f32 %v1556, %v1564
    %1566 = vst.msk [vmem:[#allocation2 + $0x8] sm:$0x3] %vm572, %v1565
    %v1568 = vsel %vm332, %v1565, 0
    %1570 = vmatprep.subr.mxu0 0.0
    %1571 = vmatpush1.msra.mxu0 0.0
    %1572 = vmatprep.subr.mxu0 0.0
    %1573 = vmatpush1.msra.mxu0 0.0
    %1574 = vmatprep.subr.mxu0 0.0
    %1575 = vmatpush1.msra.mxu0 0.0
    %1576 = vmatprep.subr.mxu0 0.0
    %1577 = vmatpush1.msra.mxu0 0.0
    %1578 = vmatprep.subr.mxu0 0.0
    %1579 = vmatpush1.msra.mxu0 0.0
    %1580 = vmatprep.subr.mxu0 0.0
    %1581 = vmatpush1.msra.mxu0 0.0
    %1582 = vmatprep.subr.mxu0 0.0
    %1583 = vmatpush1.msra.mxu0 0.0
    %1584 = vmatprep.subr.mxu0 0.0
    %1585 = vmatpush1.msra.mxu0 0.0
    %1586 = vmatprep.subr.mxu0 0.0
    %1587 = vmatpush1.msra.mxu0 0.0
    %1588 = vmatprep.subr.mxu0 0.0
    %1589 = vmatpush1.msra.mxu0 0.0
    %1590 = vmatprep.subr.mxu0 0.0
    %1591 = vmatpush1.msra.mxu0 0.0
    %1592 = vmatprep.subr.mxu0 0.0
    %1593 = vmatpush1.msra.mxu0 0.0
    %1594 = vmatprep.subr.mxu0 0.0
    %1595 = vmatpush1.msra.mxu0 %v322
    %1596 = vmatprep.subr.mxu0 0.0
    %1597 = vmatpush1.msra.mxu0 %v321
    %1598 = vmatprep.subr.mxu0 0.0
    %1599 = vmatpush1.msra.mxu0 %v320
    %1600 = vmatprep.subr.mxu0 0.0
    %1601 = vmatpush1.msra.mxu0 %v319
    %1602 = vmatprep.subr.mxu0 0.0
    %1603 = vmatpush2.msra.mxu0 0.0
    %1604 = vmatprep.subr.mxu0 0.0
    %1605 = vmatpush2.msra.mxu0 0.0
    %1606 = vmatprep.subr.mxu0 0.0
    %1607 = vmatpush2.msra.mxu0 0.0
    %1608 = vmatprep.subr.mxu0 0.0
    %1609 = vmatpush2.msra.mxu0 0.0
    %1610 = vmatprep.subr.mxu0 0.0
    %1611 = vmatpush2.msra.mxu0 0.0
    %1612 = vmatprep.subr.mxu0 0.0
    %1613 = vmatpush2.msra.mxu0 0.0
    %1614 = vmatprep.subr.mxu0 0.0
    %1615 = vmatpush2.msra.mxu0 0.0
    %1616 = vmatprep.subr.mxu0 0.0
    %1617 = vmatpush2.msra.mxu0 0.0
    %1618 = vmatprep.subr.mxu0 0.0
    %1619 = vmatpush2.msra.mxu0 0.0
    %1620 = vmatprep.subr.mxu0 0.0
    %1621 = vmatpush2.msra.mxu0 0.0
    %1622 = vmatprep.subr.mxu0 0.0
    %1623 = vmatpush2.msra.mxu0 0.0
    %1624 = vmatprep.subr.mxu0 0.0
    %1625 = vmatpush2.msra.mxu0 0.0
    %1626 = vmatprep.subr.mxu0 0.0
    %1627 = vmatpush2.msra.mxu0 0.0
    %1628 = vmatprep.subr.mxu0 0.0
    %1629 = vmatpush2.msra.mxu0 0.0
    %1630 = vmatprep.subr.mxu0 0.0
    %1631 = vmatpush2.msra.mxu0 0.0
    %1632 = vmatprep.subr.mxu0 0.0
    %1633 = vmatpush2.msra.mxu0 0.0
    %1634 = vmatprep.mubr.f32.mxu0 0.0
    %1635 = vmatmul.mubr.f32.gmra.mxu0 %v1568
    %v1636 = vpop.f32.mrf.mxu0
    %v1637 = vadd.f32 0.0, %v1636
    %v1638 = vpop.f32.mrf.mxu0
    %1639 = vdwg.mxu0
    %1640 = vmatprep.subr.mxu0 0.0
    %1641 = vmatpush1.msra.mxu0 0.0
    %1642 = vmatprep.subr.mxu0 0.0
    %1643 = vmatpush1.msra.mxu0 0.0
    %1644 = vmatprep.subr.mxu0 0.0
    %1645 = vmatpush1.msra.mxu0 0.0
    %1646 = vmatprep.subr.mxu0 0.0
    %1647 = vmatpush1.msra.mxu0 0.0
    %1648 = vmatprep.subr.mxu0 0.0
    %1649 = vmatpush1.msra.mxu0 0.0
    %1650 = vmatprep.subr.mxu0 0.0
    %1651 = vmatpush1.msra.mxu0 0.0
    %1652 = vmatprep.subr.mxu0 0.0
    %1653 = vmatpush1.msra.mxu0 0.0
    %1654 = vmatprep.subr.mxu0 0.0
    %1655 = vmatpush1.msra.mxu0 0.0
    %1656 = vmatprep.subr.mxu0 0.0
    %1657 = vmatpush1.msra.mxu0 0.0
    %1658 = vmatprep.subr.mxu0 0.0
    %1659 = vmatpush1.msra.mxu0 0.0
    %1660 = vmatprep.subr.mxu0 0.0
    %1661 = vmatpush1.msra.mxu0 0.0
    %1662 = vmatprep.subr.mxu0 0.0
    %1663 = vmatpush1.msra.mxu0 0.0
    %1664 = vmatprep.subr.mxu0 0.0
    %1665 = vmatpush1.msra.mxu0 %v326
    %1666 = vmatprep.subr.mxu0 0.0
    %1667 = vmatpush1.msra.mxu0 %v325
    %1668 = vmatprep.subr.mxu0 0.0
    %1669 = vmatpush1.msra.mxu0 %v324
    %1670 = vmatprep.subr.mxu0 0.0
    %1671 = vmatpush1.msra.mxu0 %v323
    %1672 = vmatprep.subr.mxu0 0.0
    %1673 = vmatpush2.msra.mxu0 0.0
    %1674 = vmatprep.subr.mxu0 0.0
    %1675 = vmatpush2.msra.mxu0 0.0
    %1676 = vmatprep.subr.mxu0 0.0
    %1677 = vmatpush2.msra.mxu0 0.0
    %1678 = vmatprep.subr.mxu0 0.0
    %1679 = vmatpush2.msra.mxu0 0.0
    %1680 = vmatprep.subr.mxu0 0.0
    %1681 = vmatpush2.msra.mxu0 0.0
    %1682 = vmatprep.subr.mxu0 0.0
    %1683 = vmatpush2.msra.mxu0 0.0
    %1684 = vmatprep.subr.mxu0 0.0
    %1685 = vmatpush2.msra.mxu0 0.0
    %1686 = vmatprep.subr.mxu0 0.0
    %1687 = vmatpush2.msra.mxu0 0.0
    %1688 = vmatprep.subr.mxu0 0.0
    %1689 = vmatpush2.msra.mxu0 0.0
    %1690 = vmatprep.subr.mxu0 0.0
    %1691 = vmatpush2.msra.mxu0 0.0
    %1692 = vmatprep.subr.mxu0 0.0
    %1693 = vmatpush2.msra.mxu0 0.0
    %1694 = vmatprep.subr.mxu0 0.0
    %1695 = vmatpush2.msra.mxu0 0.0
    %1696 = vmatprep.subr.mxu0 0.0
    %1697 = vmatpush2.msra.mxu0 0.0
    %1698 = vmatprep.subr.mxu0 0.0
    %1699 = vmatpush2.msra.mxu0 0.0
    %1700 = vmatprep.subr.mxu0 0.0
    %1701 = vmatpush2.msra.mxu0 0.0
    %1702 = vmatprep.subr.mxu0 0.0
    %1703 = vmatpush2.msra.mxu0 0.0
    %1704 = vmatprep.mubr.f32.mxu0 0.0
    %1705 = vmatmul.mubr.f32.gmra.mxu0 %v1568
    %v1706 = vpop.f32.mrf.mxu0
    %v1707 = vadd.f32 0.0, %v1706
    %v1708 = vpop.f32.mrf.mxu0
    %1709 = vdwg.mxu0
    %1710 = vmatprep.subr.mxu0 0.0
    %1711 = vmatpush1.msra.mxu0 0.0
    %1712 = vmatprep.subr.mxu0 0.0
    %1713 = vmatpush1.msra.mxu0 0.0
    %1714 = vmatprep.subr.mxu0 0.0
    %1715 = vmatpush1.msra.mxu0 0.0
    %1716 = vmatprep.subr.mxu0 0.0
    %1717 = vmatpush1.msra.mxu0 0.0
    %1718 = vmatprep.subr.mxu0 0.0
    %1719 = vmatpush1.msra.mxu0 0.0
    %1720 = vmatprep.subr.mxu0 0.0
    %1721 = vmatpush1.msra.mxu0 0.0
    %1722 = vmatprep.subr.mxu0 0.0
    %1723 = vmatpush1.msra.mxu0 0.0
    %1724 = vmatprep.subr.mxu0 0.0
    %1725 = vmatpush1.msra.mxu0 0.0
    %1726 = vmatprep.subr.mxu0 0.0
    %1727 = vmatpush1.msra.mxu0 0.0
    %1728 = vmatprep.subr.mxu0 0.0
    %1729 = vmatpush1.msra.mxu0 0.0
    %1730 = vmatprep.subr.mxu0 0.0
    %1731 = vmatpush1.msra.mxu0 0.0
    %1732 = vmatprep.subr.mxu0 0.0
    %1733 = vmatpush1.msra.mxu0 0.0
    %1734 = vmatprep.subr.mxu0 0.0
    %1735 = vmatpush1.msra.mxu0 %v330
    %1736 = vmatprep.subr.mxu0 0.0
    %1737 = vmatpush1.msra.mxu0 %v329
    %1738 = vmatprep.subr.mxu0 0.0
    %1739 = vmatpush1.msra.mxu0 %v328
    %1740 = vmatprep.subr.mxu0 0.0
    %1741 = vmatpush1.msra.mxu0 %v327
    %1742 = vmatprep.subr.mxu0 0.0
    %1743 = vmatpush2.msra.mxu0 0.0
    %1744 = vmatprep.subr.mxu0 0.0
    %1745 = vmatpush2.msra.mxu0 0.0
    %1746 = vmatprep.subr.mxu0 0.0
    %1747 = vmatpush2.msra.mxu0 0.0
    %1748 = vmatprep.subr.mxu0 0.0
    %1749 = vmatpush2.msra.mxu0 0.0
    %1750 = vmatprep.subr.mxu0 0.0
    %1751 = vmatpush2.msra.mxu0 0.0
    %1752 = vmatprep.subr.mxu0 0.0
    %1753 = vmatpush2.msra.mxu0 0.0
    %1754 = vmatprep.subr.mxu0 0.0
    %1755 = vmatpush2.msra.mxu0 0.0
    %1756 = vmatprep.subr.mxu0 0.0
    %1757 = vmatpush2.msra.mxu0 0.0
    %1758 = vmatprep.subr.mxu0 0.0
    %1759 = vmatpush2.msra.mxu0 0.0
    %1760 = vmatprep.subr.mxu0 0.0
    %1761 = vmatpush2.msra.mxu0 0.0
    %1762 = vmatprep.subr.mxu0 0.0
    %1763 = vmatpush2.msra.mxu0 0.0
    %1764 = vmatprep.subr.mxu0 0.0
    %1765 = vmatpush2.msra.mxu0 0.0
    %1766 = vmatprep.subr.mxu0 0.0
    %1767 = vmatpush2.msra.mxu0 0.0
    %1768 = vmatprep.subr.mxu0 0.0
    %1769 = vmatpush2.msra.mxu0 0.0
    %1770 = vmatprep.subr.mxu0 0.0
    %1771 = vmatpush2.msra.mxu0 0.0
    %1772 = vmatprep.subr.mxu0 0.0
    %1773 = vmatpush2.msra.mxu0 0.0
    %1774 = vmatprep.mubr.f32.mxu0 0.0
    %1775 = vmatmul.mubr.f32.gmra.mxu0 %v1568
    %v1776 = vpop.f32.mrf.mxu0
    %v1777 = vadd.f32 %v480, %v1776
    %v1778 = vpop.f32.mrf.mxu0
    %1779 = vdwg.mxu0
    %v1781 = vrot.slane %v1637, 6
    %v1783 = vadd.f32 %v154, %v1781
    %v1784 = vxor.u32 %v1783, 2147483648
    %v1785 = vmul.f32 %v1784, 1.442695
    %v1786 = vpow.pop %v1785
    %v1787 = vadd.f32 %v1786, 1.0
    %v1788 = vrcp.pop %v1787
    %v1789 = vmul.f32 1.0, %v1788
    %v1791 = vrot.slane %v1707, 6
    %v1793 = vadd.f32 %v235, %v1791
    %v1794 = vxor.u32 %v1793, 2147483648
    %v1795 = vmul.f32 %v1794, 1.442695
    %v1796 = vpow.pop %v1795
    %v1797 = vadd.f32 %v1796, 1.0
    %v1798 = vrcp.pop %v1797
    %v1799 = vmul.f32 1.0, %v1798
    %v1801 = vrot.slane %v1777, 6
    %v1803 = vmul.f32 %v1789, %v1801
    %v1804 = vadd.f32 %v316, %v1803
    %v1805 = vtanh.pop %v1804
    %v1807 = vrot.slane %v1805, 2
    %v1809 = vsub.f32 %v1565, %v1807
    %v1811 = vrot.slane %v1809, 6
    %v1813 = vmul.f32 %v1799, %v1811
    %v1814 = vadd.f32 %v1805, %v1813
    %1815 = vst.msk [vmem:[#allocation2 + $0x8] sm:$0xc] %vm822, %v1814
    %v1817 = vrot.slane %v1814, 2
    %v1818 = vsel %vm332, %v1817, 0
    %1820 = vmatprep.subr.mxu0 0.0
    %1821 = vmatpush1.msra.mxu0 0.0
    %1822 = vmatprep.subr.mxu0 0.0
    %1823 = vmatpush1.msra.mxu0 0.0
    %1824 = vmatprep.subr.mxu0 0.0
    %1825 = vmatpush1.msra.mxu0 0.0
    %1826 = vmatprep.subr.mxu0 0.0
    %1827 = vmatpush1.msra.mxu0 0.0
    %1828 = vmatprep.subr.mxu0 0.0
    %1829 = vmatpush1.msra.mxu0 0.0
    %1830 = vmatprep.subr.mxu0 0.0
    %1831 = vmatpush1.msra.mxu0 0.0
    %1832 = vmatprep.subr.mxu0 0.0
    %1833 = vmatpush1.msra.mxu0 0.0
    %1834 = vmatprep.subr.mxu0 0.0
    %1835 = vmatpush1.msra.mxu0 0.0
    %1836 = vmatprep.subr.mxu0 0.0
    %1837 = vmatpush1.msra.mxu0 0.0
    %1838 = vmatprep.subr.mxu0 0.0
    %1839 = vmatpush1.msra.mxu0 0.0
    %1840 = vmatprep.subr.mxu0 0.0
    %1841 = vmatpush1.msra.mxu0 0.0
    %1842 = vmatprep.subr.mxu0 0.0
    %1843 = vmatpush1.msra.mxu0 0.0
    %1844 = vmatprep.subr.mxu0 0.0
    %1845 = vmatpush1.msra.mxu0 %v322
    %1846 = vmatprep.subr.mxu0 0.0
    %1847 = vmatpush1.msra.mxu0 %v321
    %1848 = vmatprep.subr.mxu0 0.0
    %1849 = vmatpush1.msra.mxu0 %v320
    %1850 = vmatprep.subr.mxu0 0.0
    %1851 = vmatpush1.msra.mxu0 %v319
    %1852 = vmatprep.subr.mxu0 0.0
    %1853 = vmatpush2.msra.mxu0 0.0
    %1854 = vmatprep.subr.mxu0 0.0
    %1855 = vmatpush2.msra.mxu0 0.0
    %1856 = vmatprep.subr.mxu0 0.0
    %1857 = vmatpush2.msra.mxu0 0.0
    %1858 = vmatprep.subr.mxu0 0.0
    %1859 = vmatpush2.msra.mxu0 0.0
    %1860 = vmatprep.subr.mxu0 0.0
    %1861 = vmatpush2.msra.mxu0 0.0
    %1862 = vmatprep.subr.mxu0 0.0
    %1863 = vmatpush2.msra.mxu0 0.0
    %1864 = vmatprep.subr.mxu0 0.0
    %1865 = vmatpush2.msra.mxu0 0.0
    %1866 = vmatprep.subr.mxu0 0.0
    %1867 = vmatpush2.msra.mxu0 0.0
    %1868 = vmatprep.subr.mxu0 0.0
    %1869 = vmatpush2.msra.mxu0 0.0
    %1870 = vmatprep.subr.mxu0 0.0
    %1871 = vmatpush2.msra.mxu0 0.0
    %1872 = vmatprep.subr.mxu0 0.0
    %1873 = vmatpush2.msra.mxu0 0.0
    %1874 = vmatprep.subr.mxu0 0.0
    %1875 = vmatpush2.msra.mxu0 0.0
    %1876 = vmatprep.subr.mxu0 0.0
    %1877 = vmatpush2.msra.mxu0 0.0
    %1878 = vmatprep.subr.mxu0 0.0
    %1879 = vmatpush2.msra.mxu0 0.0
    %1880 = vmatprep.subr.mxu0 0.0
    %1881 = vmatpush2.msra.mxu0 0.0
    %1882 = vmatprep.subr.mxu0 0.0
    %1883 = vmatpush2.msra.mxu0 0.0
    %1884 = vmatprep.mubr.f32.mxu0 0.0
    %1885 = vmatmul.mubr.f32.gmra.mxu0 %v1818
    %v1886 = vpop.f32.mrf.mxu0
    %v1887 = vadd.f32 0.0, %v1886
    %v1888 = vpop.f32.mrf.mxu0
    %1889 = vdwg.mxu0
    %1890 = vmatprep.subr.mxu0 0.0
    %1891 = vmatpush1.msra.mxu0 0.0
    %1892 = vmatprep.subr.mxu0 0.0
    %1893 = vmatpush1.msra.mxu0 0.0
    %1894 = vmatprep.subr.mxu0 0.0
    %1895 = vmatpush1.msra.mxu0 0.0
    %1896 = vmatprep.subr.mxu0 0.0
    %1897 = vmatpush1.msra.mxu0 0.0
    %1898 = vmatprep.subr.mxu0 0.0
    %1899 = vmatpush1.msra.mxu0 0.0
    %1900 = vmatprep.subr.mxu0 0.0
    %1901 = vmatpush1.msra.mxu0 0.0
    %1902 = vmatprep.subr.mxu0 0.0
    %1903 = vmatpush1.msra.mxu0 0.0
    %1904 = vmatprep.subr.mxu0 0.0
    %1905 = vmatpush1.msra.mxu0 0.0
    %1906 = vmatprep.subr.mxu0 0.0
    %1907 = vmatpush1.msra.mxu0 0.0
    %1908 = vmatprep.subr.mxu0 0.0
    %1909 = vmatpush1.msra.mxu0 0.0
    %1910 = vmatprep.subr.mxu0 0.0
    %1911 = vmatpush1.msra.mxu0 0.0
    %1912 = vmatprep.subr.mxu0 0.0
    %1913 = vmatpush1.msra.mxu0 0.0
    %1914 = vmatprep.subr.mxu0 0.0
    %1915 = vmatpush1.msra.mxu0 %v326
    %1916 = vmatprep.subr.mxu0 0.0
    %1917 = vmatpush1.msra.mxu0 %v325
    %1918 = vmatprep.subr.mxu0 0.0
    %1919 = vmatpush1.msra.mxu0 %v324
    %1920 = vmatprep.subr.mxu0 0.0
    %1921 = vmatpush1.msra.mxu0 %v323
    %1922 = vmatprep.subr.mxu0 0.0
    %1923 = vmatpush2.msra.mxu0 0.0
    %1924 = vmatprep.subr.mxu0 0.0
    %1925 = vmatpush2.msra.mxu0 0.0
    %1926 = vmatprep.subr.mxu0 0.0
    %1927 = vmatpush2.msra.mxu0 0.0
    %1928 = vmatprep.subr.mxu0 0.0
    %1929 = vmatpush2.msra.mxu0 0.0
    %1930 = vmatprep.subr.mxu0 0.0
    %1931 = vmatpush2.msra.mxu0 0.0
    %1932 = vmatprep.subr.mxu0 0.0
    %1933 = vmatpush2.msra.mxu0 0.0
    %1934 = vmatprep.subr.mxu0 0.0
    %1935 = vmatpush2.msra.mxu0 0.0
    %1936 = vmatprep.subr.mxu0 0.0
    %1937 = vmatpush2.msra.mxu0 0.0
    %1938 = vmatprep.subr.mxu0 0.0
    %1939 = vmatpush2.msra.mxu0 0.0
    %1940 = vmatprep.subr.mxu0 0.0
    %1941 = vmatpush2.msra.mxu0 0.0
    %1942 = vmatprep.subr.mxu0 0.0
    %1943 = vmatpush2.msra.mxu0 0.0
    %1944 = vmatprep.subr.mxu0 0.0
    %1945 = vmatpush2.msra.mxu0 0.0
    %1946 = vmatprep.subr.mxu0 0.0
    %1947 = vmatpush2.msra.mxu0 0.0
    %1948 = vmatprep.subr.mxu0 0.0
    %1949 = vmatpush2.msra.mxu0 0.0
    %1950 = vmatprep.subr.mxu0 0.0
    %1951 = vmatpush2.msra.mxu0 0.0
    %1952 = vmatprep.subr.mxu0 0.0
    %1953 = vmatpush2.msra.mxu0 0.0
    %1954 = vmatprep.mubr.f32.mxu0 0.0
    %1955 = vmatmul.mubr.f32.gmra.mxu0 %v1818
    %v1956 = vpop.f32.mrf.mxu0
    %v1957 = vadd.f32 0.0, %v1956
    %v1958 = vpop.f32.mrf.mxu0
    %1959 = vdwg.mxu0
    %1960 = vmatprep.subr.mxu0 0.0
    %1961 = vmatpush1.msra.mxu0 0.0
    %1962 = vmatprep.subr.mxu0 0.0
    %1963 = vmatpush1.msra.mxu0 0.0
    %1964 = vmatprep.subr.mxu0 0.0
    %1965 = vmatpush1.msra.mxu0 0.0
    %1966 = vmatprep.subr.mxu0 0.0
    %1967 = vmatpush1.msra.mxu0 0.0
    %1968 = vmatprep.subr.mxu0 0.0
    %1969 = vmatpush1.msra.mxu0 0.0
    %1970 = vmatprep.subr.mxu0 0.0
    %1971 = vmatpush1.msra.mxu0 0.0
    %1972 = vmatprep.subr.mxu0 0.0
    %1973 = vmatpush1.msra.mxu0 0.0
    %1974 = vmatprep.subr.mxu0 0.0
    %1975 = vmatpush1.msra.mxu0 0.0
    %1976 = vmatprep.subr.mxu0 0.0
    %1977 = vmatpush1.msra.mxu0 0.0
    %1978 = vmatprep.subr.mxu0 0.0
    %1979 = vmatpush1.msra.mxu0 0.0
    %1980 = vmatprep.subr.mxu0 0.0
    %1981 = vmatpush1.msra.mxu0 0.0
    %1982 = vmatprep.subr.mxu0 0.0
    %1983 = vmatpush1.msra.mxu0 0.0
    %1984 = vmatprep.subr.mxu0 0.0
    %1985 = vmatpush1.msra.mxu0 %v330
    %1986 = vmatprep.subr.mxu0 0.0
    %1987 = vmatpush1.msra.mxu0 %v329
    %1988 = vmatprep.subr.mxu0 0.0
    %1989 = vmatpush1.msra.mxu0 %v328
    %1990 = vmatprep.subr.mxu0 0.0
    %1991 = vmatpush1.msra.mxu0 %v327
    %1992 = vmatprep.subr.mxu0 0.0
    %1993 = vmatpush2.msra.mxu0 0.0
    %1994 = vmatprep.subr.mxu0 0.0
    %1995 = vmatpush2.msra.mxu0 0.0
    %1996 = vmatprep.subr.mxu0 0.0
    %1997 = vmatpush2.msra.mxu0 0.0
    %1998 = vmatprep.subr.mxu0 0.0
    %1999 = vmatpush2.msra.mxu0 0.0
    %2000 = vmatprep.subr.mxu0 0.0
    %2001 = vmatpush2.msra.mxu0 0.0
    %2002 = vmatprep.subr.mxu0 0.0
    %2003 = vmatpush2.msra.mxu0 0.0
    %2004 = vmatprep.subr.mxu0 0.0
    %2005 = vmatpush2.msra.mxu0 0.0
    %2006 = vmatprep.subr.mxu0 0.0
    %2007 = vmatpush2.msra.mxu0 0.0
    %2008 = vmatprep.subr.mxu0 0.0
    %2009 = vmatpush2.msra.mxu0 0.0
    %2010 = vmatprep.subr.mxu0 0.0
    %2011 = vmatpush2.msra.mxu0 0.0
    %2012 = vmatprep.subr.mxu0 0.0
    %2013 = vmatpush2.msra.mxu0 0.0
    %2014 = vmatprep.subr.mxu0 0.0
    %2015 = vmatpush2.msra.mxu0 0.0
    %2016 = vmatprep.subr.mxu0 0.0
    %2017 = vmatpush2.msra.mxu0 0.0
    %2018 = vmatprep.subr.mxu0 0.0
    %2019 = vmatpush2.msra.mxu0 0.0
    %2020 = vmatprep.subr.mxu0 0.0
    %2021 = vmatpush2.msra.mxu0 0.0
    %2022 = vmatprep.subr.mxu0 0.0
    %2023 = vmatpush2.msra.mxu0 0.0
    %2024 = vmatprep.mubr.f32.mxu0 0.0
    %2025 = vmatmul.mubr.f32.gmra.mxu0 %v1818
    %v2026 = vpop.f32.mrf.mxu0
    %v2027 = vadd.f32 %v480, %v2026
    %v2028 = vpop.f32.mrf.mxu0
    %2029 = vdwg.mxu0
    %v2031 = vrot.slane %v1887, 4
    %v2033 = vadd.f32 %v154, %v2031
    %v2034 = vxor.u32 %v2033, 2147483648
    %v2035 = vmul.f32 %v2034, 1.442695
    %v2036 = vpow.pop %v2035
    %v2037 = vadd.f32 %v2036, 1.0
    %v2038 = vrcp.pop %v2037
    %v2039 = vmul.f32 1.0, %v2038
    %v2041 = vrot.slane %v1957, 4
    %v2043 = vadd.f32 %v235, %v2041
    %v2044 = vxor.u32 %v2043, 2147483648
    %v2045 = vmul.f32 %v2044, 1.442695
    %v2046 = vpow.pop %v2045
    %v2047 = vadd.f32 %v2046, 1.0
    %v2048 = vrcp.pop %v2047
    %v2049 = vmul.f32 1.0, %v2048
    %v2051 = vrot.slane %v2027, 4
    %v2053 = vmul.f32 %v2039, %v2051
    %v2054 = vadd.f32 %v316, %v2053
    %v2055 = vtanh.pop %v2054
    %v2057 = vrot.slane %v2055, 2
    %v2059 = vsub.f32 %v1814, %v2057
    %v2061 = vrot.slane %v2059, 6
    %v2063 = vmul.f32 %v2049, %v2061
    %v2064 = vadd.f32 %v2055, %v2063
    %2065 = vst.msk [vmem:[#allocation2 + $0x8] sm:$0x30] %vm1073, %v2064
    %v2067 = vrot.slane %v2064, 4
    %v2068 = vsel %vm332, %v2067, 0
    %2070 = vmatprep.subr.mxu0 0.0
    %2071 = vmatpush1.msra.mxu0 0.0
    %2072 = vmatprep.subr.mxu0 0.0
    %2073 = vmatpush1.msra.mxu0 0.0
    %2074 = vmatprep.subr.mxu0 0.0
    %2075 = vmatpush1.msra.mxu0 0.0
    %2076 = vmatprep.subr.mxu0 0.0
    %2077 = vmatpush1.msra.mxu0 0.0
    %2078 = vmatprep.subr.mxu0 0.0
    %2079 = vmatpush1.msra.mxu0 0.0
    %2080 = vmatprep.subr.mxu0 0.0
    %2081 = vmatpush1.msra.mxu0 0.0
    %2082 = vmatprep.subr.mxu0 0.0
    %2083 = vmatpush1.msra.mxu0 0.0
    %2084 = vmatprep.subr.mxu0 0.0
    %2085 = vmatpush1.msra.mxu0 0.0
    %2086 = vmatprep.subr.mxu0 0.0
    %2087 = vmatpush1.msra.mxu0 0.0
    %2088 = vmatprep.subr.mxu0 0.0
    %2089 = vmatpush1.msra.mxu0 0.0
    %2090 = vmatprep.subr.mxu0 0.0
    %2091 = vmatpush1.msra.mxu0 0.0
    %2092 = vmatprep.subr.mxu0 0.0
    %2093 = vmatpush1.msra.mxu0 0.0
    %2094 = vmatprep.subr.mxu0 0.0
    %2095 = vmatpush1.msra.mxu0 %v322
    %2096 = vmatprep.subr.mxu0 0.0
    %2097 = vmatpush1.msra.mxu0 %v321
    %2098 = vmatprep.subr.mxu0 0.0
    %2099 = vmatpush1.msra.mxu0 %v320
    %2100 = vmatprep.subr.mxu0 0.0
    %2101 = vmatpush1.msra.mxu0 %v319
    %2102 = vmatprep.subr.mxu0 0.0
    %2103 = vmatpush2.msra.mxu0 0.0
    %2104 = vmatprep.subr.mxu0 0.0
    %2105 = vmatpush2.msra.mxu0 0.0
    %2106 = vmatprep.subr.mxu0 0.0
    %2107 = vmatpush2.msra.mxu0 0.0
    %2108 = vmatprep.subr.mxu0 0.0
    %2109 = vmatpush2.msra.mxu0 0.0
    %2110 = vmatprep.subr.mxu0 0.0
    %2111 = vmatpush2.msra.mxu0 0.0
    %2112 = vmatprep.subr.mxu0 0.0
    %2113 = vmatpush2.msra.mxu0 0.0
    %2114 = vmatprep.subr.mxu0 0.0
    %2115 = vmatpush2.msra.mxu0 0.0
    %2116 = vmatprep.subr.mxu0 0.0
    %2117 = vmatpush2.msra.mxu0 0.0
    %2118 = vmatprep.subr.mxu0 0.0
    %2119 = vmatpush2.msra.mxu0 0.0
    %2120 = vmatprep.subr.mxu0 0.0
    %2121 = vmatpush2.msra.mxu0 0.0
    %2122 = vmatprep.subr.mxu0 0.0
    %2123 = vmatpush2.msra.mxu0 0.0
    %2124 = vmatprep.subr.mxu0 0.0
    %2125 = vmatpush2.msra.mxu0 0.0
    %2126 = vmatprep.subr.mxu0 0.0
    %2127 = vmatpush2.msra.mxu0 0.0
    %2128 = vmatprep.subr.mxu0 0.0
    %2129 = vmatpush2.msra.mxu0 0.0
    %2130 = vmatprep.subr.mxu0 0.0
    %2131 = vmatpush2.msra.mxu0 0.0
    %2132 = vmatprep.subr.mxu0 0.0
    %2133 = vmatpush2.msra.mxu0 0.0
    %2134 = vmatprep.mubr.f32.mxu0 0.0
    %2135 = vmatmul.mubr.f32.gmra.mxu0 %v2068
    %v2136 = vpop.f32.mrf.mxu0
    %v2137 = vadd.f32 0.0, %v2136
    %v2138 = vpop.f32.mrf.mxu0
    %2139 = vdwg.mxu0
    %2140 = vmatprep.subr.mxu0 0.0
    %2141 = vmatpush1.msra.mxu0 0.0
    %2142 = vmatprep.subr.mxu0 0.0
    %2143 = vmatpush1.msra.mxu0 0.0
    %2144 = vmatprep.subr.mxu0 0.0
    %2145 = vmatpush1.msra.mxu0 0.0
    %2146 = vmatprep.subr.mxu0 0.0
    %2147 = vmatpush1.msra.mxu0 0.0
    %2148 = vmatprep.subr.mxu0 0.0
    %2149 = vmatpush1.msra.mxu0 0.0
    %2150 = vmatprep.subr.mxu0 0.0
    %2151 = vmatpush1.msra.mxu0 0.0
    %2152 = vmatprep.subr.mxu0 0.0
    %2153 = vmatpush1.msra.mxu0 0.0
    %2154 = vmatprep.subr.mxu0 0.0
    %2155 = vmatpush1.msra.mxu0 0.0
    %2156 = vmatprep.subr.mxu0 0.0
    %2157 = vmatpush1.msra.mxu0 0.0
    %2158 = vmatprep.subr.mxu0 0.0
    %2159 = vmatpush1.msra.mxu0 0.0
    %2160 = vmatprep.subr.mxu0 0.0
    %2161 = vmatpush1.msra.mxu0 0.0
    %2162 = vmatprep.subr.mxu0 0.0
    %2163 = vmatpush1.msra.mxu0 0.0
    %2164 = vmatprep.subr.mxu0 0.0
    %2165 = vmatpush1.msra.mxu0 %v326
    %2166 = vmatprep.subr.mxu0 0.0
    %2167 = vmatpush1.msra.mxu0 %v325
    %2168 = vmatprep.subr.mxu0 0.0
    %2169 = vmatpush1.msra.mxu0 %v324
    %2170 = vmatprep.subr.mxu0 0.0
    %2171 = vmatpush1.msra.mxu0 %v323
    %2172 = vmatprep.subr.mxu0 0.0
    %2173 = vmatpush2.msra.mxu0 0.0
    %2174 = vmatprep.subr.mxu0 0.0
    %2175 = vmatpush2.msra.mxu0 0.0
    %2176 = vmatprep.subr.mxu0 0.0
    %2177 = vmatpush2.msra.mxu0 0.0
    %2178 = vmatprep.subr.mxu0 0.0
    %2179 = vmatpush2.msra.mxu0 0.0
    %2180 = vmatprep.subr.mxu0 0.0
    %2181 = vmatpush2.msra.mxu0 0.0
    %2182 = vmatprep.subr.mxu0 0.0
    %2183 = vmatpush2.msra.mxu0 0.0
    %2184 = vmatprep.subr.mxu0 0.0
    %2185 = vmatpush2.msra.mxu0 0.0
    %2186 = vmatprep.subr.mxu0 0.0
    %2187 = vmatpush2.msra.mxu0 0.0
    %2188 = vmatprep.subr.mxu0 0.0
    %2189 = vmatpush2.msra.mxu0 0.0
    %2190 = vmatprep.subr.mxu0 0.0
    %2191 = vmatpush2.msra.mxu0 0.0
    %2192 = vmatprep.subr.mxu0 0.0
    %2193 = vmatpush2.msra.mxu0 0.0
    %2194 = vmatprep.subr.mxu0 0.0
    %2195 = vmatpush2.msra.mxu0 0.0
    %2196 = vmatprep.subr.mxu0 0.0
    %2197 = vmatpush2.msra.mxu0 0.0
    %2198 = vmatprep.subr.mxu0 0.0
    %2199 = vmatpush2.msra.mxu0 0.0
    %2200 = vmatprep.subr.mxu0 0.0
    %2201 = vmatpush2.msra.mxu0 0.0
    %2202 = vmatprep.subr.mxu0 0.0
    %2203 = vmatpush2.msra.mxu0 0.0
    %2204 = vmatprep.mubr.f32.mxu0 0.0
    %2205 = vmatmul.mubr.f32.gmra.mxu0 %v2068
    %v2206 = vpop.f32.mrf.mxu0
    %v2207 = vadd.f32 0.0, %v2206
    %v2208 = vpop.f32.mrf.mxu0
    %2209 = vdwg.mxu0
    %2210 = vmatprep.subr.mxu0 0.0
    %2211 = vmatpush1.msra.mxu0 0.0
    %2212 = vmatprep.subr.mxu0 0.0
    %2213 = vmatpush1.msra.mxu0 0.0
    %2214 = vmatprep.subr.mxu0 0.0
    %2215 = vmatpush1.msra.mxu0 0.0
    %2216 = vmatprep.subr.mxu0 0.0
    %2217 = vmatpush1.msra.mxu0 0.0
    %2218 = vmatprep.subr.mxu0 0.0
    %2219 = vmatpush1.msra.mxu0 0.0
    %2220 = vmatprep.subr.mxu0 0.0
    %2221 = vmatpush1.msra.mxu0 0.0
    %2222 = vmatprep.subr.mxu0 0.0
    %2223 = vmatpush1.msra.mxu0 0.0
    %2224 = vmatprep.subr.mxu0 0.0
    %2225 = vmatpush1.msra.mxu0 0.0
    %2226 = vmatprep.subr.mxu0 0.0
    %2227 = vmatpush1.msra.mxu0 0.0
    %2228 = vmatprep.subr.mxu0 0.0
    %2229 = vmatpush1.msra.mxu0 0.0
    %2230 = vmatprep.subr.mxu0 0.0
    %2231 = vmatpush1.msra.mxu0 0.0
    %2232 = vmatprep.subr.mxu0 0.0
    %2233 = vmatpush1.msra.mxu0 0.0
    %2234 = vmatprep.subr.mxu0 0.0
    %2235 = vmatpush1.msra.mxu0 %v330
    %2236 = vmatprep.subr.mxu0 0.0
    %2237 = vmatpush1.msra.mxu0 %v329
    %2238 = vmatprep.subr.mxu0 0.0
    %2239 = vmatpush1.msra.mxu0 %v328
    %2240 = vmatprep.subr.mxu0 0.0
    %2241 = vmatpush1.msra.mxu0 %v327
    %2242 = vmatprep.subr.mxu0 0.0
    %2243 = vmatpush2.msra.mxu0 0.0
    %2244 = vmatprep.subr.mxu0 0.0
    %2245 = vmatpush2.msra.mxu0 0.0
    %2246 = vmatprep.subr.mxu0 0.0
    %2247 = vmatpush2.msra.mxu0 0.0
    %2248 = vmatprep.subr.mxu0 0.0
    %2249 = vmatpush2.msra.mxu0 0.0
    %2250 = vmatprep.subr.mxu0 0.0
    %2251 = vmatpush2.msra.mxu0 0.0
    %2252 = vmatprep.subr.mxu0 0.0
    %2253 = vmatpush2.msra.mxu0 0.0
    %2254 = vmatprep.subr.mxu0 0.0
    %2255 = vmatpush2.msra.mxu0 0.0
    %2256 = vmatprep.subr.mxu0 0.0
    %2257 = vmatpush2.msra.mxu0 0.0
    %2258 = vmatprep.subr.mxu0 0.0
    %2259 = vmatpush2.msra.mxu0 0.0
    %2260 = vmatprep.subr.mxu0 0.0
    %2261 = vmatpush2.msra.mxu0 0.0
    %2262 = vmatprep.subr.mxu0 0.0
    %2263 = vmatpush2.msra.mxu0 0.0
    %2264 = vmatprep.subr.mxu0 0.0
    %2265 = vmatpush2.msra.mxu0 0.0
    %2266 = vmatprep.subr.mxu0 0.0
    %2267 = vmatpush2.msra.mxu0 0.0
    %2268 = vmatprep.subr.mxu0 0.0
    %2269 = vmatpush2.msra.mxu0 0.0
    %2270 = vmatprep.subr.mxu0 0.0
    %2271 = vmatpush2.msra.mxu0 0.0
    %2272 = vmatprep.subr.mxu0 0.0
    %2273 = vmatpush2.msra.mxu0 0.0
    %2274 = vmatprep.mubr.f32.mxu0 0.0
    %2275 = vmatmul.mubr.f32.gmra.mxu0 %v2068
    %v2276 = vpop.f32.mrf.mxu0
    %v2277 = vadd.f32 %v480, %v2276
    %v2278 = vpop.f32.mrf.mxu0
    %2279 = vdwg.mxu0
    %v2281 = vrot.slane %v2137, 2
    %v2283 = vadd.f32 %v154, %v2281
    %v2284 = vxor.u32 %v2283, 2147483648
    %v2285 = vmul.f32 %v2284, 1.442695
    %v2286 = vpow.pop %v2285
    %v2287 = vadd.f32 %v2286, 1.0
    %v2288 = vrcp.pop %v2287
    %v2289 = vmul.f32 1.0, %v2288
    %v2291 = vrot.slane %v2207, 2
    %v2293 = vadd.f32 %v235, %v2291
    %v2294 = vxor.u32 %v2293, 2147483648
    %v2295 = vmul.f32 %v2294, 1.442695
    %v2296 = vpow.pop %v2295
    %v2297 = vadd.f32 %v2296, 1.0
    %v2298 = vrcp.pop %v2297
    %v2299 = vmul.f32 1.0, %v2298
    %v2301 = vrot.slane %v2277, 2
    %v2303 = vmul.f32 %v2289, %v2301
    %v2304 = vadd.f32 %v316, %v2303
    %v2305 = vtanh.pop %v2304
    %v2307 = vrot.slane %v2305, 2
    %v2309 = vsub.f32 %v2064, %v2307
    %v2311 = vrot.slane %v2309, 6
    %v2313 = vmul.f32 %v2299, %v2311
    %v2314 = vadd.f32 %v2305, %v2313
    %2315 = vst.msk [vmem:[#allocation2 + $0x8] sm:$0xc0] %vm1324, %v2314
    %v2316 = vld [vmem:[#allocation2] sm:$0xff]
    %v2317 = vld [vmem:[#allocation2 + $0x8] sm:$0xff]
    %v2318 = vld [vmem:[#allocation3] sm:$0xff]
    %v2319 = vld [vmem:[#allocation3 + $0x8] sm:$0xff]
    %v2320 = vld [vmem:[#allocation3 + $0x10] sm:$0xff]
    %v2321 = vld [vmem:[#allocation3 + $0x18] sm:$0xff]
    %v2322 = vld [vmem:[#allocation3 + $0x20] sm:$0xff]
    %v2323 = vld [vmem:[#allocation3 + $0x28] sm:$0xff]
    %v2324 = vld [vmem:[#allocation3 + $0x30] sm:$0xff]
    %v2325 = vld [vmem:[#allocation3 + $0x38] sm:$0xff]
    %v2326 = vld [vmem:[#allocation3 + $0x40] sm:$0xff]
    %v2327 = vld [vmem:[#allocation3 + $0x48] sm:$0xff]
    %v2328 = vld [vmem:[#allocation3 + $0x50] sm:$0xff]
    %v2329 = vld [vmem:[#allocation3 + $0x58] sm:$0xff]
    %s2330 = scalar_lea.vmem %s4, 3
    %v2331 = vld [vmem:[%s2330] sm:$0x1]
    %v2332 = vld [vmem:[%s2330 + $0x1] sm:$0x1]
    %v2333 = vld [vmem:[%s2330 + $0x2] sm:$0x1]
    %v2335 = vlaneseq
    %v2336 = vshrl.u32 %v2335, 7
    %v2337 = vsub.s32 0, %v2336
    %v2338 = vrot.slane %v2331, %v2337
    %v2341 = vsel %vm332, %v2316, 0
    %v2344 = vsel %vm332, %v2317, 0
    %2346 = vmatprep.subr.mxu0 0.0
    %2347 = vmatpush1.msra.mxu0 0.0
    %2348 = vmatprep.subr.mxu0 0.0
    %2349 = vmatpush1.msra.mxu0 0.0
    %2350 = vmatprep.subr.mxu0 0.0
    %2351 = vmatpush1.msra.mxu0 0.0
    %2352 = vmatprep.subr.mxu0 0.0
    %2353 = vmatpush1.msra.mxu0 0.0
    %2354 = vmatprep.subr.mxu0 0.0
    %2355 = vmatpush1.msra.mxu0 0.0
    %2356 = vmatprep.subr.mxu0 0.0
    %2357 = vmatpush1.msra.mxu0 0.0
    %2358 = vmatprep.subr.mxu0 0.0
    %2359 = vmatpush1.msra.mxu0 0.0
    %2360 = vmatprep.subr.mxu0 0.0
    %2361 = vmatpush1.msra.mxu0 0.0
    %2362 = vmatprep.subr.mxu0 0.0
    %2363 = vmatpush1.msra.mxu0 0.0
    %2364 = vmatprep.subr.mxu0 0.0
    %2365 = vmatpush1.msra.mxu0 0.0
    %2366 = vmatprep.subr.mxu0 0.0
    %2367 = vmatpush1.msra.mxu0 0.0
    %2368 = vmatprep.subr.mxu0 0.0
    %2369 = vmatpush1.msra.mxu0 0.0
    %2370 = vmatprep.subr.mxu0 0.0
    %2371 = vmatpush1.msra.mxu0 %v2321
    %2372 = vmatprep.subr.mxu0 0.0
    %2373 = vmatpush1.msra.mxu0 %v2320
    %2374 = vmatprep.subr.mxu0 0.0
    %2375 = vmatpush1.msra.mxu0 %v2319
    %2376 = vmatprep.subr.mxu0 0.0
    %2377 = vmatpush1.msra.mxu0 %v2318
    %2378 = vmatprep.subr.mxu0 0.0
    %2379 = vmatpush2.msra.mxu0 0.0
    %2380 = vmatprep.subr.mxu0 0.0
    %2381 = vmatpush2.msra.mxu0 0.0
    %2382 = vmatprep.subr.mxu0 0.0
    %2383 = vmatpush2.msra.mxu0 0.0
    %2384 = vmatprep.subr.mxu0 0.0
    %2385 = vmatpush2.msra.mxu0 0.0
    %2386 = vmatprep.subr.mxu0 0.0
    %2387 = vmatpush2.msra.mxu0 0.0
    %2388 = vmatprep.subr.mxu0 0.0
    %2389 = vmatpush2.msra.mxu0 0.0
    %2390 = vmatprep.subr.mxu0 0.0
    %2391 = vmatpush2.msra.mxu0 0.0
    %2392 = vmatprep.subr.mxu0 0.0
    %2393 = vmatpush2.msra.mxu0 0.0
    %2394 = vmatprep.subr.mxu0 0.0
    %2395 = vmatpush2.msra.mxu0 0.0
    %2396 = vmatprep.subr.mxu0 0.0
    %2397 = vmatpush2.msra.mxu0 0.0
    %2398 = vmatprep.subr.mxu0 0.0
    %2399 = vmatpush2.msra.mxu0 0.0
    %2400 = vmatprep.subr.mxu0 0.0
    %2401 = vmatpush2.msra.mxu0 0.0
    %2402 = vmatprep.subr.mxu0 0.0
    %2403 = vmatpush2.msra.mxu0 0.0
    %2404 = vmatprep.subr.mxu0 0.0
    %2405 = vmatpush2.msra.mxu0 0.0
    %2406 = vmatprep.subr.mxu0 0.0
    %2407 = vmatpush2.msra.mxu0 0.0
    %2408 = vmatprep.subr.mxu0 0.0
    %2409 = vmatpush2.msra.mxu0 0.0
    %2410 = vmatprep.mubr.f32.mxu0 0.0
    %2411 = vmatmul.mubr.f32.gmra.mxu0 %v2341
    %v2412 = vpop.f32.mrf.mxu0
    %v2413 = vadd.f32 %v2338, %v2412
    %v2414 = vpop.f32.mrf.mxu0
    %2415 = vmatprep.mubr.f32.mxu0 0.0
    %2416 = vmatmul.mubr.f32.gmra.mxu0 %v2344
    %v2417 = vpop.f32.mrf.mxu0
    %v2418 = vadd.f32 %v2338, %v2417
    %v2419 = vpop.f32.mrf.mxu0
    %2420 = vdwg.mxu0
    %v2422 = vlaneseq
    %v2423 = vshrl.u32 %v2422, 7
    %v2424 = vsub.s32 0, %v2423
    %v2425 = vrot.slane %v2332, %v2424
    %2427 = vmatprep.subr.mxu0 0.0
    %2428 = vmatpush1.msra.mxu0 0.0
    %2429 = vmatprep.subr.mxu0 0.0
    %2430 = vmatpush1.msra.mxu0 0.0
    %2431 = vmatprep.subr.mxu0 0.0
    %2432 = vmatpush1.msra.mxu0 0.0
    %2433 = vmatprep.subr.mxu0 0.0
    %2434 = vmatpush1.msra.mxu0 0.0
    %2435 = vmatprep.subr.mxu0 0.0
    %2436 = vmatpush1.msra.mxu0 0.0
    %2437 = vmatprep.subr.mxu0 0.0
    %2438 = vmatpush1.msra.mxu0 0.0
    %2439 = vmatprep.subr.mxu0 0.0
    %2440 = vmatpush1.msra.mxu0 0.0
    %2441 = vmatprep.subr.mxu0 0.0
    %2442 = vmatpush1.msra.mxu0 0.0
    %2443 = vmatprep.subr.mxu0 0.0
    %2444 = vmatpush1.msra.mxu0 0.0
    %2445 = vmatprep.subr.mxu0 0.0
    %2446 = vmatpush1.msra.mxu0 0.0
    %2447 = vmatprep.subr.mxu0 0.0
    %2448 = vmatpush1.msra.mxu0 0.0
    %2449 = vmatprep.subr.mxu0 0.0
    %2450 = vmatpush1.msra.mxu0 0.0
    %2451 = vmatprep.subr.mxu0 0.0
    %2452 = vmatpush1.msra.mxu0 %v2325
    %2453 = vmatprep.subr.mxu0 0.0
    %2454 = vmatpush1.msra.mxu0 %v2324
    %2455 = vmatprep.subr.mxu0 0.0
    %2456 = vmatpush1.msra.mxu0 %v2323
    %2457 = vmatprep.subr.mxu0 0.0
    %2458 = vmatpush1.msra.mxu0 %v2322
    %2459 = vmatprep.subr.mxu0 0.0
    %2460 = vmatpush2.msra.mxu0 0.0
    %2461 = vmatprep.subr.mxu0 0.0
    %2462 = vmatpush2.msra.mxu0 0.0
    %2463 = vmatprep.subr.mxu0 0.0
    %2464 = vmatpush2.msra.mxu0 0.0
    %2465 = vmatprep.subr.mxu0 0.0
    %2466 = vmatpush2.msra.mxu0 0.0
    %2467 = vmatprep.subr.mxu0 0.0
    %2468 = vmatpush2.msra.mxu0 0.0
    %2469 = vmatprep.subr.mxu0 0.0
    %2470 = vmatpush2.msra.mxu0 0.0
    %2471 = vmatprep.subr.mxu0 0.0
    %2472 = vmatpush2.msra.mxu0 0.0
    %2473 = vmatprep.subr.mxu0 0.0
    %2474 = vmatpush2.msra.mxu0 0.0
    %2475 = vmatprep.subr.mxu0 0.0
    %2476 = vmatpush2.msra.mxu0 0.0
    %2477 = vmatprep.subr.mxu0 0.0
    %2478 = vmatpush2.msra.mxu0 0.0
    %2479 = vmatprep.subr.mxu0 0.0
    %2480 = vmatpush2.msra.mxu0 0.0
    %2481 = vmatprep.subr.mxu0 0.0
    %2482 = vmatpush2.msra.mxu0 0.0
    %2483 = vmatprep.subr.mxu0 0.0
    %2484 = vmatpush2.msra.mxu0 0.0
    %2485 = vmatprep.subr.mxu0 0.0
    %2486 = vmatpush2.msra.mxu0 0.0
    %2487 = vmatprep.subr.mxu0 0.0
    %2488 = vmatpush2.msra.mxu0 0.0
    %2489 = vmatprep.subr.mxu0 0.0
    %2490 = vmatpush2.msra.mxu0 0.0
    %2491 = vmatprep.mubr.f32.mxu0 0.0
    %2492 = vmatmul.mubr.f32.gmra.mxu0 %v2341
    %v2493 = vpop.f32.mrf.mxu0
    %v2494 = vadd.f32 %v2425, %v2493
    %v2495 = vpop.f32.mrf.mxu0
    %2496 = vmatprep.mubr.f32.mxu0 0.0
    %2497 = vmatmul.mubr.f32.gmra.mxu0 %v2344
    %v2498 = vpop.f32.mrf.mxu0
    %v2499 = vadd.f32 %v2425, %v2498
    %v2500 = vpop.f32.mrf.mxu0
    %2501 = vdwg.mxu0
    %v2503 = vlaneseq
    %v2504 = vshrl.u32 %v2503, 7
    %v2505 = vsub.s32 0, %v2504
    %v2506 = vrot.slane %v2333, %v2505
    %2508 = vmatprep.subr.mxu0 0.0
    %2509 = vmatpush1.msra.mxu0 0.0
    %2510 = vmatprep.subr.mxu0 0.0
    %2511 = vmatpush1.msra.mxu0 0.0
    %2512 = vmatprep.subr.mxu0 0.0
    %2513 = vmatpush1.msra.mxu0 0.0
    %2514 = vmatprep.subr.mxu0 0.0
    %2515 = vmatpush1.msra.mxu0 0.0
    %2516 = vmatprep.subr.mxu0 0.0
    %2517 = vmatpush1.msra.mxu0 0.0
    %2518 = vmatprep.subr.mxu0 0.0
    %2519 = vmatpush1.msra.mxu0 0.0
    %2520 = vmatprep.subr.mxu0 0.0
    %2521 = vmatpush1.msra.mxu0 0.0
    %2522 = vmatprep.subr.mxu0 0.0
    %2523 = vmatpush1.msra.mxu0 0.0
    %2524 = vmatprep.subr.mxu0 0.0
    %2525 = vmatpush1.msra.mxu0 0.0
    %2526 = vmatprep.subr.mxu0 0.0
    %2527 = vmatpush1.msra.mxu0 0.0
    %2528 = vmatprep.subr.mxu0 0.0
    %2529 = vmatpush1.msra.mxu0 0.0
    %2530 = vmatprep.subr.mxu0 0.0
    %2531 = vmatpush1.msra.mxu0 0.0
    %2532 = vmatprep.subr.mxu0 0.0
    %2533 = vmatpush1.msra.mxu0 %v2329
    %2534 = vmatprep.subr.mxu0 0.0
    %2535 = vmatpush1.msra.mxu0 %v2328
    %2536 = vmatprep.subr.mxu0 0.0
    %2537 = vmatpush1.msra.mxu0 %v2327
    %2538 = vmatprep.subr.mxu0 0.0
    %2539 = vmatpush1.msra.mxu0 %v2326
    %2540 = vmatprep.subr.mxu0 0.0
    %2541 = vmatpush2.msra.mxu0 0.0
    %2542 = vmatprep.subr.mxu0 0.0
    %2543 = vmatpush2.msra.mxu0 0.0
    %2544 = vmatprep.subr.mxu0 0.0
    %2545 = vmatpush2.msra.mxu0 0.0
    %2546 = vmatprep.subr.mxu0 0.0
    %2547 = vmatpush2.msra.mxu0 0.0
    %2548 = vmatprep.subr.mxu0 0.0
    %2549 = vmatpush2.msra.mxu0 0.0
    %2550 = vmatprep.subr.mxu0 0.0
    %2551 = vmatpush2.msra.mxu0 0.0
    %2552 = vmatprep.subr.mxu0 0.0
    %2553 = vmatpush2.msra.mxu0 0.0
    %2554 = vmatprep.subr.mxu0 0.0
    %2555 = vmatpush2.msra.mxu0 0.0
    %2556 = vmatprep.subr.mxu0 0.0
    %2557 = vmatpush2.msra.mxu0 0.0
    %2558 = vmatprep.subr.mxu0 0.0
    %2559 = vmatpush2.msra.mxu0 0.0
    %2560 = vmatprep.subr.mxu0 0.0
    %2561 = vmatpush2.msra.mxu0 0.0
    %2562 = vmatprep.subr.mxu0 0.0
    %2563 = vmatpush2.msra.mxu0 0.0
    %2564 = vmatprep.subr.mxu0 0.0
    %2565 = vmatpush2.msra.mxu0 0.0
    %2566 = vmatprep.subr.mxu0 0.0
    %2567 = vmatpush2.msra.mxu0 0.0
    %2568 = vmatprep.subr.mxu0 0.0
    %2569 = vmatpush2.msra.mxu0 0.0
    %2570 = vmatprep.subr.mxu0 0.0
    %2571 = vmatpush2.msra.mxu0 0.0
    %2572 = vmatprep.mubr.f32.mxu0 0.0
    %2573 = vmatmul.mubr.f32.gmra.mxu0 %v2341
    %v2574 = vpop.f32.mrf.mxu0
    %v2575 = vadd.f32 %v2506, %v2574
    %v2576 = vpop.f32.mrf.mxu0
    %2577 = vmatprep.mubr.f32.mxu0 0.0
    %2578 = vmatmul.mubr.f32.gmra.mxu0 %v2344
    %v2579 = vpop.f32.mrf.mxu0
    %v2580 = vadd.f32 %v2506, %v2579
    %v2581 = vpop.f32.mrf.mxu0
    %2582 = vdwg.mxu0
    %s2583 = scalar_lea.vmem [#allocation6], 96
    %v2584 = vld [vmem:[%s2583] sm:$0xff]
    %v2585 = vld [vmem:[%s2583 + $0x8] sm:$0xff]
    %v2586 = vld [vmem:[%s2583 + $0x10] sm:$0xff]
    %v2587 = vld [vmem:[%s2583 + $0x18] sm:$0xff]
    %v2588 = vld [vmem:[%s2583 + $0x20] sm:$0xff]
    %v2589 = vld [vmem:[%s2583 + $0x28] sm:$0xff]
    %v2590 = vld [vmem:[%s2583 + $0x30] sm:$0xff]
    %v2591 = vld [vmem:[%s2583 + $0x38] sm:$0xff]
    %v2592 = vld [vmem:[%s2583 + $0x40] sm:$0xff]
    %v2593 = vld [vmem:[%s2583 + $0x48] sm:$0xff]
    %v2594 = vld [vmem:[%s2583 + $0x50] sm:$0xff]
    %v2595 = vld [vmem:[%s2583 + $0x58] sm:$0xff]
    %s2596 = scalar_lea.vmem %s5, 1
    %v2597 = vld [vmem:[%s2596] sm:$0x1]
    %2598 = vmatprep.subr.mxu0 0.0
    %2599 = vmatpush1.msra.mxu0 0.0
    %2600 = vmatprep.subr.mxu0 0.0
    %2601 = vmatpush1.msra.mxu0 0.0
    %2602 = vmatprep.subr.mxu0 0.0
    %2603 = vmatpush1.msra.mxu0 0.0
    %2604 = vmatprep.subr.mxu0 0.0
    %2605 = vmatpush1.msra.mxu0 0.0
    %2606 = vmatprep.subr.mxu0 0.0
    %2607 = vmatpush1.msra.mxu0 0.0
    %2608 = vmatprep.subr.mxu0 0.0
    %2609 = vmatpush1.msra.mxu0 0.0
    %2610 = vmatprep.subr.mxu0 0.0
    %2611 = vmatpush1.msra.mxu0 0.0
    %2612 = vmatprep.subr.mxu0 0.0
    %2613 = vmatpush1.msra.mxu0 0.0
    %2614 = vmatprep.subr.mxu0 0.0
    %2615 = vmatpush1.msra.mxu0 0.0
    %2616 = vmatprep.subr.mxu0 0.0
    %2617 = vmatpush1.msra.mxu0 0.0
    %2618 = vmatprep.subr.mxu0 0.0
    %2619 = vmatpush1.msra.mxu0 0.0
    %2620 = vmatprep.subr.mxu0 0.0
    %2621 = vmatpush1.msra.mxu0 0.0
    %2622 = vmatprep.subr.mxu0 0.0
    %2623 = vmatpush1.msra.mxu0 %v2587
    %2624 = vmatprep.subr.mxu0 0.0
    %2625 = vmatpush1.msra.mxu0 %v2586
    %2626 = vmatprep.subr.mxu0 0.0
    %2627 = vmatpush1.msra.mxu0 %v2585
    %2628 = vmatprep.subr.mxu0 0.0
    %2629 = vmatpush1.msra.mxu0 %v2584
    %2630 = vmatprep.subr.mxu0 0.0
    %2631 = vmatpush2.msra.mxu0 0.0
    %2632 = vmatprep.subr.mxu0 0.0
    %2633 = vmatpush2.msra.mxu0 0.0
    %2634 = vmatprep.subr.mxu0 0.0
    %2635 = vmatpush2.msra.mxu0 0.0
    %2636 = vmatprep.subr.mxu0 0.0
    %2637 = vmatpush2.msra.mxu0 0.0
    %2638 = vmatprep.subr.mxu0 0.0
    %2639 = vmatpush2.msra.mxu0 0.0
    %2640 = vmatprep.subr.mxu0 0.0
    %2641 = vmatpush2.msra.mxu0 0.0
    %2642 = vmatprep.subr.mxu0 0.0
    %2643 = vmatpush2.msra.mxu0 0.0
    %2644 = vmatprep.subr.mxu0 0.0
    %2645 = vmatpush2.msra.mxu0 0.0
    %2646 = vmatprep.subr.mxu0 0.0
    %2647 = vmatpush2.msra.mxu0 0.0
    %2648 = vmatprep.subr.mxu0 0.0
    %2649 = vmatpush2.msra.mxu0 0.0
    %2650 = vmatprep.subr.mxu0 0.0
    %2651 = vmatpush2.msra.mxu0 0.0
    %2652 = vmatprep.subr.mxu0 0.0
    %2653 = vmatpush2.msra.mxu0 0.0
    %2654 = vmatprep.subr.mxu0 0.0
    %2655 = vmatpush2.msra.mxu0 0.0
    %2656 = vmatprep.subr.mxu0 0.0
    %2657 = vmatpush2.msra.mxu0 0.0
    %2658 = vmatprep.subr.mxu0 0.0
    %2659 = vmatpush2.msra.mxu0 0.0
    %2660 = vmatprep.subr.mxu0 0.0
    %2661 = vmatpush2.msra.mxu0 0.0
    %2662 = vmatprep.mubr.f32.mxu0 0.0
    %2663 = vmatmul.mubr.f32.gmra.mxu0 %v334
    %v2664 = vpop.f32.mrf.mxu0
    %v2665 = vadd.f32 0.0, %v2664
    %v2666 = vpop.f32.mrf.mxu0
    %2667 = vdwg.mxu0
    %2668 = vmatprep.subr.mxu0 0.0
    %2669 = vmatpush1.msra.mxu0 0.0
    %2670 = vmatprep.subr.mxu0 0.0
    %2671 = vmatpush1.msra.mxu0 0.0
    %2672 = vmatprep.subr.mxu0 0.0
    %2673 = vmatpush1.msra.mxu0 0.0
    %2674 = vmatprep.subr.mxu0 0.0
    %2675 = vmatpush1.msra.mxu0 0.0
    %2676 = vmatprep.subr.mxu0 0.0
    %2677 = vmatpush1.msra.mxu0 0.0
    %2678 = vmatprep.subr.mxu0 0.0
    %2679 = vmatpush1.msra.mxu0 0.0
    %2680 = vmatprep.subr.mxu0 0.0
    %2681 = vmatpush1.msra.mxu0 0.0
    %2682 = vmatprep.subr.mxu0 0.0
    %2683 = vmatpush1.msra.mxu0 0.0
    %2684 = vmatprep.subr.mxu0 0.0
    %2685 = vmatpush1.msra.mxu0 0.0
    %2686 = vmatprep.subr.mxu0 0.0
    %2687 = vmatpush1.msra.mxu0 0.0
    %2688 = vmatprep.subr.mxu0 0.0
    %2689 = vmatpush1.msra.mxu0 0.0
    %2690 = vmatprep.subr.mxu0 0.0
    %2691 = vmatpush1.msra.mxu0 0.0
    %2692 = vmatprep.subr.mxu0 0.0
    %2693 = vmatpush1.msra.mxu0 %v2591
    %2694 = vmatprep.subr.mxu0 0.0
    %2695 = vmatpush1.msra.mxu0 %v2590
    %2696 = vmatprep.subr.mxu0 0.0
    %2697 = vmatpush1.msra.mxu0 %v2589
    %2698 = vmatprep.subr.mxu0 0.0
    %2699 = vmatpush1.msra.mxu0 %v2588
    %2700 = vmatprep.subr.mxu0 0.0
    %2701 = vmatpush2.msra.mxu0 0.0
    %2702 = vmatprep.subr.mxu0 0.0
    %2703 = vmatpush2.msra.mxu0 0.0
    %2704 = vmatprep.subr.mxu0 0.0
    %2705 = vmatpush2.msra.mxu0 0.0
    %2706 = vmatprep.subr.mxu0 0.0
    %2707 = vmatpush2.msra.mxu0 0.0
    %2708 = vmatprep.subr.mxu0 0.0
    %2709 = vmatpush2.msra.mxu0 0.0
    %2710 = vmatprep.subr.mxu0 0.0
    %2711 = vmatpush2.msra.mxu0 0.0
    %2712 = vmatprep.subr.mxu0 0.0
    %2713 = vmatpush2.msra.mxu0 0.0
    %2714 = vmatprep.subr.mxu0 0.0
    %2715 = vmatpush2.msra.mxu0 0.0
    %2716 = vmatprep.subr.mxu0 0.0
    %2717 = vmatpush2.msra.mxu0 0.0
    %2718 = vmatprep.subr.mxu0 0.0
    %2719 = vmatpush2.msra.mxu0 0.0
    %2720 = vmatprep.subr.mxu0 0.0
    %2721 = vmatpush2.msra.mxu0 0.0
    %2722 = vmatprep.subr.mxu0 0.0
    %2723 = vmatpush2.msra.mxu0 0.0
    %2724 = vmatprep.subr.mxu0 0.0
    %2725 = vmatpush2.msra.mxu0 0.0
    %2726 = vmatprep.subr.mxu0 0.0
    %2727 = vmatpush2.msra.mxu0 0.0
    %2728 = vmatprep.subr.mxu0 0.0
    %2729 = vmatpush2.msra.mxu0 0.0
    %2730 = vmatprep.subr.mxu0 0.0
    %2731 = vmatpush2.msra.mxu0 0.0
    %2732 = vmatprep.mubr.f32.mxu0 0.0
    %2733 = vmatmul.mubr.f32.gmra.mxu0 %v334
    %v2734 = vpop.f32.mrf.mxu0
    %v2735 = vadd.f32 0.0, %v2734
    %v2736 = vpop.f32.mrf.mxu0
    %2737 = vdwg.mxu0
    %v2739 = vlaneseq
    %v2740 = vshrl.u32 %v2739, 7
    %v2741 = vsub.s32 0, %v2740
    %v2742 = vrot.slane %v2597, %v2741
    %2744 = vmatprep.subr.mxu0 0.0
    %2745 = vmatpush1.msra.mxu0 0.0
    %2746 = vmatprep.subr.mxu0 0.0
    %2747 = vmatpush1.msra.mxu0 0.0
    %2748 = vmatprep.subr.mxu0 0.0
    %2749 = vmatpush1.msra.mxu0 0.0
    %2750 = vmatprep.subr.mxu0 0.0
    %2751 = vmatpush1.msra.mxu0 0.0
    %2752 = vmatprep.subr.mxu0 0.0
    %2753 = vmatpush1.msra.mxu0 0.0
    %2754 = vmatprep.subr.mxu0 0.0
    %2755 = vmatpush1.msra.mxu0 0.0
    %2756 = vmatprep.subr.mxu0 0.0
    %2757 = vmatpush1.msra.mxu0 0.0
    %2758 = vmatprep.subr.mxu0 0.0
    %2759 = vmatpush1.msra.mxu0 0.0
    %2760 = vmatprep.subr.mxu0 0.0
    %2761 = vmatpush1.msra.mxu0 0.0
    %2762 = vmatprep.subr.mxu0 0.0
    %2763 = vmatpush1.msra.mxu0 0.0
    %2764 = vmatprep.subr.mxu0 0.0
    %2765 = vmatpush1.msra.mxu0 0.0
    %2766 = vmatprep.subr.mxu0 0.0
    %2767 = vmatpush1.msra.mxu0 0.0
    %2768 = vmatprep.subr.mxu0 0.0
    %2769 = vmatpush1.msra.mxu0 %v2595
    %2770 = vmatprep.subr.mxu0 0.0
    %2771 = vmatpush1.msra.mxu0 %v2594
    %2772 = vmatprep.subr.mxu0 0.0
    %2773 = vmatpush1.msra.mxu0 %v2593
    %2774 = vmatprep.subr.mxu0 0.0
    %2775 = vmatpush1.msra.mxu0 %v2592
    %2776 = vmatprep.subr.mxu0 0.0
    %2777 = vmatpush2.msra.mxu0 0.0
    %2778 = vmatprep.subr.mxu0 0.0
    %2779 = vmatpush2.msra.mxu0 0.0
    %2780 = vmatprep.subr.mxu0 0.0
    %2781 = vmatpush2.msra.mxu0 0.0
    %2782 = vmatprep.subr.mxu0 0.0
    %2783 = vmatpush2.msra.mxu0 0.0
    %2784 = vmatprep.subr.mxu0 0.0
    %2785 = vmatpush2.msra.mxu0 0.0
    %2786 = vmatprep.subr.mxu0 0.0
    %2787 = vmatpush2.msra.mxu0 0.0
    %2788 = vmatprep.subr.mxu0 0.0
    %2789 = vmatpush2.msra.mxu0 0.0
    %2790 = vmatprep.subr.mxu0 0.0
    %2791 = vmatpush2.msra.mxu0 0.0
    %2792 = vmatprep.subr.mxu0 0.0
    %2793 = vmatpush2.msra.mxu0 0.0
    %2794 = vmatprep.subr.mxu0 0.0
    %2795 = vmatpush2.msra.mxu0 0.0
    %2796 = vmatprep.subr.mxu0 0.0
    %2797 = vmatpush2.msra.mxu0 0.0
    %2798 = vmatprep.subr.mxu0 0.0
    %2799 = vmatpush2.msra.mxu0 0.0
    %2800 = vmatprep.subr.mxu0 0.0
    %2801 = vmatpush2.msra.mxu0 0.0
    %2802 = vmatprep.subr.mxu0 0.0
    %2803 = vmatpush2.msra.mxu0 0.0
    %2804 = vmatprep.subr.mxu0 0.0
    %2805 = vmatpush2.msra.mxu0 0.0
    %2806 = vmatprep.subr.mxu0 0.0
    %2807 = vmatpush2.msra.mxu0 0.0
    %2808 = vmatprep.mubr.f32.mxu0 0.0
    %2809 = vmatmul.mubr.f32.gmra.mxu0 %v334
    %v2810 = vpop.f32.mrf.mxu0
    %v2811 = vadd.f32 %v2742, %v2810
    %v2812 = vpop.f32.mrf.mxu0
    %2813 = vdwg.mxu0
    %v2814 = vadd.f32 %v2413, %v2665
    %v2815 = vxor.u32 %v2814, 2147483648
    %v2816 = vmul.f32 %v2815, 1.442695
    %v2817 = vpow.pop %v2816
    %v2818 = vadd.f32 %v2817, 1.0
    %v2819 = vrcp.pop %v2818
    %v2820 = vmul.f32 1.0, %v2819
    %v2821 = vadd.f32 %v2494, %v2735
    %v2822 = vxor.u32 %v2821, 2147483648
    %v2823 = vmul.f32 %v2822, 1.442695
    %v2824 = vpow.pop %v2823
    %v2825 = vadd.f32 %v2824, 1.0
    %v2826 = vrcp.pop %v2825
    %v2827 = vmul.f32 1.0, %v2826
    %v2828 = vmul.f32 %v2820, %v2811
    %v2829 = vadd.f32 %v2575, %v2828
    %v2830 = vtanh.pop %v2829
    %v2831 = vsub.f32 0.0, %v2830
    %v2832 = vmul.f32 %v2827, %v2831
    %v2833 = vadd.f32 %v2830, %v2832
    %v2835 = vsel %vm332, %v2833, 0
    %2837 = vmatprep.subr.mxu0 0.0
    %2838 = vmatpush1.msra.mxu0 0.0
    %2839 = vmatprep.subr.mxu0 0.0
    %2840 = vmatpush1.msra.mxu0 0.0
    %2841 = vmatprep.subr.mxu0 0.0
    %2842 = vmatpush1.msra.mxu0 0.0
    %2843 = vmatprep.subr.mxu0 0.0
    %2844 = vmatpush1.msra.mxu0 0.0
    %2845 = vmatprep.subr.mxu0 0.0
    %2846 = vmatpush1.msra.mxu0 0.0
    %2847 = vmatprep.subr.mxu0 0.0
    %2848 = vmatpush1.msra.mxu0 0.0
    %2849 = vmatprep.subr.mxu0 0.0
    %2850 = vmatpush1.msra.mxu0 0.0
    %2851 = vmatprep.subr.mxu0 0.0
    %2852 = vmatpush1.msra.mxu0 0.0
    %2853 = vmatprep.subr.mxu0 0.0
    %2854 = vmatpush1.msra.mxu0 0.0
    %2855 = vmatprep.subr.mxu0 0.0
    %2856 = vmatpush1.msra.mxu0 0.0
    %2857 = vmatprep.subr.mxu0 0.0
    %2858 = vmatpush1.msra.mxu0 0.0
    %2859 = vmatprep.subr.mxu0 0.0
    %2860 = vmatpush1.msra.mxu0 0.0
    %2861 = vmatprep.subr.mxu0 0.0
    %2862 = vmatpush1.msra.mxu0 %v2587
    %2863 = vmatprep.subr.mxu0 0.0
    %2864 = vmatpush1.msra.mxu0 %v2586
    %2865 = vmatprep.subr.mxu0 0.0
    %2866 = vmatpush1.msra.mxu0 %v2585
    %2867 = vmatprep.subr.mxu0 0.0
    %2868 = vmatpush1.msra.mxu0 %v2584
    %2869 = vmatprep.subr.mxu0 0.0
    %2870 = vmatpush2.msra.mxu0 0.0
    %2871 = vmatprep.subr.mxu0 0.0
    %2872 = vmatpush2.msra.mxu0 0.0
    %2873 = vmatprep.subr.mxu0 0.0
    %2874 = vmatpush2.msra.mxu0 0.0
    %2875 = vmatprep.subr.mxu0 0.0
    %2876 = vmatpush2.msra.mxu0 0.0
    %2877 = vmatprep.subr.mxu0 0.0
    %2878 = vmatpush2.msra.mxu0 0.0
    %2879 = vmatprep.subr.mxu0 0.0
    %2880 = vmatpush2.msra.mxu0 0.0
    %2881 = vmatprep.subr.mxu0 0.0
    %2882 = vmatpush2.msra.mxu0 0.0
    %2883 = vmatprep.subr.mxu0 0.0
    %2884 = vmatpush2.msra.mxu0 0.0
    %2885 = vmatprep.subr.mxu0 0.0
    %2886 = vmatpush2.msra.mxu0 0.0
    %2887 = vmatprep.subr.mxu0 0.0
    %2888 = vmatpush2.msra.mxu0 0.0
    %2889 = vmatprep.subr.mxu0 0.0
    %2890 = vmatpush2.msra.mxu0 0.0
    %2891 = vmatprep.subr.mxu0 0.0
    %2892 = vmatpush2.msra.mxu0 0.0
    %2893 = vmatprep.subr.mxu0 0.0
    %2894 = vmatpush2.msra.mxu0 0.0
    %2895 = vmatprep.subr.mxu0 0.0
    %2896 = vmatpush2.msra.mxu0 0.0
    %2897 = vmatprep.subr.mxu0 0.0
    %2898 = vmatpush2.msra.mxu0 0.0
    %2899 = vmatprep.subr.mxu0 0.0
    %2900 = vmatpush2.msra.mxu0 0.0
    %2901 = vmatprep.mubr.f32.mxu0 0.0
    %2902 = vmatmul.mubr.f32.gmra.mxu0 %v2835
    %v2903 = vpop.f32.mrf.mxu0
    %v2904 = vadd.f32 0.0, %v2903
    %v2905 = vpop.f32.mrf.mxu0
    %2906 = vdwg.mxu0
    %2907 = vmatprep.subr.mxu0 0.0
    %2908 = vmatpush1.msra.mxu0 0.0
    %2909 = vmatprep.subr.mxu0 0.0
    %2910 = vmatpush1.msra.mxu0 0.0
    %2911 = vmatprep.subr.mxu0 0.0
    %2912 = vmatpush1.msra.mxu0 0.0
    %2913 = vmatprep.subr.mxu0 0.0
    %2914 = vmatpush1.msra.mxu0 0.0
    %2915 = vmatprep.subr.mxu0 0.0
    %2916 = vmatpush1.msra.mxu0 0.0
    %2917 = vmatprep.subr.mxu0 0.0
    %2918 = vmatpush1.msra.mxu0 0.0
    %2919 = vmatprep.subr.mxu0 0.0
    %2920 = vmatpush1.msra.mxu0 0.0
    %2921 = vmatprep.subr.mxu0 0.0
    %2922 = vmatpush1.msra.mxu0 0.0
    %2923 = vmatprep.subr.mxu0 0.0
    %2924 = vmatpush1.msra.mxu0 0.0
    %2925 = vmatprep.subr.mxu0 0.0
    %2926 = vmatpush1.msra.mxu0 0.0
    %2927 = vmatprep.subr.mxu0 0.0
    %2928 = vmatpush1.msra.mxu0 0.0
    %2929 = vmatprep.subr.mxu0 0.0
    %2930 = vmatpush1.msra.mxu0 0.0
    %2931 = vmatprep.subr.mxu0 0.0
    %2932 = vmatpush1.msra.mxu0 %v2591
    %2933 = vmatprep.subr.mxu0 0.0
    %2934 = vmatpush1.msra.mxu0 %v2590
    %2935 = vmatprep.subr.mxu0 0.0
    %2936 = vmatpush1.msra.mxu0 %v2589
    %2937 = vmatprep.subr.mxu0 0.0
    %2938 = vmatpush1.msra.mxu0 %v2588
    %2939 = vmatprep.subr.mxu0 0.0
    %2940 = vmatpush2.msra.mxu0 0.0
    %2941 = vmatprep.subr.mxu0 0.0
    %2942 = vmatpush2.msra.mxu0 0.0
    %2943 = vmatprep.subr.mxu0 0.0
    %2944 = vmatpush2.msra.mxu0 0.0
    %2945 = vmatprep.subr.mxu0 0.0
    %2946 = vmatpush2.msra.mxu0 0.0
    %2947 = vmatprep.subr.mxu0 0.0
    %2948 = vmatpush2.msra.mxu0 0.0
    %2949 = vmatprep.subr.mxu0 0.0
    %2950 = vmatpush2.msra.mxu0 0.0
    %2951 = vmatprep.subr.mxu0 0.0
    %2952 = vmatpush2.msra.mxu0 0.0
    %2953 = vmatprep.subr.mxu0 0.0
    %2954 = vmatpush2.msra.mxu0 0.0
    %2955 = vmatprep.subr.mxu0 0.0
    %2956 = vmatpush2.msra.mxu0 0.0
    %2957 = vmatprep.subr.mxu0 0.0
    %2958 = vmatpush2.msra.mxu0 0.0
    %2959 = vmatprep.subr.mxu0 0.0
    %2960 = vmatpush2.msra.mxu0 0.0
    %2961 = vmatprep.subr.mxu0 0.0
    %2962 = vmatpush2.msra.mxu0 0.0
    %2963 = vmatprep.subr.mxu0 0.0
    %2964 = vmatpush2.msra.mxu0 0.0
    %2965 = vmatprep.subr.mxu0 0.0
    %2966 = vmatpush2.msra.mxu0 0.0
    %2967 = vmatprep.subr.mxu0 0.0
    %2968 = vmatpush2.msra.mxu0 0.0
    %2969 = vmatprep.subr.mxu0 0.0
    %2970 = vmatpush2.msra.mxu0 0.0
    %2971 = vmatprep.mubr.f32.mxu0 0.0
    %2972 = vmatmul.mubr.f32.gmra.mxu0 %v2835
    %v2973 = vpop.f32.mrf.mxu0
    %v2974 = vadd.f32 0.0, %v2973
    %v2975 = vpop.f32.mrf.mxu0
    %2976 = vdwg.mxu0
    %2977 = vmatprep.subr.mxu0 0.0
    %2978 = vmatpush1.msra.mxu0 0.0
    %2979 = vmatprep.subr.mxu0 0.0
    %2980 = vmatpush1.msra.mxu0 0.0
    %2981 = vmatprep.subr.mxu0 0.0
    %2982 = vmatpush1.msra.mxu0 0.0
    %2983 = vmatprep.subr.mxu0 0.0
    %2984 = vmatpush1.msra.mxu0 0.0
    %2985 = vmatprep.subr.mxu0 0.0
    %2986 = vmatpush1.msra.mxu0 0.0
    %2987 = vmatprep.subr.mxu0 0.0
    %2988 = vmatpush1.msra.mxu0 0.0
    %2989 = vmatprep.subr.mxu0 0.0
    %2990 = vmatpush1.msra.mxu0 0.0
    %2991 = vmatprep.subr.mxu0 0.0
    %2992 = vmatpush1.msra.mxu0 0.0
    %2993 = vmatprep.subr.mxu0 0.0
    %2994 = vmatpush1.msra.mxu0 0.0
    %2995 = vmatprep.subr.mxu0 0.0
    %2996 = vmatpush1.msra.mxu0 0.0
    %2997 = vmatprep.subr.mxu0 0.0
    %2998 = vmatpush1.msra.mxu0 0.0
    %2999 = vmatprep.subr.mxu0 0.0
    %3000 = vmatpush1.msra.mxu0 0.0
    %3001 = vmatprep.subr.mxu0 0.0
    %3002 = vmatpush1.msra.mxu0 %v2595
    %3003 = vmatprep.subr.mxu0 0.0
    %3004 = vmatpush1.msra.mxu0 %v2594
    %3005 = vmatprep.subr.mxu0 0.0
    %3006 = vmatpush1.msra.mxu0 %v2593
    %3007 = vmatprep.subr.mxu0 0.0
    %3008 = vmatpush1.msra.mxu0 %v2592
    %3009 = vmatprep.subr.mxu0 0.0
    %3010 = vmatpush2.msra.mxu0 0.0
    %3011 = vmatprep.subr.mxu0 0.0
    %3012 = vmatpush2.msra.mxu0 0.0
    %3013 = vmatprep.subr.mxu0 0.0
    %3014 = vmatpush2.msra.mxu0 0.0
    %3015 = vmatprep.subr.mxu0 0.0
    %3016 = vmatpush2.msra.mxu0 0.0
    %3017 = vmatprep.subr.mxu0 0.0
    %3018 = vmatpush2.msra.mxu0 0.0
    %3019 = vmatprep.subr.mxu0 0.0
    %3020 = vmatpush2.msra.mxu0 0.0
    %3021 = vmatprep.subr.mxu0 0.0
    %3022 = vmatpush2.msra.mxu0 0.0
    %3023 = vmatprep.subr.mxu0 0.0
    %3024 = vmatpush2.msra.mxu0 0.0
    %3025 = vmatprep.subr.mxu0 0.0
    %3026 = vmatpush2.msra.mxu0 0.0
    %3027 = vmatprep.subr.mxu0 0.0
    %3028 = vmatpush2.msra.mxu0 0.0
    %3029 = vmatprep.subr.mxu0 0.0
    %3030 = vmatpush2.msra.mxu0 0.0
    %3031 = vmatprep.subr.mxu0 0.0
    %3032 = vmatpush2.msra.mxu0 0.0
    %3033 = vmatprep.subr.mxu0 0.0
    %3034 = vmatpush2.msra.mxu0 0.0
    %3035 = vmatprep.subr.mxu0 0.0
    %3036 = vmatpush2.msra.mxu0 0.0
    %3037 = vmatprep.subr.mxu0 0.0
    %3038 = vmatpush2.msra.mxu0 0.0
    %3039 = vmatprep.subr.mxu0 0.0
    %3040 = vmatpush2.msra.mxu0 0.0
    %3041 = vmatprep.mubr.f32.mxu0 0.0
    %3042 = vmatmul.mubr.f32.gmra.mxu0 %v2835
    %v3043 = vpop.f32.mrf.mxu0
    %v3044 = vadd.f32 %v2742, %v3043
    %v3045 = vpop.f32.mrf.mxu0
    %3046 = vdwg.mxu0
    %v3048 = vrot.slane %v2904, 6
    %v3050 = vadd.f32 %v2413, %v3048
    %v3051 = vxor.u32 %v3050, 2147483648
    %v3052 = vmul.f32 %v3051, 1.442695
    %v3053 = vpow.pop %v3052
    %v3054 = vadd.f32 %v3053, 1.0
    %v3055 = vrcp.pop %v3054
    %v3056 = vmul.f32 1.0, %v3055
    %v3058 = vrot.slane %v2974, 6
    %v3060 = vadd.f32 %v2494, %v3058
    %v3061 = vxor.u32 %v3060, 2147483648
    %v3062 = vmul.f32 %v3061, 1.442695
    %v3063 = vpow.pop %v3062
    %v3064 = vadd.f32 %v3063, 1.0
    %v3065 = vrcp.pop %v3064
    %v3066 = vmul.f32 1.0, %v3065
    %v3068 = vrot.slane %v3044, 6
    %v3070 = vmul.f32 %v3056, %v3068
    %v3071 = vadd.f32 %v2575, %v3070
    %v3072 = vtanh.pop %v3071
    %v3074 = vrot.slane %v3072, 2
    %v3076 = vsub.f32 %v2833, %v3074
    %v3078 = vrot.slane %v3076, 6
    %v3080 = vmul.f32 %v3066, %v3078
    %v3081 = vadd.f32 %v3072, %v3080
    %v3083 = vrot.slane %v3081, 2
    %v3084 = vsel %vm332, %v3083, 0
    %3086 = vmatprep.subr.mxu0 0.0
    %3087 = vmatpush1.msra.mxu0 0.0
    %3088 = vmatprep.subr.mxu0 0.0
    %3089 = vmatpush1.msra.mxu0 0.0
    %3090 = vmatprep.subr.mxu0 0.0
    %3091 = vmatpush1.msra.mxu0 0.0
    %3092 = vmatprep.subr.mxu0 0.0
    %3093 = vmatpush1.msra.mxu0 0.0
    %3094 = vmatprep.subr.mxu0 0.0
    %3095 = vmatpush1.msra.mxu0 0.0
    %3096 = vmatprep.subr.mxu0 0.0
    %3097 = vmatpush1.msra.mxu0 0.0
    %3098 = vmatprep.subr.mxu0 0.0
    %3099 = vmatpush1.msra.mxu0 0.0
    %3100 = vmatprep.subr.mxu0 0.0
    %3101 = vmatpush1.msra.mxu0 0.0
    %3102 = vmatprep.subr.mxu0 0.0
    %3103 = vmatpush1.msra.mxu0 0.0
    %3104 = vmatprep.subr.mxu0 0.0
    %3105 = vmatpush1.msra.mxu0 0.0
    %3106 = vmatprep.subr.mxu0 0.0
    %3107 = vmatpush1.msra.mxu0 0.0
    %3108 = vmatprep.subr.mxu0 0.0
    %3109 = vmatpush1.msra.mxu0 0.0
    %3110 = vmatprep.subr.mxu0 0.0
    %3111 = vmatpush1.msra.mxu0 %v2587
    %3112 = vmatprep.subr.mxu0 0.0
    %3113 = vmatpush1.msra.mxu0 %v2586
    %3114 = vmatprep.subr.mxu0 0.0
    %3115 = vmatpush1.msra.mxu0 %v2585
    %3116 = vmatprep.subr.mxu0 0.0
    %3117 = vmatpush1.msra.mxu0 %v2584
    %3118 = vmatprep.subr.mxu0 0.0
    %3119 = vmatpush2.msra.mxu0 0.0
    %3120 = vmatprep.subr.mxu0 0.0
    %3121 = vmatpush2.msra.mxu0 0.0
    %3122 = vmatprep.subr.mxu0 0.0
    %3123 = vmatpush2.msra.mxu0 0.0
    %3124 = vmatprep.subr.mxu0 0.0
    %3125 = vmatpush2.msra.mxu0 0.0
    %3126 = vmatprep.subr.mxu0 0.0
    %3127 = vmatpush2.msra.mxu0 0.0
    %3128 = vmatprep.subr.mxu0 0.0
    %3129 = vmatpush2.msra.mxu0 0.0
    %3130 = vmatprep.subr.mxu0 0.0
    %3131 = vmatpush2.msra.mxu0 0.0
    %3132 = vmatprep.subr.mxu0 0.0
    %3133 = vmatpush2.msra.mxu0 0.0
    %3134 = vmatprep.subr.mxu0 0.0
    %3135 = vmatpush2.msra.mxu0 0.0
    %3136 = vmatprep.subr.mxu0 0.0
    %3137 = vmatpush2.msra.mxu0 0.0
    %3138 = vmatprep.subr.mxu0 0.0
    %3139 = vmatpush2.msra.mxu0 0.0
    %3140 = vmatprep.subr.mxu0 0.0
    %3141 = vmatpush2.msra.mxu0 0.0
    %3142 = vmatprep.subr.mxu0 0.0
    %3143 = vmatpush2.msra.mxu0 0.0
    %3144 = vmatprep.subr.mxu0 0.0
    %3145 = vmatpush2.msra.mxu0 0.0
    %3146 = vmatprep.subr.mxu0 0.0
    %3147 = vmatpush2.msra.mxu0 0.0
    %3148 = vmatprep.subr.mxu0 0.0
    %3149 = vmatpush2.msra.mxu0 0.0
    %3150 = vmatprep.mubr.f32.mxu0 0.0
    %3151 = vmatmul.mubr.f32.gmra.mxu0 %v3084
    %v3152 = vpop.f32.mrf.mxu0
    %v3153 = vadd.f32 0.0, %v3152
    %v3154 = vpop.f32.mrf.mxu0
    %3155 = vdwg.mxu0
    %3156 = vmatprep.subr.mxu0 0.0
    %3157 = vmatpush1.msra.mxu0 0.0
    %3158 = vmatprep.subr.mxu0 0.0
    %3159 = vmatpush1.msra.mxu0 0.0
    %3160 = vmatprep.subr.mxu0 0.0
    %3161 = vmatpush1.msra.mxu0 0.0
    %3162 = vmatprep.subr.mxu0 0.0
    %3163 = vmatpush1.msra.mxu0 0.0
    %3164 = vmatprep.subr.mxu0 0.0
    %3165 = vmatpush1.msra.mxu0 0.0
    %3166 = vmatprep.subr.mxu0 0.0
    %3167 = vmatpush1.msra.mxu0 0.0
    %3168 = vmatprep.subr.mxu0 0.0
    %3169 = vmatpush1.msra.mxu0 0.0
    %3170 = vmatprep.subr.mxu0 0.0
    %3171 = vmatpush1.msra.mxu0 0.0
    %3172 = vmatprep.subr.mxu0 0.0
    %3173 = vmatpush1.msra.mxu0 0.0
    %3174 = vmatprep.subr.mxu0 0.0
    %3175 = vmatpush1.msra.mxu0 0.0
    %3176 = vmatprep.subr.mxu0 0.0
    %3177 = vmatpush1.msra.mxu0 0.0
    %3178 = vmatprep.subr.mxu0 0.0
    %3179 = vmatpush1.msra.mxu0 0.0
    %3180 = vmatprep.subr.mxu0 0.0
    %3181 = vmatpush1.msra.mxu0 %v2591
    %3182 = vmatprep.subr.mxu0 0.0
    %3183 = vmatpush1.msra.mxu0 %v2590
    %3184 = vmatprep.subr.mxu0 0.0
    %3185 = vmatpush1.msra.mxu0 %v2589
    %3186 = vmatprep.subr.mxu0 0.0
    %3187 = vmatpush1.msra.mxu0 %v2588
    %3188 = vmatprep.subr.mxu0 0.0
    %3189 = vmatpush2.msra.mxu0 0.0
    %3190 = vmatprep.subr.mxu0 0.0
    %3191 = vmatpush2.msra.mxu0 0.0
    %3192 = vmatprep.subr.mxu0 0.0
    %3193 = vmatpush2.msra.mxu0 0.0
    %3194 = vmatprep.subr.mxu0 0.0
    %3195 = vmatpush2.msra.mxu0 0.0
    %3196 = vmatprep.subr.mxu0 0.0
    %3197 = vmatpush2.msra.mxu0 0.0
    %3198 = vmatprep.subr.mxu0 0.0
    %3199 = vmatpush2.msra.mxu0 0.0
    %3200 = vmatprep.subr.mxu0 0.0
    %3201 = vmatpush2.msra.mxu0 0.0
    %3202 = vmatprep.subr.mxu0 0.0
    %3203 = vmatpush2.msra.mxu0 0.0
    %3204 = vmatprep.subr.mxu0 0.0
    %3205 = vmatpush2.msra.mxu0 0.0
    %3206 = vmatprep.subr.mxu0 0.0
    %3207 = vmatpush2.msra.mxu0 0.0
    %3208 = vmatprep.subr.mxu0 0.0
    %3209 = vmatpush2.msra.mxu0 0.0
    %3210 = vmatprep.subr.mxu0 0.0
    %3211 = vmatpush2.msra.mxu0 0.0
    %3212 = vmatprep.subr.mxu0 0.0
    %3213 = vmatpush2.msra.mxu0 0.0
    %3214 = vmatprep.subr.mxu0 0.0
    %3215 = vmatpush2.msra.mxu0 0.0
    %3216 = vmatprep.subr.mxu0 0.0
    %3217 = vmatpush2.msra.mxu0 0.0
    %3218 = vmatprep.subr.mxu0 0.0
    %3219 = vmatpush2.msra.mxu0 0.0
    %3220 = vmatprep.mubr.f32.mxu0 0.0
    %3221 = vmatmul.mubr.f32.gmra.mxu0 %v3084
    %v3222 = vpop.f32.mrf.mxu0
    %v3223 = vadd.f32 0.0, %v3222
    %v3224 = vpop.f32.mrf.mxu0
    %3225 = vdwg.mxu0
    %3226 = vmatprep.subr.mxu0 0.0
    %3227 = vmatpush1.msra.mxu0 0.0
    %3228 = vmatprep.subr.mxu0 0.0
    %3229 = vmatpush1.msra.mxu0 0.0
    %3230 = vmatprep.subr.mxu0 0.0
    %3231 = vmatpush1.msra.mxu0 0.0
    %3232 = vmatprep.subr.mxu0 0.0
    %3233 = vmatpush1.msra.mxu0 0.0
    %3234 = vmatprep.subr.mxu0 0.0
    %3235 = vmatpush1.msra.mxu0 0.0
    %3236 = vmatprep.subr.mxu0 0.0
    %3237 = vmatpush1.msra.mxu0 0.0
    %3238 = vmatprep.subr.mxu0 0.0
    %3239 = vmatpush1.msra.mxu0 0.0
    %3240 = vmatprep.subr.mxu0 0.0
    %3241 = vmatpush1.msra.mxu0 0.0
    %3242 = vmatprep.subr.mxu0 0.0
    %3243 = vmatpush1.msra.mxu0 0.0
    %3244 = vmatprep.subr.mxu0 0.0
    %3245 = vmatpush1.msra.mxu0 0.0
    %3246 = vmatprep.subr.mxu0 0.0
    %3247 = vmatpush1.msra.mxu0 0.0
    %3248 = vmatprep.subr.mxu0 0.0
    %3249 = vmatpush1.msra.mxu0 0.0
    %3250 = vmatprep.subr.mxu0 0.0
    %3251 = vmatpush1.msra.mxu0 %v2595
    %3252 = vmatprep.subr.mxu0 0.0
    %3253 = vmatpush1.msra.mxu0 %v2594
    %3254 = vmatprep.subr.mxu0 0.0
    %3255 = vmatpush1.msra.mxu0 %v2593
    %3256 = vmatprep.subr.mxu0 0.0
    %3257 = vmatpush1.msra.mxu0 %v2592
    %3258 = vmatprep.subr.mxu0 0.0
    %3259 = vmatpush2.msra.mxu0 0.0
    %3260 = vmatprep.subr.mxu0 0.0
    %3261 = vmatpush2.msra.mxu0 0.0
    %3262 = vmatprep.subr.mxu0 0.0
    %3263 = vmatpush2.msra.mxu0 0.0
    %3264 = vmatprep.subr.mxu0 0.0
    %3265 = vmatpush2.msra.mxu0 0.0
    %3266 = vmatprep.subr.mxu0 0.0
    %3267 = vmatpush2.msra.mxu0 0.0
    %3268 = vmatprep.subr.mxu0 0.0
    %3269 = vmatpush2.msra.mxu0 0.0
    %3270 = vmatprep.subr.mxu0 0.0
    %3271 = vmatpush2.msra.mxu0 0.0
    %3272 = vmatprep.subr.mxu0 0.0
    %3273 = vmatpush2.msra.mxu0 0.0
    %3274 = vmatprep.subr.mxu0 0.0
    %3275 = vmatpush2.msra.mxu0 0.0
    %3276 = vmatprep.subr.mxu0 0.0
    %3277 = vmatpush2.msra.mxu0 0.0
    %3278 = vmatprep.subr.mxu0 0.0
    %3279 = vmatpush2.msra.mxu0 0.0
    %3280 = vmatprep.subr.mxu0 0.0
    %3281 = vmatpush2.msra.mxu0 0.0
    %3282 = vmatprep.subr.mxu0 0.0
    %3283 = vmatpush2.msra.mxu0 0.0
    %3284 = vmatprep.subr.mxu0 0.0
    %3285 = vmatpush2.msra.mxu0 0.0
    %3286 = vmatprep.subr.mxu0 0.0
    %3287 = vmatpush2.msra.mxu0 0.0
    %3288 = vmatprep.subr.mxu0 0.0
    %3289 = vmatpush2.msra.mxu0 0.0
    %3290 = vmatprep.mubr.f32.mxu0 0.0
    %3291 = vmatmul.mubr.f32.gmra.mxu0 %v3084
    %v3292 = vpop.f32.mrf.mxu0
    %v3293 = vadd.f32 %v2742, %v3292
    %v3294 = vpop.f32.mrf.mxu0
    %3295 = vdwg.mxu0
    %v3297 = vrot.slane %v3153, 4
    %v3299 = vadd.f32 %v2413, %v3297
    %v3300 = vxor.u32 %v3299, 2147483648
    %v3301 = vmul.f32 %v3300, 1.442695
    %v3302 = vpow.pop %v3301
    %v3303 = vadd.f32 %v3302, 1.0
    %v3304 = vrcp.pop %v3303
    %v3305 = vmul.f32 1.0, %v3304
    %v3307 = vrot.slane %v3223, 4
    %v3309 = vadd.f32 %v2494, %v3307
    %v3310 = vxor.u32 %v3309, 2147483648
    %v3311 = vmul.f32 %v3310, 1.442695
    %v3312 = vpow.pop %v3311
    %v3313 = vadd.f32 %v3312, 1.0
    %v3314 = vrcp.pop %v3313
    %v3315 = vmul.f32 1.0, %v3314
    %v3317 = vrot.slane %v3293, 4
    %v3319 = vmul.f32 %v3305, %v3317
    %v3320 = vadd.f32 %v2575, %v3319
    %v3321 = vtanh.pop %v3320
    %v3323 = vrot.slane %v3321, 2
    %v3325 = vsub.f32 %v3081, %v3323
    %v3327 = vrot.slane %v3325, 6
    %v3329 = vmul.f32 %v3315, %v3327
    %v3330 = vadd.f32 %v3321, %v3329
    %v3332 = vrot.slane %v3330, 4
    %v3333 = vsel %vm332, %v3332, 0
    %3335 = vmatprep.subr.mxu0 0.0
    %3336 = vmatpush1.msra.mxu0 0.0
    %3337 = vmatprep.subr.mxu0 0.0
    %3338 = vmatpush1.msra.mxu0 0.0
    %3339 = vmatprep.subr.mxu0 0.0
    %3340 = vmatpush1.msra.mxu0 0.0
    %3341 = vmatprep.subr.mxu0 0.0
    %3342 = vmatpush1.msra.mxu0 0.0
    %3343 = vmatprep.subr.mxu0 0.0
    %3344 = vmatpush1.msra.mxu0 0.0
    %3345 = vmatprep.subr.mxu0 0.0
    %3346 = vmatpush1.msra.mxu0 0.0
    %3347 = vmatprep.subr.mxu0 0.0
    %3348 = vmatpush1.msra.mxu0 0.0
    %3349 = vmatprep.subr.mxu0 0.0
    %3350 = vmatpush1.msra.mxu0 0.0
    %3351 = vmatprep.subr.mxu0 0.0
    %3352 = vmatpush1.msra.mxu0 0.0
    %3353 = vmatprep.subr.mxu0 0.0
    %3354 = vmatpush1.msra.mxu0 0.0
    %3355 = vmatprep.subr.mxu0 0.0
    %3356 = vmatpush1.msra.mxu0 0.0
    %3357 = vmatprep.subr.mxu0 0.0
    %3358 = vmatpush1.msra.mxu0 0.0
    %3359 = vmatprep.subr.mxu0 0.0
    %3360 = vmatpush1.msra.mxu0 %v2587
    %3361 = vmatprep.subr.mxu0 0.0
    %3362 = vmatpush1.msra.mxu0 %v2586
    %3363 = vmatprep.subr.mxu0 0.0
    %3364 = vmatpush1.msra.mxu0 %v2585
    %3365 = vmatprep.subr.mxu0 0.0
    %3366 = vmatpush1.msra.mxu0 %v2584
    %3367 = vmatprep.subr.mxu0 0.0
    %3368 = vmatpush2.msra.mxu0 0.0
    %3369 = vmatprep.subr.mxu0 0.0
    %3370 = vmatpush2.msra.mxu0 0.0
    %3371 = vmatprep.subr.mxu0 0.0
    %3372 = vmatpush2.msra.mxu0 0.0
    %3373 = vmatprep.subr.mxu0 0.0
    %3374 = vmatpush2.msra.mxu0 0.0
    %3375 = vmatprep.subr.mxu0 0.0
    %3376 = vmatpush2.msra.mxu0 0.0
    %3377 = vmatprep.subr.mxu0 0.0
    %3378 = vmatpush2.msra.mxu0 0.0
    %3379 = vmatprep.subr.mxu0 0.0
    %3380 = vmatpush2.msra.mxu0 0.0
    %3381 = vmatprep.subr.mxu0 0.0
    %3382 = vmatpush2.msra.mxu0 0.0
    %3383 = vmatprep.subr.mxu0 0.0
    %3384 = vmatpush2.msra.mxu0 0.0
    %3385 = vmatprep.subr.mxu0 0.0
    %3386 = vmatpush2.msra.mxu0 0.0
    %3387 = vmatprep.subr.mxu0 0.0
    %3388 = vmatpush2.msra.mxu0 0.0
    %3389 = vmatprep.subr.mxu0 0.0
    %3390 = vmatpush2.msra.mxu0 0.0
    %3391 = vmatprep.subr.mxu0 0.0
    %3392 = vmatpush2.msra.mxu0 0.0
    %3393 = vmatprep.subr.mxu0 0.0
    %3394 = vmatpush2.msra.mxu0 0.0
    %3395 = vmatprep.subr.mxu0 0.0
    %3396 = vmatpush2.msra.mxu0 0.0
    %3397 = vmatprep.subr.mxu0 0.0
    %3398 = vmatpush2.msra.mxu0 0.0
    %3399 = vmatprep.mubr.f32.mxu0 0.0
    %3400 = vmatmul.mubr.f32.gmra.mxu0 %v3333
    %v3401 = vpop.f32.mrf.mxu0
    %v3402 = vadd.f32 0.0, %v3401
    %v3403 = vpop.f32.mrf.mxu0
    %3404 = vdwg.mxu0
    %3405 = vmatprep.subr.mxu0 0.0
    %3406 = vmatpush1.msra.mxu0 0.0
    %3407 = vmatprep.subr.mxu0 0.0
    %3408 = vmatpush1.msra.mxu0 0.0
    %3409 = vmatprep.subr.mxu0 0.0
    %3410 = vmatpush1.msra.mxu0 0.0
    %3411 = vmatprep.subr.mxu0 0.0
    %3412 = vmatpush1.msra.mxu0 0.0
    %3413 = vmatprep.subr.mxu0 0.0
    %3414 = vmatpush1.msra.mxu0 0.0
    %3415 = vmatprep.subr.mxu0 0.0
    %3416 = vmatpush1.msra.mxu0 0.0
    %3417 = vmatprep.subr.mxu0 0.0
    %3418 = vmatpush1.msra.mxu0 0.0
    %3419 = vmatprep.subr.mxu0 0.0
    %3420 = vmatpush1.msra.mxu0 0.0
    %3421 = vmatprep.subr.mxu0 0.0
    %3422 = vmatpush1.msra.mxu0 0.0
    %3423 = vmatprep.subr.mxu0 0.0
    %3424 = vmatpush1.msra.mxu0 0.0
    %3425 = vmatprep.subr.mxu0 0.0
    %3426 = vmatpush1.msra.mxu0 0.0
    %3427 = vmatprep.subr.mxu0 0.0
    %3428 = vmatpush1.msra.mxu0 0.0
    %3429 = vmatprep.subr.mxu0 0.0
    %3430 = vmatpush1.msra.mxu0 %v2591
    %3431 = vmatprep.subr.mxu0 0.0
    %3432 = vmatpush1.msra.mxu0 %v2590
    %3433 = vmatprep.subr.mxu0 0.0
    %3434 = vmatpush1.msra.mxu0 %v2589
    %3435 = vmatprep.subr.mxu0 0.0
    %3436 = vmatpush1.msra.mxu0 %v2588
    %3437 = vmatprep.subr.mxu0 0.0
    %3438 = vmatpush2.msra.mxu0 0.0
    %3439 = vmatprep.subr.mxu0 0.0
    %3440 = vmatpush2.msra.mxu0 0.0
    %3441 = vmatprep.subr.mxu0 0.0
    %3442 = vmatpush2.msra.mxu0 0.0
    %3443 = vmatprep.subr.mxu0 0.0
    %3444 = vmatpush2.msra.mxu0 0.0
    %3445 = vmatprep.subr.mxu0 0.0
    %3446 = vmatpush2.msra.mxu0 0.0
    %3447 = vmatprep.subr.mxu0 0.0
    %3448 = vmatpush2.msra.mxu0 0.0
    %3449 = vmatprep.subr.mxu0 0.0
    %3450 = vmatpush2.msra.mxu0 0.0
    %3451 = vmatprep.subr.mxu0 0.0
    %3452 = vmatpush2.msra.mxu0 0.0
    %3453 = vmatprep.subr.mxu0 0.0
    %3454 = vmatpush2.msra.mxu0 0.0
    %3455 = vmatprep.subr.mxu0 0.0
    %3456 = vmatpush2.msra.mxu0 0.0
    %3457 = vmatprep.subr.mxu0 0.0
    %3458 = vmatpush2.msra.mxu0 0.0
    %3459 = vmatprep.subr.mxu0 0.0
    %3460 = vmatpush2.msra.mxu0 0.0
    %3461 = vmatprep.subr.mxu0 0.0
    %3462 = vmatpush2.msra.mxu0 0.0
    %3463 = vmatprep.subr.mxu0 0.0
    %3464 = vmatpush2.msra.mxu0 0.0
    %3465 = vmatprep.subr.mxu0 0.0
    %3466 = vmatpush2.msra.mxu0 0.0
    %3467 = vmatprep.subr.mxu0 0.0
    %3468 = vmatpush2.msra.mxu0 0.0
    %3469 = vmatprep.mubr.f32.mxu0 0.0
    %3470 = vmatmul.mubr.f32.gmra.mxu0 %v3333
    %v3471 = vpop.f32.mrf.mxu0
    %v3472 = vadd.f32 0.0, %v3471
    %v3473 = vpop.f32.mrf.mxu0
    %3474 = vdwg.mxu0
    %3475 = vmatprep.subr.mxu0 0.0
    %3476 = vmatpush1.msra.mxu0 0.0
    %3477 = vmatprep.subr.mxu0 0.0
    %3478 = vmatpush1.msra.mxu0 0.0
    %3479 = vmatprep.subr.mxu0 0.0
    %3480 = vmatpush1.msra.mxu0 0.0
    %3481 = vmatprep.subr.mxu0 0.0
    %3482 = vmatpush1.msra.mxu0 0.0
    %3483 = vmatprep.subr.mxu0 0.0
    %3484 = vmatpush1.msra.mxu0 0.0
    %3485 = vmatprep.subr.mxu0 0.0
    %3486 = vmatpush1.msra.mxu0 0.0
    %3487 = vmatprep.subr.mxu0 0.0
    %3488 = vmatpush1.msra.mxu0 0.0
    %3489 = vmatprep.subr.mxu0 0.0
    %3490 = vmatpush1.msra.mxu0 0.0
    %3491 = vmatprep.subr.mxu0 0.0
    %3492 = vmatpush1.msra.mxu0 0.0
    %3493 = vmatprep.subr.mxu0 0.0
    %3494 = vmatpush1.msra.mxu0 0.0
    %3495 = vmatprep.subr.mxu0 0.0
    %3496 = vmatpush1.msra.mxu0 0.0
    %3497 = vmatprep.subr.mxu0 0.0
    %3498 = vmatpush1.msra.mxu0 0.0
    %3499 = vmatprep.subr.mxu0 0.0
    %3500 = vmatpush1.msra.mxu0 %v2595
    %3501 = vmatprep.subr.mxu0 0.0
    %3502 = vmatpush1.msra.mxu0 %v2594
    %3503 = vmatprep.subr.mxu0 0.0
    %3504 = vmatpush1.msra.mxu0 %v2593
    %3505 = vmatprep.subr.mxu0 0.0
    %3506 = vmatpush1.msra.mxu0 %v2592
    %3507 = vmatprep.subr.mxu0 0.0
    %3508 = vmatpush2.msra.mxu0 0.0
    %3509 = vmatprep.subr.mxu0 0.0
    %3510 = vmatpush2.msra.mxu0 0.0
    %3511 = vmatprep.subr.mxu0 0.0
    %3512 = vmatpush2.msra.mxu0 0.0
    %3513 = vmatprep.subr.mxu0 0.0
    %3514 = vmatpush2.msra.mxu0 0.0
    %3515 = vmatprep.subr.mxu0 0.0
    %3516 = vmatpush2.msra.mxu0 0.0
    %3517 = vmatprep.subr.mxu0 0.0
    %3518 = vmatpush2.msra.mxu0 0.0
    %3519 = vmatprep.subr.mxu0 0.0
    %3520 = vmatpush2.msra.mxu0 0.0
    %3521 = vmatprep.subr.mxu0 0.0
    %3522 = vmatpush2.msra.mxu0 0.0
    %3523 = vmatprep.subr.mxu0 0.0
    %3524 = vmatpush2.msra.mxu0 0.0
    %3525 = vmatprep.subr.mxu0 0.0
    %3526 = vmatpush2.msra.mxu0 0.0
    %3527 = vmatprep.subr.mxu0 0.0
    %3528 = vmatpush2.msra.mxu0 0.0
    %3529 = vmatprep.subr.mxu0 0.0
    %3530 = vmatpush2.msra.mxu0 0.0
    %3531 = vmatprep.subr.mxu0 0.0
    %3532 = vmatpush2.msra.mxu0 0.0
    %3533 = vmatprep.subr.mxu0 0.0
    %3534 = vmatpush2.msra.mxu0 0.0
    %3535 = vmatprep.subr.mxu0 0.0
    %3536 = vmatpush2.msra.mxu0 0.0
    %3537 = vmatprep.subr.mxu0 0.0
    %3538 = vmatpush2.msra.mxu0 0.0
    %3539 = vmatprep.mubr.f32.mxu0 0.0
    %3540 = vmatmul.mubr.f32.gmra.mxu0 %v3333
    %v3541 = vpop.f32.mrf.mxu0
    %v3542 = vadd.f32 %v2742, %v3541
    %v3543 = vpop.f32.mrf.mxu0
    %3544 = vdwg.mxu0
    %v3546 = vrot.slane %v3402, 2
    %v3548 = vadd.f32 %v2413, %v3546
    %v3549 = vxor.u32 %v3548, 2147483648
    %v3550 = vmul.f32 %v3549, 1.442695
    %v3551 = vpow.pop %v3550
    %v3552 = vadd.f32 %v3551, 1.0
    %v3553 = vrcp.pop %v3552
    %v3554 = vmul.f32 1.0, %v3553
    %v3556 = vrot.slane %v3472, 2
    %v3558 = vadd.f32 %v2494, %v3556
    %v3559 = vxor.u32 %v3558, 2147483648
    %v3560 = vmul.f32 %v3559, 1.442695
    %v3561 = vpow.pop %v3560
    %v3562 = vadd.f32 %v3561, 1.0
    %v3563 = vrcp.pop %v3562
    %v3564 = vmul.f32 1.0, %v3563
    %v3566 = vrot.slane %v3542, 2
    %v3568 = vmul.f32 %v3554, %v3566
    %v3569 = vadd.f32 %v2575, %v3568
    %v3570 = vtanh.pop %v3569
    %v3572 = vrot.slane %v3570, 2
    %v3574 = vsub.f32 %v3330, %v3572
    %v3576 = vrot.slane %v3574, 6
    %v3578 = vmul.f32 %v3564, %v3576
    %v3579 = vadd.f32 %v3570, %v3578
    %v3581 = vrot.slane %v3579, 6
    %v3582 = vsel %vm332, %v3581, 0
    %3584 = vmatprep.subr.mxu0 0.0
    %3585 = vmatpush1.msra.mxu0 0.0
    %3586 = vmatprep.subr.mxu0 0.0
    %3587 = vmatpush1.msra.mxu0 0.0
    %3588 = vmatprep.subr.mxu0 0.0
    %3589 = vmatpush1.msra.mxu0 0.0
    %3590 = vmatprep.subr.mxu0 0.0
    %3591 = vmatpush1.msra.mxu0 0.0
    %3592 = vmatprep.subr.mxu0 0.0
    %3593 = vmatpush1.msra.mxu0 0.0
    %3594 = vmatprep.subr.mxu0 0.0
    %3595 = vmatpush1.msra.mxu0 0.0
    %3596 = vmatprep.subr.mxu0 0.0
    %3597 = vmatpush1.msra.mxu0 0.0
    %3598 = vmatprep.subr.mxu0 0.0
    %3599 = vmatpush1.msra.mxu0 0.0
    %3600 = vmatprep.subr.mxu0 0.0
    %3601 = vmatpush1.msra.mxu0 0.0
    %3602 = vmatprep.subr.mxu0 0.0
    %3603 = vmatpush1.msra.mxu0 0.0
    %3604 = vmatprep.subr.mxu0 0.0
    %3605 = vmatpush1.msra.mxu0 0.0
    %3606 = vmatprep.subr.mxu0 0.0
    %3607 = vmatpush1.msra.mxu0 0.0
    %3608 = vmatprep.subr.mxu0 0.0
    %3609 = vmatpush1.msra.mxu0 %v2587
    %3610 = vmatprep.subr.mxu0 0.0
    %3611 = vmatpush1.msra.mxu0 %v2586
    %3612 = vmatprep.subr.mxu0 0.0
    %3613 = vmatpush1.msra.mxu0 %v2585
    %3614 = vmatprep.subr.mxu0 0.0
    %3615 = vmatpush1.msra.mxu0 %v2584
    %3616 = vmatprep.subr.mxu0 0.0
    %3617 = vmatpush2.msra.mxu0 0.0
    %3618 = vmatprep.subr.mxu0 0.0
    %3619 = vmatpush2.msra.mxu0 0.0
    %3620 = vmatprep.subr.mxu0 0.0
    %3621 = vmatpush2.msra.mxu0 0.0
    %3622 = vmatprep.subr.mxu0 0.0
    %3623 = vmatpush2.msra.mxu0 0.0
    %3624 = vmatprep.subr.mxu0 0.0
    %3625 = vmatpush2.msra.mxu0 0.0
    %3626 = vmatprep.subr.mxu0 0.0
    %3627 = vmatpush2.msra.mxu0 0.0
    %3628 = vmatprep.subr.mxu0 0.0
    %3629 = vmatpush2.msra.mxu0 0.0
    %3630 = vmatprep.subr.mxu0 0.0
    %3631 = vmatpush2.msra.mxu0 0.0
    %3632 = vmatprep.subr.mxu0 0.0
    %3633 = vmatpush2.msra.mxu0 0.0
    %3634 = vmatprep.subr.mxu0 0.0
    %3635 = vmatpush2.msra.mxu0 0.0
    %3636 = vmatprep.subr.mxu0 0.0
    %3637 = vmatpush2.msra.mxu0 0.0
    %3638 = vmatprep.subr.mxu0 0.0
    %3639 = vmatpush2.msra.mxu0 0.0
    %3640 = vmatprep.subr.mxu0 0.0
    %3641 = vmatpush2.msra.mxu0 0.0
    %3642 = vmatprep.subr.mxu0 0.0
    %3643 = vmatpush2.msra.mxu0 0.0
    %3644 = vmatprep.subr.mxu0 0.0
    %3645 = vmatpush2.msra.mxu0 0.0
    %3646 = vmatprep.subr.mxu0 0.0
    %3647 = vmatpush2.msra.mxu0 0.0
    %3648 = vmatprep.mubr.f32.mxu0 0.0
    %3649 = vmatmul.mubr.f32.gmra.mxu0 %v3582
    %v3650 = vpop.f32.mrf.mxu0
    %v3651 = vadd.f32 0.0, %v3650
    %v3652 = vpop.f32.mrf.mxu0
    %3653 = vdwg.mxu0
    %3654 = vmatprep.subr.mxu0 0.0
    %3655 = vmatpush1.msra.mxu0 0.0
    %3656 = vmatprep.subr.mxu0 0.0
    %3657 = vmatpush1.msra.mxu0 0.0
    %3658 = vmatprep.subr.mxu0 0.0
    %3659 = vmatpush1.msra.mxu0 0.0
    %3660 = vmatprep.subr.mxu0 0.0
    %3661 = vmatpush1.msra.mxu0 0.0
    %3662 = vmatprep.subr.mxu0 0.0
    %3663 = vmatpush1.msra.mxu0 0.0
    %3664 = vmatprep.subr.mxu0 0.0
    %3665 = vmatpush1.msra.mxu0 0.0
    %3666 = vmatprep.subr.mxu0 0.0
    %3667 = vmatpush1.msra.mxu0 0.0
    %3668 = vmatprep.subr.mxu0 0.0
    %3669 = vmatpush1.msra.mxu0 0.0
    %3670 = vmatprep.subr.mxu0 0.0
    %3671 = vmatpush1.msra.mxu0 0.0
    %3672 = vmatprep.subr.mxu0 0.0
    %3673 = vmatpush1.msra.mxu0 0.0
    %3674 = vmatprep.subr.mxu0 0.0
    %3675 = vmatpush1.msra.mxu0 0.0
    %3676 = vmatprep.subr.mxu0 0.0
    %3677 = vmatpush1.msra.mxu0 0.0
    %3678 = vmatprep.subr.mxu0 0.0
    %3679 = vmatpush1.msra.mxu0 %v2591
    %3680 = vmatprep.subr.mxu0 0.0
    %3681 = vmatpush1.msra.mxu0 %v2590
    %3682 = vmatprep.subr.mxu0 0.0
    %3683 = vmatpush1.msra.mxu0 %v2589
    %3684 = vmatprep.subr.mxu0 0.0
    %3685 = vmatpush1.msra.mxu0 %v2588
    %3686 = vmatprep.subr.mxu0 0.0
    %3687 = vmatpush2.msra.mxu0 0.0
    %3688 = vmatprep.subr.mxu0 0.0
    %3689 = vmatpush2.msra.mxu0 0.0
    %3690 = vmatprep.subr.mxu0 0.0
    %3691 = vmatpush2.msra.mxu0 0.0
    %3692 = vmatprep.subr.mxu0 0.0
    %3693 = vmatpush2.msra.mxu0 0.0
    %3694 = vmatprep.subr.mxu0 0.0
    %3695 = vmatpush2.msra.mxu0 0.0
    %3696 = vmatprep.subr.mxu0 0.0
    %3697 = vmatpush2.msra.mxu0 0.0
    %3698 = vmatprep.subr.mxu0 0.0
    %3699 = vmatpush2.msra.mxu0 0.0
    %3700 = vmatprep.subr.mxu0 0.0
    %3701 = vmatpush2.msra.mxu0 0.0
    %3702 = vmatprep.subr.mxu0 0.0
    %3703 = vmatpush2.msra.mxu0 0.0
    %3704 = vmatprep.subr.mxu0 0.0
    %3705 = vmatpush2.msra.mxu0 0.0
    %3706 = vmatprep.subr.mxu0 0.0
    %3707 = vmatpush2.msra.mxu0 0.0
    %3708 = vmatprep.subr.mxu0 0.0
    %3709 = vmatpush2.msra.mxu0 0.0
    %3710 = vmatprep.subr.mxu0 0.0
    %3711 = vmatpush2.msra.mxu0 0.0
    %3712 = vmatprep.subr.mxu0 0.0
    %3713 = vmatpush2.msra.mxu0 0.0
    %3714 = vmatprep.subr.mxu0 0.0
    %3715 = vmatpush2.msra.mxu0 0.0
    %3716 = vmatprep.subr.mxu0 0.0
    %3717 = vmatpush2.msra.mxu0 0.0
    %3718 = vmatprep.mubr.f32.mxu0 0.0
    %3719 = vmatmul.mubr.f32.gmra.mxu0 %v3582
    %v3720 = vpop.f32.mrf.mxu0
    %v3721 = vadd.f32 0.0, %v3720
    %v3722 = vpop.f32.mrf.mxu0
    %3723 = vdwg.mxu0
    %3724 = vmatprep.subr.mxu0 0.0
    %3725 = vmatpush1.msra.mxu0 0.0
    %3726 = vmatprep.subr.mxu0 0.0
    %3727 = vmatpush1.msra.mxu0 0.0
    %3728 = vmatprep.subr.mxu0 0.0
    %3729 = vmatpush1.msra.mxu0 0.0
    %3730 = vmatprep.subr.mxu0 0.0
    %3731 = vmatpush1.msra.mxu0 0.0
    %3732 = vmatprep.subr.mxu0 0.0
    %3733 = vmatpush1.msra.mxu0 0.0
    %3734 = vmatprep.subr.mxu0 0.0
    %3735 = vmatpush1.msra.mxu0 0.0
    %3736 = vmatprep.subr.mxu0 0.0
    %3737 = vmatpush1.msra.mxu0 0.0
    %3738 = vmatprep.subr.mxu0 0.0
    %3739 = vmatpush1.msra.mxu0 0.0
    %3740 = vmatprep.subr.mxu0 0.0
    %3741 = vmatpush1.msra.mxu0 0.0
    %3742 = vmatprep.subr.mxu0 0.0
    %3743 = vmatpush1.msra.mxu0 0.0
    %3744 = vmatprep.subr.mxu0 0.0
    %3745 = vmatpush1.msra.mxu0 0.0
    %3746 = vmatprep.subr.mxu0 0.0
    %3747 = vmatpush1.msra.mxu0 0.0
    %3748 = vmatprep.subr.mxu0 0.0
    %3749 = vmatpush1.msra.mxu0 %v2595
    %3750 = vmatprep.subr.mxu0 0.0
    %3751 = vmatpush1.msra.mxu0 %v2594
    %3752 = vmatprep.subr.mxu0 0.0
    %3753 = vmatpush1.msra.mxu0 %v2593
    %3754 = vmatprep.subr.mxu0 0.0
    %3755 = vmatpush1.msra.mxu0 %v2592
    %3756 = vmatprep.subr.mxu0 0.0
    %3757 = vmatpush2.msra.mxu0 0.0
    %3758 = vmatprep.subr.mxu0 0.0
    %3759 = vmatpush2.msra.mxu0 0.0
    %3760 = vmatprep.subr.mxu0 0.0
    %3761 = vmatpush2.msra.mxu0 0.0
    %3762 = vmatprep.subr.mxu0 0.0
    %3763 = vmatpush2.msra.mxu0 0.0
    %3764 = vmatprep.subr.mxu0 0.0
    %3765 = vmatpush2.msra.mxu0 0.0
    %3766 = vmatprep.subr.mxu0 0.0
    %3767 = vmatpush2.msra.mxu0 0.0
    %3768 = vmatprep.subr.mxu0 0.0
    %3769 = vmatpush2.msra.mxu0 0.0
    %3770 = vmatprep.subr.mxu0 0.0
    %3771 = vmatpush2.msra.mxu0 0.0
    %3772 = vmatprep.subr.mxu0 0.0
    %3773 = vmatpush2.msra.mxu0 0.0
    %3774 = vmatprep.subr.mxu0 0.0
    %3775 = vmatpush2.msra.mxu0 0.0
    %3776 = vmatprep.subr.mxu0 0.0
    %3777 = vmatpush2.msra.mxu0 0.0
    %3778 = vmatprep.subr.mxu0 0.0
    %3779 = vmatpush2.msra.mxu0 0.0
    %3780 = vmatprep.subr.mxu0 0.0
    %3781 = vmatpush2.msra.mxu0 0.0
    %3782 = vmatprep.subr.mxu0 0.0
    %3783 = vmatpush2.msra.mxu0 0.0
    %3784 = vmatprep.subr.mxu0 0.0
    %3785 = vmatpush2.msra.mxu0 0.0
    %3786 = vmatprep.subr.mxu0 0.0
    %3787 = vmatpush2.msra.mxu0 0.0
    %3788 = vmatprep.mubr.f32.mxu0 0.0
    %3789 = vmatmul.mubr.f32.gmra.mxu0 %v3582
    %v3790 = vpop.f32.mrf.mxu0
    %v3791 = vadd.f32 %v2742, %v3790
    %v3792 = vpop.f32.mrf.mxu0
    %3793 = vdwg.mxu0
    %v3794 = vadd.f32 %v2418, %v3651
    %v3795 = vxor.u32 %v3794, 2147483648
    %v3796 = vmul.f32 %v3795, 1.442695
    %v3797 = vpow.pop %v3796
    %v3798 = vadd.f32 %v3797, 1.0
    %v3799 = vrcp.pop %v3798
    %v3800 = vmul.f32 1.0, %v3799
    %v3801 = vadd.f32 %v2499, %v3721
    %v3802 = vxor.u32 %v3801, 2147483648
    %v3803 = vmul.f32 %v3802, 1.442695
    %v3804 = vpow.pop %v3803
    %v3805 = vadd.f32 %v3804, 1.0
    %v3806 = vrcp.pop %v3805
    %v3807 = vmul.f32 1.0, %v3806
    %v3808 = vmul.f32 %v3800, %v3791
    %v3809 = vadd.f32 %v2580, %v3808
    %v3810 = vtanh.pop %v3809
    %v3812 = vrot.slane %v3810, 2
    %v3814 = vsub.f32 %v3579, %v3812
    %v3816 = vrot.slane %v3814, 6
    %v3818 = vmul.f32 %v3807, %v3816
    %v3819 = vadd.f32 %v3810, %v3818
    %v3821 = vsel %vm332, %v3819, 0
    %3823 = vmatprep.subr.mxu0 0.0
    %3824 = vmatpush1.msra.mxu0 0.0
    %3825 = vmatprep.subr.mxu0 0.0
    %3826 = vmatpush1.msra.mxu0 0.0
    %3827 = vmatprep.subr.mxu0 0.0
    %3828 = vmatpush1.msra.mxu0 0.0
    %3829 = vmatprep.subr.mxu0 0.0
    %3830 = vmatpush1.msra.mxu0 0.0
    %3831 = vmatprep.subr.mxu0 0.0
    %3832 = vmatpush1.msra.mxu0 0.0
    %3833 = vmatprep.subr.mxu0 0.0
    %3834 = vmatpush1.msra.mxu0 0.0
    %3835 = vmatprep.subr.mxu0 0.0
    %3836 = vmatpush1.msra.mxu0 0.0
    %3837 = vmatprep.subr.mxu0 0.0
    %3838 = vmatpush1.msra.mxu0 0.0
    %3839 = vmatprep.subr.mxu0 0.0
    %3840 = vmatpush1.msra.mxu0 0.0
    %3841 = vmatprep.subr.mxu0 0.0
    %3842 = vmatpush1.msra.mxu0 0.0
    %3843 = vmatprep.subr.mxu0 0.0
    %3844 = vmatpush1.msra.mxu0 0.0
    %3845 = vmatprep.subr.mxu0 0.0
    %3846 = vmatpush1.msra.mxu0 0.0
    %3847 = vmatprep.subr.mxu0 0.0
    %3848 = vmatpush1.msra.mxu0 %v2587
    %3849 = vmatprep.subr.mxu0 0.0
    %3850 = vmatpush1.msra.mxu0 %v2586
    %3851 = vmatprep.subr.mxu0 0.0
    %3852 = vmatpush1.msra.mxu0 %v2585
    %3853 = vmatprep.subr.mxu0 0.0
    %3854 = vmatpush1.msra.mxu0 %v2584
    %3855 = vmatprep.subr.mxu0 0.0
    %3856 = vmatpush2.msra.mxu0 0.0
    %3857 = vmatprep.subr.mxu0 0.0
    %3858 = vmatpush2.msra.mxu0 0.0
    %3859 = vmatprep.subr.mxu0 0.0
    %3860 = vmatpush2.msra.mxu0 0.0
    %3861 = vmatprep.subr.mxu0 0.0
    %3862 = vmatpush2.msra.mxu0 0.0
    %3863 = vmatprep.subr.mxu0 0.0
    %3864 = vmatpush2.msra.mxu0 0.0
    %3865 = vmatprep.subr.mxu0 0.0
    %3866 = vmatpush2.msra.mxu0 0.0
    %3867 = vmatprep.subr.mxu0 0.0
    %3868 = vmatpush2.msra.mxu0 0.0
    %3869 = vmatprep.subr.mxu0 0.0
    %3870 = vmatpush2.msra.mxu0 0.0
    %3871 = vmatprep.subr.mxu0 0.0
    %3872 = vmatpush2.msra.mxu0 0.0
    %3873 = vmatprep.subr.mxu0 0.0
    %3874 = vmatpush2.msra.mxu0 0.0
    %3875 = vmatprep.subr.mxu0 0.0
    %3876 = vmatpush2.msra.mxu0 0.0
    %3877 = vmatprep.subr.mxu0 0.0
    %3878 = vmatpush2.msra.mxu0 0.0
    %3879 = vmatprep.subr.mxu0 0.0
    %3880 = vmatpush2.msra.mxu0 0.0
    %3881 = vmatprep.subr.mxu0 0.0
    %3882 = vmatpush2.msra.mxu0 0.0
    %3883 = vmatprep.subr.mxu0 0.0
    %3884 = vmatpush2.msra.mxu0 0.0
    %3885 = vmatprep.subr.mxu0 0.0
    %3886 = vmatpush2.msra.mxu0 0.0
    %3887 = vmatprep.mubr.f32.mxu0 0.0
    %3888 = vmatmul.mubr.f32.gmra.mxu0 %v3821
    %v3889 = vpop.f32.mrf.mxu0
    %v3890 = vadd.f32 0.0, %v3889
    %v3891 = vpop.f32.mrf.mxu0
    %3892 = vdwg.mxu0
    %3893 = vmatprep.subr.mxu0 0.0
    %3894 = vmatpush1.msra.mxu0 0.0
    %3895 = vmatprep.subr.mxu0 0.0
    %3896 = vmatpush1.msra.mxu0 0.0
    %3897 = vmatprep.subr.mxu0 0.0
    %3898 = vmatpush1.msra.mxu0 0.0
    %3899 = vmatprep.subr.mxu0 0.0
    %3900 = vmatpush1.msra.mxu0 0.0
    %3901 = vmatprep.subr.mxu0 0.0
    %3902 = vmatpush1.msra.mxu0 0.0
    %3903 = vmatprep.subr.mxu0 0.0
    %3904 = vmatpush1.msra.mxu0 0.0
    %3905 = vmatprep.subr.mxu0 0.0
    %3906 = vmatpush1.msra.mxu0 0.0
    %3907 = vmatprep.subr.mxu0 0.0
    %3908 = vmatpush1.msra.mxu0 0.0
    %3909 = vmatprep.subr.mxu0 0.0
    %3910 = vmatpush1.msra.mxu0 0.0
    %3911 = vmatprep.subr.mxu0 0.0
    %3912 = vmatpush1.msra.mxu0 0.0
    %3913 = vmatprep.subr.mxu0 0.0
    %3914 = vmatpush1.msra.mxu0 0.0
    %3915 = vmatprep.subr.mxu0 0.0
    %3916 = vmatpush1.msra.mxu0 0.0
    %3917 = vmatprep.subr.mxu0 0.0
    %3918 = vmatpush1.msra.mxu0 %v2591
    %3919 = vmatprep.subr.mxu0 0.0
    %3920 = vmatpush1.msra.mxu0 %v2590
    %3921 = vmatprep.subr.mxu0 0.0
    %3922 = vmatpush1.msra.mxu0 %v2589
    %3923 = vmatprep.subr.mxu0 0.0
    %3924 = vmatpush1.msra.mxu0 %v2588
    %3925 = vmatprep.subr.mxu0 0.0
    %3926 = vmatpush2.msra.mxu0 0.0
    %3927 = vmatprep.subr.mxu0 0.0
    %3928 = vmatpush2.msra.mxu0 0.0
    %3929 = vmatprep.subr.mxu0 0.0
    %3930 = vmatpush2.msra.mxu0 0.0
    %3931 = vmatprep.subr.mxu0 0.0
    %3932 = vmatpush2.msra.mxu0 0.0
    %3933 = vmatprep.subr.mxu0 0.0
    %3934 = vmatpush2.msra.mxu0 0.0
    %3935 = vmatprep.subr.mxu0 0.0
    %3936 = vmatpush2.msra.mxu0 0.0
    %3937 = vmatprep.subr.mxu0 0.0
    %3938 = vmatpush2.msra.mxu0 0.0
    %3939 = vmatprep.subr.mxu0 0.0
    %3940 = vmatpush2.msra.mxu0 0.0
    %3941 = vmatprep.subr.mxu0 0.0
    %3942 = vmatpush2.msra.mxu0 0.0
    %3943 = vmatprep.subr.mxu0 0.0
    %3944 = vmatpush2.msra.mxu0 0.0
    %3945 = vmatprep.subr.mxu0 0.0
    %3946 = vmatpush2.msra.mxu0 0.0
    %3947 = vmatprep.subr.mxu0 0.0
    %3948 = vmatpush2.msra.mxu0 0.0
    %3949 = vmatprep.subr.mxu0 0.0
    %3950 = vmatpush2.msra.mxu0 0.0
    %3951 = vmatprep.subr.mxu0 0.0
    %3952 = vmatpush2.msra.mxu0 0.0
    %3953 = vmatprep.subr.mxu0 0.0
    %3954 = vmatpush2.msra.mxu0 0.0
    %3955 = vmatprep.subr.mxu0 0.0
    %3956 = vmatpush2.msra.mxu0 0.0
    %3957 = vmatprep.mubr.f32.mxu0 0.0
    %3958 = vmatmul.mubr.f32.gmra.mxu0 %v3821
    %v3959 = vpop.f32.mrf.mxu0
    %v3960 = vadd.f32 0.0, %v3959
    %v3961 = vpop.f32.mrf.mxu0
    %3962 = vdwg.mxu0
    %3963 = vmatprep.subr.mxu0 0.0
    %3964 = vmatpush1.msra.mxu0 0.0
    %3965 = vmatprep.subr.mxu0 0.0
    %3966 = vmatpush1.msra.mxu0 0.0
    %3967 = vmatprep.subr.mxu0 0.0
    %3968 = vmatpush1.msra.mxu0 0.0
    %3969 = vmatprep.subr.mxu0 0.0
    %3970 = vmatpush1.msra.mxu0 0.0
    %3971 = vmatprep.subr.mxu0 0.0
    %3972 = vmatpush1.msra.mxu0 0.0
    %3973 = vmatprep.subr.mxu0 0.0
    %3974 = vmatpush1.msra.mxu0 0.0
    %3975 = vmatprep.subr.mxu0 0.0
    %3976 = vmatpush1.msra.mxu0 0.0
    %3977 = vmatprep.subr.mxu0 0.0
    %3978 = vmatpush1.msra.mxu0 0.0
    %3979 = vmatprep.subr.mxu0 0.0
    %3980 = vmatpush1.msra.mxu0 0.0
    %3981 = vmatprep.subr.mxu0 0.0
    %3982 = vmatpush1.msra.mxu0 0.0
    %3983 = vmatprep.subr.mxu0 0.0
    %3984 = vmatpush1.msra.mxu0 0.0
    %3985 = vmatprep.subr.mxu0 0.0
    %3986 = vmatpush1.msra.mxu0 0.0
    %3987 = vmatprep.subr.mxu0 0.0
    %3988 = vmatpush1.msra.mxu0 %v2595
    %3989 = vmatprep.subr.mxu0 0.0
    %3990 = vmatpush1.msra.mxu0 %v2594
    %3991 = vmatprep.subr.mxu0 0.0
    %3992 = vmatpush1.msra.mxu0 %v2593
    %3993 = vmatprep.subr.mxu0 0.0
    %3994 = vmatpush1.msra.mxu0 %v2592
    %3995 = vmatprep.subr.mxu0 0.0
    %3996 = vmatpush2.msra.mxu0 0.0
    %3997 = vmatprep.subr.mxu0 0.0
    %3998 = vmatpush2.msra.mxu0 0.0
    %3999 = vmatprep.subr.mxu0 0.0
    %4000 = vmatpush2.msra.mxu0 0.0
    %4001 = vmatprep.subr.mxu0 0.0
    %4002 = vmatpush2.msra.mxu0 0.0
    %4003 = vmatprep.subr.mxu0 0.0
    %4004 = vmatpush2.msra.mxu0 0.0
    %4005 = vmatprep.subr.mxu0 0.0
    %4006 = vmatpush2.msra.mxu0 0.0
    %4007 = vmatprep.subr.mxu0 0.0
    %4008 = vmatpush2.msra.mxu0 0.0
    %4009 = vmatprep.subr.mxu0 0.0
    %4010 = vmatpush2.msra.mxu0 0.0
    %4011 = vmatprep.subr.mxu0 0.0
    %4012 = vmatpush2.msra.mxu0 0.0
    %4013 = vmatprep.subr.mxu0 0.0
    %4014 = vmatpush2.msra.mxu0 0.0
    %4015 = vmatprep.subr.mxu0 0.0
    %4016 = vmatpush2.msra.mxu0 0.0
    %4017 = vmatprep.subr.mxu0 0.0
    %4018 = vmatpush2.msra.mxu0 0.0
    %4019 = vmatprep.subr.mxu0 0.0
    %4020 = vmatpush2.msra.mxu0 0.0
    %4021 = vmatprep.subr.mxu0 0.0
    %4022 = vmatpush2.msra.mxu0 0.0
    %4023 = vmatprep.subr.mxu0 0.0
    %4024 = vmatpush2.msra.mxu0 0.0
    %4025 = vmatprep.subr.mxu0 0.0
    %4026 = vmatpush2.msra.mxu0 0.0
    %4027 = vmatprep.mubr.f32.mxu0 0.0
    %4028 = vmatmul.mubr.f32.gmra.mxu0 %v3821
    %v4029 = vpop.f32.mrf.mxu0
    %v4030 = vadd.f32 %v2742, %v4029
    %v4031 = vpop.f32.mrf.mxu0
    %4032 = vdwg.mxu0
    %v4034 = vrot.slane %v3890, 6
    %v4036 = vadd.f32 %v2418, %v4034
    %v4037 = vxor.u32 %v4036, 2147483648
    %v4038 = vmul.f32 %v4037, 1.442695
    %v4039 = vpow.pop %v4038
    %v4040 = vadd.f32 %v4039, 1.0
    %v4041 = vrcp.pop %v4040
    %v4042 = vmul.f32 1.0, %v4041
    %v4044 = vrot.slane %v3960, 6
    %v4046 = vadd.f32 %v2499, %v4044
    %v4047 = vxor.u32 %v4046, 2147483648
    %v4048 = vmul.f32 %v4047, 1.442695
    %v4049 = vpow.pop %v4048
    %v4050 = vadd.f32 %v4049, 1.0
    %v4051 = vrcp.pop %v4050
    %v4052 = vmul.f32 1.0, %v4051
    %v4054 = vrot.slane %v4030, 6
    %v4056 = vmul.f32 %v4042, %v4054
    %v4057 = vadd.f32 %v2580, %v4056
    %v4058 = vtanh.pop %v4057
    %v4060 = vrot.slane %v4058, 2
    %v4062 = vsub.f32 %v3819, %v4060
    %v4064 = vrot.slane %v4062, 6
    %v4066 = vmul.f32 %v4052, %v4064
    %v4067 = vadd.f32 %v4058, %v4066
    %v4069 = vrot.slane %v4067, 2
    %v4070 = vsel %vm332, %v4069, 0
    %4072 = vmatprep.subr.mxu0 0.0
    %4073 = vmatpush1.msra.mxu0 0.0
    %4074 = vmatprep.subr.mxu0 0.0
    %4075 = vmatpush1.msra.mxu0 0.0
    %4076 = vmatprep.subr.mxu0 0.0
    %4077 = vmatpush1.msra.mxu0 0.0
    %4078 = vmatprep.subr.mxu0 0.0
    %4079 = vmatpush1.msra.mxu0 0.0
    %4080 = vmatprep.subr.mxu0 0.0
    %4081 = vmatpush1.msra.mxu0 0.0
    %4082 = vmatprep.subr.mxu0 0.0
    %4083 = vmatpush1.msra.mxu0 0.0
    %4084 = vmatprep.subr.mxu0 0.0
    %4085 = vmatpush1.msra.mxu0 0.0
    %4086 = vmatprep.subr.mxu0 0.0
    %4087 = vmatpush1.msra.mxu0 0.0
    %4088 = vmatprep.subr.mxu0 0.0
    %4089 = vmatpush1.msra.mxu0 0.0
    %4090 = vmatprep.subr.mxu0 0.0
    %4091 = vmatpush1.msra.mxu0 0.0
    %4092 = vmatprep.subr.mxu0 0.0
    %4093 = vmatpush1.msra.mxu0 0.0
    %4094 = vmatprep.subr.mxu0 0.0
    %4095 = vmatpush1.msra.mxu0 0.0
    %4096 = vmatprep.subr.mxu0 0.0
    %4097 = vmatpush1.msra.mxu0 %v2587
    %4098 = vmatprep.subr.mxu0 0.0
    %4099 = vmatpush1.msra.mxu0 %v2586
    %4100 = vmatprep.subr.mxu0 0.0
    %4101 = vmatpush1.msra.mxu0 %v2585
    %4102 = vmatprep.subr.mxu0 0.0
    %4103 = vmatpush1.msra.mxu0 %v2584
    %4104 = vmatprep.subr.mxu0 0.0
    %4105 = vmatpush2.msra.mxu0 0.0
    %4106 = vmatprep.subr.mxu0 0.0
    %4107 = vmatpush2.msra.mxu0 0.0
    %4108 = vmatprep.subr.mxu0 0.0
    %4109 = vmatpush2.msra.mxu0 0.0
    %4110 = vmatprep.subr.mxu0 0.0
    %4111 = vmatpush2.msra.mxu0 0.0
    %4112 = vmatprep.subr.mxu0 0.0
    %4113 = vmatpush2.msra.mxu0 0.0
    %4114 = vmatprep.subr.mxu0 0.0
    %4115 = vmatpush2.msra.mxu0 0.0
    %4116 = vmatprep.subr.mxu0 0.0
    %4117 = vmatpush2.msra.mxu0 0.0
    %4118 = vmatprep.subr.mxu0 0.0
    %4119 = vmatpush2.msra.mxu0 0.0
    %4120 = vmatprep.subr.mxu0 0.0
    %4121 = vmatpush2.msra.mxu0 0.0
    %4122 = vmatprep.subr.mxu0 0.0
    %4123 = vmatpush2.msra.mxu0 0.0
    %4124 = vmatprep.subr.mxu0 0.0
    %4125 = vmatpush2.msra.mxu0 0.0
    %4126 = vmatprep.subr.mxu0 0.0
    %4127 = vmatpush2.msra.mxu0 0.0
    %4128 = vmatprep.subr.mxu0 0.0
    %4129 = vmatpush2.msra.mxu0 0.0
    %4130 = vmatprep.subr.mxu0 0.0
    %4131 = vmatpush2.msra.mxu0 0.0
    %4132 = vmatprep.subr.mxu0 0.0
    %4133 = vmatpush2.msra.mxu0 0.0
    %4134 = vmatprep.subr.mxu0 0.0
    %4135 = vmatpush2.msra.mxu0 0.0
    %4136 = vmatprep.mubr.f32.mxu0 0.0
    %4137 = vmatmul.mubr.f32.gmra.mxu0 %v4070
    %v4138 = vpop.f32.mrf.mxu0
    %v4139 = vadd.f32 0.0, %v4138
    %v4140 = vpop.f32.mrf.mxu0
    %4141 = vdwg.mxu0
    %4142 = vmatprep.subr.mxu0 0.0
    %4143 = vmatpush1.msra.mxu0 0.0
    %4144 = vmatprep.subr.mxu0 0.0
    %4145 = vmatpush1.msra.mxu0 0.0
    %4146 = vmatprep.subr.mxu0 0.0
    %4147 = vmatpush1.msra.mxu0 0.0
    %4148 = vmatprep.subr.mxu0 0.0
    %4149 = vmatpush1.msra.mxu0 0.0
    %4150 = vmatprep.subr.mxu0 0.0
    %4151 = vmatpush1.msra.mxu0 0.0
    %4152 = vmatprep.subr.mxu0 0.0
    %4153 = vmatpush1.msra.mxu0 0.0
    %4154 = vmatprep.subr.mxu0 0.0
    %4155 = vmatpush1.msra.mxu0 0.0
    %4156 = vmatprep.subr.mxu0 0.0
    %4157 = vmatpush1.msra.mxu0 0.0
    %4158 = vmatprep.subr.mxu0 0.0
    %4159 = vmatpush1.msra.mxu0 0.0
    %4160 = vmatprep.subr.mxu0 0.0
    %4161 = vmatpush1.msra.mxu0 0.0
    %4162 = vmatprep.subr.mxu0 0.0
    %4163 = vmatpush1.msra.mxu0 0.0
    %4164 = vmatprep.subr.mxu0 0.0
    %4165 = vmatpush1.msra.mxu0 0.0
    %4166 = vmatprep.subr.mxu0 0.0
    %4167 = vmatpush1.msra.mxu0 %v2591
    %4168 = vmatprep.subr.mxu0 0.0
    %4169 = vmatpush1.msra.mxu0 %v2590
    %4170 = vmatprep.subr.mxu0 0.0
    %4171 = vmatpush1.msra.mxu0 %v2589
    %4172 = vmatprep.subr.mxu0 0.0
    %4173 = vmatpush1.msra.mxu0 %v2588
    %4174 = vmatprep.subr.mxu0 0.0
    %4175 = vmatpush2.msra.mxu0 0.0
    %4176 = vmatprep.subr.mxu0 0.0
    %4177 = vmatpush2.msra.mxu0 0.0
    %4178 = vmatprep.subr.mxu0 0.0
    %4179 = vmatpush2.msra.mxu0 0.0
    %4180 = vmatprep.subr.mxu0 0.0
    %4181 = vmatpush2.msra.mxu0 0.0
    %4182 = vmatprep.subr.mxu0 0.0
    %4183 = vmatpush2.msra.mxu0 0.0
    %4184 = vmatprep.subr.mxu0 0.0
    %4185 = vmatpush2.msra.mxu0 0.0
    %4186 = vmatprep.subr.mxu0 0.0
    %4187 = vmatpush2.msra.mxu0 0.0
    %4188 = vmatprep.subr.mxu0 0.0
    %4189 = vmatpush2.msra.mxu0 0.0
    %4190 = vmatprep.subr.mxu0 0.0
    %4191 = vmatpush2.msra.mxu0 0.0
    %4192 = vmatprep.subr.mxu0 0.0
    %4193 = vmatpush2.msra.mxu0 0.0
    %4194 = vmatprep.subr.mxu0 0.0
    %4195 = vmatpush2.msra.mxu0 0.0
    %4196 = vmatprep.subr.mxu0 0.0
    %4197 = vmatpush2.msra.mxu0 0.0
    %4198 = vmatprep.subr.mxu0 0.0
    %4199 = vmatpush2.msra.mxu0 0.0
    %4200 = vmatprep.subr.mxu0 0.0
    %4201 = vmatpush2.msra.mxu0 0.0
    %4202 = vmatprep.subr.mxu0 0.0
    %4203 = vmatpush2.msra.mxu0 0.0
    %4204 = vmatprep.subr.mxu0 0.0
    %4205 = vmatpush2.msra.mxu0 0.0
    %4206 = vmatprep.mubr.f32.mxu0 0.0
    %4207 = vmatmul.mubr.f32.gmra.mxu0 %v4070
    %v4208 = vpop.f32.mrf.mxu0
    %v4209 = vadd.f32 0.0, %v4208
    %v4210 = vpop.f32.mrf.mxu0
    %4211 = vdwg.mxu0
    %4212 = vmatprep.subr.mxu0 0.0
    %4213 = vmatpush1.msra.mxu0 0.0
    %4214 = vmatprep.subr.mxu0 0.0
    %4215 = vmatpush1.msra.mxu0 0.0
    %4216 = vmatprep.subr.mxu0 0.0
    %4217 = vmatpush1.msra.mxu0 0.0
    %4218 = vmatprep.subr.mxu0 0.0
    %4219 = vmatpush1.msra.mxu0 0.0
    %4220 = vmatprep.subr.mxu0 0.0
    %4221 = vmatpush1.msra.mxu0 0.0
    %4222 = vmatprep.subr.mxu0 0.0
    %4223 = vmatpush1.msra.mxu0 0.0
    %4224 = vmatprep.subr.mxu0 0.0
    %4225 = vmatpush1.msra.mxu0 0.0
    %4226 = vmatprep.subr.mxu0 0.0
    %4227 = vmatpush1.msra.mxu0 0.0
    %4228 = vmatprep.subr.mxu0 0.0
    %4229 = vmatpush1.msra.mxu0 0.0
    %4230 = vmatprep.subr.mxu0 0.0
    %4231 = vmatpush1.msra.mxu0 0.0
    %4232 = vmatprep.subr.mxu0 0.0
    %4233 = vmatpush1.msra.mxu0 0.0
    %4234 = vmatprep.subr.mxu0 0.0
    %4235 = vmatpush1.msra.mxu0 0.0
    %4236 = vmatprep.subr.mxu0 0.0
    %4237 = vmatpush1.msra.mxu0 %v2595
    %4238 = vmatprep.subr.mxu0 0.0
    %4239 = vmatpush1.msra.mxu0 %v2594
    %4240 = vmatprep.subr.mxu0 0.0
    %4241 = vmatpush1.msra.mxu0 %v2593
    %4242 = vmatprep.subr.mxu0 0.0
    %4243 = vmatpush1.msra.mxu0 %v2592
    %4244 = vmatprep.subr.mxu0 0.0
    %4245 = vmatpush2.msra.mxu0 0.0
    %4246 = vmatprep.subr.mxu0 0.0
    %4247 = vmatpush2.msra.mxu0 0.0
    %4248 = vmatprep.subr.mxu0 0.0
    %4249 = vmatpush2.msra.mxu0 0.0
    %4250 = vmatprep.subr.mxu0 0.0
    %4251 = vmatpush2.msra.mxu0 0.0
    %4252 = vmatprep.subr.mxu0 0.0
    %4253 = vmatpush2.msra.mxu0 0.0
    %4254 = vmatprep.subr.mxu0 0.0
    %4255 = vmatpush2.msra.mxu0 0.0
    %4256 = vmatprep.subr.mxu0 0.0
    %4257 = vmatpush2.msra.mxu0 0.0
    %4258 = vmatprep.subr.mxu0 0.0
    %4259 = vmatpush2.msra.mxu0 0.0
    %4260 = vmatprep.subr.mxu0 0.0
    %4261 = vmatpush2.msra.mxu0 0.0
    %4262 = vmatprep.subr.mxu0 0.0
    %4263 = vmatpush2.msra.mxu0 0.0
    %4264 = vmatprep.subr.mxu0 0.0
    %4265 = vmatpush2.msra.mxu0 0.0
    %4266 = vmatprep.subr.mxu0 0.0
    %4267 = vmatpush2.msra.mxu0 0.0
    %4268 = vmatprep.subr.mxu0 0.0
    %4269 = vmatpush2.msra.mxu0 0.0
    %4270 = vmatprep.subr.mxu0 0.0
    %4271 = vmatpush2.msra.mxu0 0.0
    %4272 = vmatprep.subr.mxu0 0.0
    %4273 = vmatpush2.msra.mxu0 0.0
    %4274 = vmatprep.subr.mxu0 0.0
    %4275 = vmatpush2.msra.mxu0 0.0
    %4276 = vmatprep.mubr.f32.mxu0 0.0
    %4277 = vmatmul.mubr.f32.gmra.mxu0 %v4070
    %v4278 = vpop.f32.mrf.mxu0
    %v4279 = vadd.f32 %v2742, %v4278
    %v4280 = vpop.f32.mrf.mxu0
    %4281 = vdwg.mxu0
    %v4283 = vrot.slane %v4139, 4
    %v4285 = vadd.f32 %v2418, %v4283
    %v4286 = vxor.u32 %v4285, 2147483648
    %v4287 = vmul.f32 %v4286, 1.442695
    %v4288 = vpow.pop %v4287
    %v4289 = vadd.f32 %v4288, 1.0
    %v4290 = vrcp.pop %v4289
    %v4291 = vmul.f32 1.0, %v4290
    %v4293 = vrot.slane %v4209, 4
    %v4295 = vadd.f32 %v2499, %v4293
    %v4296 = vxor.u32 %v4295, 2147483648
    %v4297 = vmul.f32 %v4296, 1.442695
    %v4298 = vpow.pop %v4297
    %v4299 = vadd.f32 %v4298, 1.0
    %v4300 = vrcp.pop %v4299
    %v4301 = vmul.f32 1.0, %v4300
    %v4303 = vrot.slane %v4279, 4
    %v4305 = vmul.f32 %v4291, %v4303
    %v4306 = vadd.f32 %v2580, %v4305
    %v4307 = vtanh.pop %v4306
    %v4309 = vrot.slane %v4307, 2
    %v4311 = vsub.f32 %v4067, %v4309
    %v4313 = vrot.slane %v4311, 6
    %v4315 = vmul.f32 %v4301, %v4313
    %v4316 = vadd.f32 %v4307, %v4315
    %v4318 = vrot.slane %v4316, 4
    %v4319 = vsel %vm332, %v4318, 0
    %4321 = vmatprep.subr.mxu0 0.0
    %4322 = vmatpush1.msra.mxu0 0.0
    %4323 = vmatprep.subr.mxu0 0.0
    %4324 = vmatpush1.msra.mxu0 0.0
    %4325 = vmatprep.subr.mxu0 0.0
    %4326 = vmatpush1.msra.mxu0 0.0
    %4327 = vmatprep.subr.mxu0 0.0
    %4328 = vmatpush1.msra.mxu0 0.0
    %4329 = vmatprep.subr.mxu0 0.0
    %4330 = vmatpush1.msra.mxu0 0.0
    %4331 = vmatprep.subr.mxu0 0.0
    %4332 = vmatpush1.msra.mxu0 0.0
    %4333 = vmatprep.subr.mxu0 0.0
    %4334 = vmatpush1.msra.mxu0 0.0
    %4335 = vmatprep.subr.mxu0 0.0
    %4336 = vmatpush1.msra.mxu0 0.0
    %4337 = vmatprep.subr.mxu0 0.0
    %4338 = vmatpush1.msra.mxu0 0.0
    %4339 = vmatprep.subr.mxu0 0.0
    %4340 = vmatpush1.msra.mxu0 0.0
    %4341 = vmatprep.subr.mxu0 0.0
    %4342 = vmatpush1.msra.mxu0 0.0
    %4343 = vmatprep.subr.mxu0 0.0
    %4344 = vmatpush1.msra.mxu0 0.0
    %4345 = vmatprep.subr.mxu0 0.0
    %4346 = vmatpush1.msra.mxu0 %v2587
    %4347 = vmatprep.subr.mxu0 0.0
    %4348 = vmatpush1.msra.mxu0 %v2586
    %4349 = vmatprep.subr.mxu0 0.0
    %4350 = vmatpush1.msra.mxu0 %v2585
    %4351 = vmatprep.subr.mxu0 0.0
    %4352 = vmatpush1.msra.mxu0 %v2584
    %4353 = vmatprep.subr.mxu0 0.0
    %4354 = vmatpush2.msra.mxu0 0.0
    %4355 = vmatprep.subr.mxu0 0.0
    %4356 = vmatpush2.msra.mxu0 0.0
    %4357 = vmatprep.subr.mxu0 0.0
    %4358 = vmatpush2.msra.mxu0 0.0
    %4359 = vmatprep.subr.mxu0 0.0
    %4360 = vmatpush2.msra.mxu0 0.0
    %4361 = vmatprep.subr.mxu0 0.0
    %4362 = vmatpush2.msra.mxu0 0.0
    %4363 = vmatprep.subr.mxu0 0.0
    %4364 = vmatpush2.msra.mxu0 0.0
    %4365 = vmatprep.subr.mxu0 0.0
    %4366 = vmatpush2.msra.mxu0 0.0
    %4367 = vmatprep.subr.mxu0 0.0
    %4368 = vmatpush2.msra.mxu0 0.0
    %4369 = vmatprep.subr.mxu0 0.0
    %4370 = vmatpush2.msra.mxu0 0.0
    %4371 = vmatprep.subr.mxu0 0.0
    %4372 = vmatpush2.msra.mxu0 0.0
    %4373 = vmatprep.subr.mxu0 0.0
    %4374 = vmatpush2.msra.mxu0 0.0
    %4375 = vmatprep.subr.mxu0 0.0
    %4376 = vmatpush2.msra.mxu0 0.0
    %4377 = vmatprep.subr.mxu0 0.0
    %4378 = vmatpush2.msra.mxu0 0.0
    %4379 = vmatprep.subr.mxu0 0.0
    %4380 = vmatpush2.msra.mxu0 0.0
    %4381 = vmatprep.subr.mxu0 0.0
    %4382 = vmatpush2.msra.mxu0 0.0
    %4383 = vmatprep.subr.mxu0 0.0
    %4384 = vmatpush2.msra.mxu0 0.0
    %4385 = vmatprep.mubr.f32.mxu0 0.0
    %4386 = vmatmul.mubr.f32.gmra.mxu0 %v4319
    %v4387 = vpop.f32.mrf.mxu0
    %v4388 = vadd.f32 0.0, %v4387
    %v4389 = vpop.f32.mrf.mxu0
    %4390 = vdwg.mxu0
    %4391 = vmatprep.subr.mxu0 0.0
    %4392 = vmatpush1.msra.mxu0 0.0
    %4393 = vmatprep.subr.mxu0 0.0
    %4394 = vmatpush1.msra.mxu0 0.0
    %4395 = vmatprep.subr.mxu0 0.0
    %4396 = vmatpush1.msra.mxu0 0.0
    %4397 = vmatprep.subr.mxu0 0.0
    %4398 = vmatpush1.msra.mxu0 0.0
    %4399 = vmatprep.subr.mxu0 0.0
    %4400 = vmatpush1.msra.mxu0 0.0
    %4401 = vmatprep.subr.mxu0 0.0
    %4402 = vmatpush1.msra.mxu0 0.0
    %4403 = vmatprep.subr.mxu0 0.0
    %4404 = vmatpush1.msra.mxu0 0.0
    %4405 = vmatprep.subr.mxu0 0.0
    %4406 = vmatpush1.msra.mxu0 0.0
    %4407 = vmatprep.subr.mxu0 0.0
    %4408 = vmatpush1.msra.mxu0 0.0
    %4409 = vmatprep.subr.mxu0 0.0
    %4410 = vmatpush1.msra.mxu0 0.0
    %4411 = vmatprep.subr.mxu0 0.0
    %4412 = vmatpush1.msra.mxu0 0.0
    %4413 = vmatprep.subr.mxu0 0.0
    %4414 = vmatpush1.msra.mxu0 0.0
    %4415 = vmatprep.subr.mxu0 0.0
    %4416 = vmatpush1.msra.mxu0 %v2591
    %4417 = vmatprep.subr.mxu0 0.0
    %4418 = vmatpush1.msra.mxu0 %v2590
    %4419 = vmatprep.subr.mxu0 0.0
    %4420 = vmatpush1.msra.mxu0 %v2589
    %4421 = vmatprep.subr.mxu0 0.0
    %4422 = vmatpush1.msra.mxu0 %v2588
    %4423 = vmatprep.subr.mxu0 0.0
    %4424 = vmatpush2.msra.mxu0 0.0
    %4425 = vmatprep.subr.mxu0 0.0
    %4426 = vmatpush2.msra.mxu0 0.0
    %4427 = vmatprep.subr.mxu0 0.0
    %4428 = vmatpush2.msra.mxu0 0.0
    %4429 = vmatprep.subr.mxu0 0.0
    %4430 = vmatpush2.msra.mxu0 0.0
    %4431 = vmatprep.subr.mxu0 0.0
    %4432 = vmatpush2.msra.mxu0 0.0
    %4433 = vmatprep.subr.mxu0 0.0
    %4434 = vmatpush2.msra.mxu0 0.0
    %4435 = vmatprep.subr.mxu0 0.0
    %4436 = vmatpush2.msra.mxu0 0.0
    %4437 = vmatprep.subr.mxu0 0.0
    %4438 = vmatpush2.msra.mxu0 0.0
    %4439 = vmatprep.subr.mxu0 0.0
    %4440 = vmatpush2.msra.mxu0 0.0
    %4441 = vmatprep.subr.mxu0 0.0
    %4442 = vmatpush2.msra.mxu0 0.0
    %4443 = vmatprep.subr.mxu0 0.0
    %4444 = vmatpush2.msra.mxu0 0.0
    %4445 = vmatprep.subr.mxu0 0.0
    %4446 = vmatpush2.msra.mxu0 0.0
    %4447 = vmatprep.subr.mxu0 0.0
    %4448 = vmatpush2.msra.mxu0 0.0
    %4449 = vmatprep.subr.mxu0 0.0
    %4450 = vmatpush2.msra.mxu0 0.0
    %4451 = vmatprep.subr.mxu0 0.0
    %4452 = vmatpush2.msra.mxu0 0.0
    %4453 = vmatprep.subr.mxu0 0.0
    %4454 = vmatpush2.msra.mxu0 0.0
    %4455 = vmatprep.mubr.f32.mxu0 0.0
    %4456 = vmatmul.mubr.f32.gmra.mxu0 %v4319
    %v4457 = vpop.f32.mrf.mxu0
    %v4458 = vadd.f32 0.0, %v4457
    %v4459 = vpop.f32.mrf.mxu0
    %4460 = vdwg.mxu0
    %4461 = vmatprep.subr.mxu0 0.0
    %4462 = vmatpush1.msra.mxu0 0.0
    %4463 = vmatprep.subr.mxu0 0.0
    %4464 = vmatpush1.msra.mxu0 0.0
    %4465 = vmatprep.subr.mxu0 0.0
    %4466 = vmatpush1.msra.mxu0 0.0
    %4467 = vmatprep.subr.mxu0 0.0
    %4468 = vmatpush1.msra.mxu0 0.0
    %4469 = vmatprep.subr.mxu0 0.0
    %4470 = vmatpush1.msra.mxu0 0.0
    %4471 = vmatprep.subr.mxu0 0.0
    %4472 = vmatpush1.msra.mxu0 0.0
    %4473 = vmatprep.subr.mxu0 0.0
    %4474 = vmatpush1.msra.mxu0 0.0
    %4475 = vmatprep.subr.mxu0 0.0
    %4476 = vmatpush1.msra.mxu0 0.0
    %4477 = vmatprep.subr.mxu0 0.0
    %4478 = vmatpush1.msra.mxu0 0.0
    %4479 = vmatprep.subr.mxu0 0.0
    %4480 = vmatpush1.msra.mxu0 0.0
    %4481 = vmatprep.subr.mxu0 0.0
    %4482 = vmatpush1.msra.mxu0 0.0
    %4483 = vmatprep.subr.mxu0 0.0
    %4484 = vmatpush1.msra.mxu0 0.0
    %4485 = vmatprep.subr.mxu0 0.0
    %4486 = vmatpush1.msra.mxu0 %v2595
    %4487 = vmatprep.subr.mxu0 0.0
    %4488 = vmatpush1.msra.mxu0 %v2594
    %4489 = vmatprep.subr.mxu0 0.0
    %4490 = vmatpush1.msra.mxu0 %v2593
    %4491 = vmatprep.subr.mxu0 0.0
    %4492 = vmatpush1.msra.mxu0 %v2592
    %4493 = vmatprep.subr.mxu0 0.0
    %4494 = vmatpush2.msra.mxu0 0.0
    %4495 = vmatprep.subr.mxu0 0.0
    %4496 = vmatpush2.msra.mxu0 0.0
    %4497 = vmatprep.subr.mxu0 0.0
    %4498 = vmatpush2.msra.mxu0 0.0
    %4499 = vmatprep.subr.mxu0 0.0
    %4500 = vmatpush2.msra.mxu0 0.0
    %4501 = vmatprep.subr.mxu0 0.0
    %4502 = vmatpush2.msra.mxu0 0.0
    %4503 = vmatprep.subr.mxu0 0.0
    %4504 = vmatpush2.msra.mxu0 0.0
    %4505 = vmatprep.subr.mxu0 0.0
    %4506 = vmatpush2.msra.mxu0 0.0
    %4507 = vmatprep.subr.mxu0 0.0
    %4508 = vmatpush2.msra.mxu0 0.0
    %4509 = vmatprep.subr.mxu0 0.0
    %4510 = vmatpush2.msra.mxu0 0.0
    %4511 = vmatprep.subr.mxu0 0.0
    %4512 = vmatpush2.msra.mxu0 0.0
    %4513 = vmatprep.subr.mxu0 0.0
    %4514 = vmatpush2.msra.mxu0 0.0
    %4515 = vmatprep.subr.mxu0 0.0
    %4516 = vmatpush2.msra.mxu0 0.0
    %4517 = vmatprep.subr.mxu0 0.0
    %4518 = vmatpush2.msra.mxu0 0.0
    %4519 = vmatprep.subr.mxu0 0.0
    %4520 = vmatpush2.msra.mxu0 0.0
    %4521 = vmatprep.subr.mxu0 0.0
    %4522 = vmatpush2.msra.mxu0 0.0
    %4523 = vmatprep.subr.mxu0 0.0
    %4524 = vmatpush2.msra.mxu0 0.0
    %4525 = vmatprep.mubr.f32.mxu0 0.0
    %4526 = vmatmul.mubr.f32.gmra.mxu0 %v4319
    %v4527 = vpop.f32.mrf.mxu0
    %v4528 = vadd.f32 %v2742, %v4527
    %v4529 = vpop.f32.mrf.mxu0
    %4530 = vdwg.mxu0
    %v4532 = vrot.slane %v4388, 2
    %v4534 = vadd.f32 %v2418, %v4532
    %v4535 = vxor.u32 %v4534, 2147483648
    %v4536 = vmul.f32 %v4535, 1.442695
    %v4537 = vpow.pop %v4536
    %v4538 = vadd.f32 %v4537, 1.0
    %v4539 = vrcp.pop %v4538
    %v4540 = vmul.f32 1.0, %v4539
    %v4542 = vrot.slane %v4458, 2
    %v4544 = vadd.f32 %v2499, %v4542
    %v4545 = vxor.u32 %v4544, 2147483648
    %v4546 = vmul.f32 %v4545, 1.442695
    %v4547 = vpow.pop %v4546
    %v4548 = vadd.f32 %v4547, 1.0
    %v4549 = vrcp.pop %v4548
    %v4550 = vmul.f32 1.0, %v4549
    %v4552 = vrot.slane %v4528, 2
    %v4554 = vmul.f32 %v4540, %v4552
    %v4555 = vadd.f32 %v2580, %v4554
    %v4556 = vtanh.pop %v4555
    %v4558 = vrot.slane %v4556, 2
    %v4560 = vsub.f32 %v4316, %v4558
    %v4562 = vrot.slane %v4560, 6
    %v4564 = vmul.f32 %v4550, %v4562
    %v4565 = vadd.f32 %v4556, %v4564
    %v4566 = vld [vmem:[%s6] sm:$0xff]
    %v4567 = vld [vmem:[%s6 + $0x8] sm:$0xff]
    %v4568 = vld [vmem:[%s6 + $0x10] sm:$0xff]
    %v4569 = vld [vmem:[%s6 + $0x18] sm:$0xff]
    %v4570 = vld [vmem:[%s7] sm:$0x1]
    %v4572 = vlaneseq
    %v4573 = vshrl.u32 %v4572, 7
    %v4574 = vsub.s32 0, %v4573
    %v4575 = vrot.slane %v4570, %v4574
    %v4578 = vrot.slane %v4565, 6
    %v4579 = vsel %vm332, %v4578, 0
    %4581 = vmatprep.subr.mxu0 0.0
    %4582 = vmatpush1.msra.mxu0 0.0
    %4583 = vmatprep.subr.mxu0 0.0
    %4584 = vmatpush1.msra.mxu0 0.0
    %4585 = vmatprep.subr.mxu0 0.0
    %4586 = vmatpush1.msra.mxu0 0.0
    %4587 = vmatprep.subr.mxu0 0.0
    %4588 = vmatpush1.msra.mxu0 0.0
    %4589 = vmatprep.subr.mxu0 0.0
    %4590 = vmatpush1.msra.mxu0 0.0
    %4591 = vmatprep.subr.mxu0 0.0
    %4592 = vmatpush1.msra.mxu0 0.0
    %4593 = vmatprep.subr.mxu0 0.0
    %4594 = vmatpush1.msra.mxu0 0.0
    %4595 = vmatprep.subr.mxu0 0.0
    %4596 = vmatpush1.msra.mxu0 0.0
    %4597 = vmatprep.subr.mxu0 0.0
    %4598 = vmatpush1.msra.mxu0 0.0
    %4599 = vmatprep.subr.mxu0 0.0
    %4600 = vmatpush1.msra.mxu0 0.0
    %4601 = vmatprep.subr.mxu0 0.0
    %4602 = vmatpush1.msra.mxu0 0.0
    %4603 = vmatprep.subr.mxu0 0.0
    %4604 = vmatpush1.msra.mxu0 0.0
    %4605 = vmatprep.subr.mxu0 0.0
    %4606 = vmatpush1.msra.mxu0 %v4569
    %4607 = vmatprep.subr.mxu0 0.0
    %4608 = vmatpush1.msra.mxu0 %v4568
    %4609 = vmatprep.subr.mxu0 0.0
    %4610 = vmatpush1.msra.mxu0 %v4567
    %4611 = vmatprep.subr.mxu0 0.0
    %4612 = vmatpush1.msra.mxu0 %v4566
    %4613 = vmatprep.subr.mxu0 0.0
    %4614 = vmatpush2.msra.mxu0 0.0
    %4615 = vmatprep.subr.mxu0 0.0
    %4616 = vmatpush2.msra.mxu0 0.0
    %4617 = vmatprep.subr.mxu0 0.0
    %4618 = vmatpush2.msra.mxu0 0.0
    %4619 = vmatprep.subr.mxu0 0.0
    %4620 = vmatpush2.msra.mxu0 0.0
    %4621 = vmatprep.subr.mxu0 0.0
    %4622 = vmatpush2.msra.mxu0 0.0
    %4623 = vmatprep.subr.mxu0 0.0
    %4624 = vmatpush2.msra.mxu0 0.0
    %4625 = vmatprep.subr.mxu0 0.0
    %4626 = vmatpush2.msra.mxu0 0.0
    %4627 = vmatprep.subr.mxu0 0.0
    %4628 = vmatpush2.msra.mxu0 0.0
    %4629 = vmatprep.subr.mxu0 0.0
    %4630 = vmatpush2.msra.mxu0 0.0
    %4631 = vmatprep.subr.mxu0 0.0
    %4632 = vmatpush2.msra.mxu0 0.0
    %4633 = vmatprep.subr.mxu0 0.0
    %4634 = vmatpush2.msra.mxu0 0.0
    %4635 = vmatprep.subr.mxu0 0.0
    %4636 = vmatpush2.msra.mxu0 0.0
    %4637 = vmatprep.subr.mxu0 0.0
    %4638 = vmatpush2.msra.mxu0 0.0
    %4639 = vmatprep.subr.mxu0 0.0
    %4640 = vmatpush2.msra.mxu0 0.0
    %4641 = vmatprep.subr.mxu0 0.0
    %4642 = vmatpush2.msra.mxu0 0.0
    %4643 = vmatprep.subr.mxu0 0.0
    %4644 = vmatpush2.msra.mxu0 0.0
    %4645 = vmatprep.mubr.f32.mxu0 0.0
    %4646 = vmatmul.mubr.f32.gmra.mxu0 %v4579
    %v4647 = vpop.f32.mrf.mxu0
    %v4648 = vadd.f32 %v4575, %v4647
    %v4649 = vpop.f32.mrf.mxu0
    %4650 = vdwg.mxu0
    %vm4651 = vcmask 33792
    %v4652 = vsel %vm4651, %v4648, -inf
    %4653 = vmax.xlane.f32.xlu0 %v4652
    %v4654 = vpop.xlane.xlu0 %4653
    %v4655 = vsub.f32 %v4648, %v4654
    %v4656 = vmul.f32 %v4655, 1.442695
    %v4657 = vpow.pop %v4656
    %v4658 = vsel %vm4651, %v4657, 0.0
    %4659 = vadd.xlane.f32.xlu0 %v4658
    %v4660 = vpop.xlane.xlu0 %4659
    %v4661 = vrcp.pop %v4660
    %v4662 = vmul.f32 %v4657, %v4661
    %4663 = vst.msk [vmem:[#allocation8] sm:$0x3] %vm4651, %v4662
    // Predicated region
    $region42: #{gru3d_classifier_forward.1} parent=1 // pred_check
      _
    $region43: #{gru3d_classifier_forward.1} parent=1 // pred_check_branch
      %4665 = sbr.rel (0) target = $region45
    $region44: #{gru3d_classifier_forward.1} parent=1 // pred_region
      %s4667 = ssub.s32 32, 32
      %4668 = vsyncadd [#allocation5], %s4667
      %s4670 = sshll.u32 [#allocation8], 4
      %s4671 = int_to_ptr.vmem [resolvable:$true] %s4670
      %4673 = dma.vmem_to_hbm [thread:$0]  %s4671, 32, %s8, [#allocation5]
    $region45: #{gru3d_classifier_forward.1} parent=1 // pred_fallthru
      _
    // Predicated region
    $region46: #{gru3d_classifier_forward.1} parent=1 // pred_check
      _
    $region47: #{gru3d_classifier_forward.1} parent=1 // pred_check_branch
      %4675 = sbr.rel (0) target = $region49
    $region48: #{gru3d_classifier_forward.1} parent=1 // pred_region
      %4676 = dma.done [#allocation5], 32
    $region49: #{gru3d_classifier_forward.1} parent=1 // pred_fallthru
      _
    %4677 = vsyncpa [#allocation4], 1
    %4678 = vsyncpa [#allocation7], 1
    %4679 = vsyncpa [#allocation5], 1

</llo_original>
